<compile_context>
chip_gen: v5e
topology: v5e:2x2
jax: 0.10.0
libtpu: 0.0.40
codegen_flags: <defaults>
</compile_context>

<pallas_src>
import functools

import jax
import jax.numpy as jnp
from jax.experimental import pallas as pl
from jax.experimental.pallas import tpu as pltpu

EMB_DIM = 50
N_WORD, N_POS, N_LAB = 18, 18, 12
N_SLOTS = N_WORD + N_POS + N_LAB          # 48
FEAT_DIM = EMB_DIM * N_SLOTS              # 2400
_LANE = 128


def _round_up(x, m):
    return (x + m - 1) // m * m


def _slot_layout(vocabs):
    """Layout of the folded table / multi-hot K axis.

    Returns (groups, k_total) where groups is a tuple of
    (slot_start, n_slots, vocab, slot_width, col_start); slot_width is a
    multiple of 128 so every slot owns a lane-aligned column block.
    """
    counts = (N_WORD, N_POS, N_LAB)
    starts = (0, N_WORD, N_WORD + N_POS)
    groups = []
    col = 0
    for g in range(3):
        width = _round_up(int(vocabs[g]), _LANE)
        groups.append((starts[g], counts[g], int(vocabs[g]), width, col))
        col += counts[g] * width
    return tuple(groups), col


def _onelayer_kernel(ids_ref, ftab_ref, b1_ref, w2_ref, b2_ref, o_ref,
                     mh_ref, *, groups):
    """One batch tile: multi-hot build + single folded GEMM + tanh + logits.

    ids_ref : (bt, 48)  int32    token ids for this batch tile
    ftab_ref: (Kp, Hp)  bf16     folded (embedding @ W1) table, slot-blocked
    b1_ref  : (1, Hp)   f32
    w2_ref  : (Hp, Cp)  bf16
    b2_ref  : (1, Cp)   f32
    o_ref   : (bt, Cp)  f32      logits (lane-dense, padded classes)
    mh_ref  : (bt, Kp)  bf16     VMEM scratch: multi-hot selector matrix
    """
    bt = mh_ref.shape[0]

    # Build the multi-hot selector: slot s contributes a one-hot row inside its
    # own 128-aligned lane block -> 48 clean unmasked stores, fully covering
    # mh_ref every tile.  Out-of-range ids produce an all-zero row (PyTorch
    # nn.Embedding would raise instead).
    # TODO(synk): optional pl.debug_check(id < vocab) under enable_debug_checks.
    for slot_start, n_slots, _vocab, width, col_start in groups:
        iota = jax.lax.broadcasted_iota(jnp.int32, (bt, width), 1)
        for j in range(n_slots):
            s = slot_start + j
            ids_col = ids_ref[:, s:s + 1]                          # (bt, 1) i32
            onehot = jnp.where(ids_col == iota, 1.0, 0.0).astype(jnp.bfloat16)
            lo = col_start + j * width
            mh_ref[:, lo:lo + width] = onehot

    # Single lane-dense GEMM against the folded table; pre-activation, tanh and
    # the second GEMM all stay in vregs (no VMEM accumulator, f32 math on VPU).
    pre = jnp.dot(mh_ref[...], ftab_ref[...],
                  preferred_element_type=jnp.float32)              # (bt, Hp)
    h = jnp.tanh(pre + b1_ref[...])                                # f32
    logits = jnp.dot(h.astype(jnp.bfloat16), w2_ref[...],
                     preferred_element_type=jnp.float32) + b2_ref[...]
    o_ref[...] = logits.astype(o_ref.dtype)


def pack_params(params, num_classes):
    """One-time conversion of f32 model params into the kernel layout.

    Folds W1 into the embedding tables: block for slot s = table_s @ W1[s],
    computed in f32 and rounded once to bf16 (the bf16 rounding point therefore
    sits after the fold, not before).
    """
    h_units = params["w1"].shape[1]
    h_pad = _round_up(h_units, _LANE)
    c_pad = _round_up(num_classes, _LANE)

    tables = (params["word_embed"], params["pos_embed"], params["label_embed"])
    vocabs = tuple(int(t.shape[0]) for t in tables)
    groups, k_total = _slot_layout(vocabs)

    w1 = params["w1"].astype(jnp.float32).reshape(N_SLOTS, EMB_DIM, h_units)
    folded = jnp.zeros((k_total, h_pad), jnp.float32)
    for g, (slot_start, n_slots, vocab, width, col_start) in enumerate(groups):
        table = tables[g].astype(jnp.float32)                       # (V, 50)
        for j in range(n_slots):
            s = slot_start + j
            e = jnp.dot(table, w1[s],
                        precision=jax.lax.Precision.HIGHEST)        # (V, H) f32
            lo = col_start + j * width
            folded = folded.at[lo:lo + vocab, :h_units].set(e)
    folded = folded.astype(jnp.bfloat16)

    b1 = jnp.zeros((1, h_pad), jnp.float32).at[:, :h_units].set(params["b1"])
    w2 = jnp.zeros((h_pad, c_pad), jnp.float32).at[:h_units, :num_classes].set(
        params["w2"]).astype(jnp.bfloat16)
    b2 = jnp.zeros((1, c_pad), jnp.float32).at[:, :num_classes].set(params["b2"])

    return {"folded": folded, "b1": b1, "w2": w2, "b2": b2, "vocabs": vocabs}


def onelayer_forward(input_data, kparams, num_classes):
    """input_data: (1, B, 48) int32; kparams: output of pack_params()."""
    ids = jnp.squeeze(input_data, axis=0).astype(jnp.int32)        # (B, 48)
    B = ids.shape[0]
    h_pad = kparams["b1"].shape[1]
    c_pad = kparams["b2"].shape[1]
    groups, k_total = _slot_layout(kparams["vocabs"])
    assert kparams["folded"].shape == (k_total, h_pad)

    # Batch tiling: balanced tiles of up to 256 rows (multiple of 8 sublanes).
    # bt=256 fills the v6e/v7x 256-wide MXU; if one >128-row tile would cover
    # all of B, split it in two so both v7x TensorCores get a grid step.
    n_tiles = max(1, -(-B // 256))
    bt = _round_up(-(-B // n_tiles), 8)
    if bt > 128 and n_tiles == 1:
        bt = _round_up(-(-B // 2), 8)
    b_pad = _round_up(B, bt)
    if b_pad != B:
        ids = jnp.pad(ids, ((0, b_pad - B), (0, 0)))               # pad with id 0
    nb = b_pad // bt

    flops = b_pad * (2 * k_total * h_pad + 2 * h_pad * c_pad)
    bytes_accessed = (ids.size * 4 + b_pad * c_pad * 4
                      + sum(int(kparams[k].size) * kparams[k].dtype.itemsize
                            for k in ("folded", "b1", "w2", "b2")))

    kernel = functools.partial(_onelayer_kernel, groups=groups)
    out = pl.pallas_call(
        kernel,
        out_shape=jax.ShapeDtypeStruct((b_pad, c_pad), jnp.float32),
        grid=(nb,),
        in_specs=[
            pl.BlockSpec((bt, N_SLOTS), lambda i: (i, 0)),             # ids tile
            pl.BlockSpec(kparams["folded"].shape, lambda i: (0, 0)),   # resident
            pl.BlockSpec(kparams["b1"].shape, lambda i: (0, 0)),
            pl.BlockSpec(kparams["w2"].shape, lambda i: (0, 0)),
            pl.BlockSpec(kparams["b2"].shape, lambda i: (0, 0)),
        ],
        out_specs=pl.BlockSpec((bt, c_pad), lambda i: (i, 0)),
        scratch_shapes=[pltpu.VMEM((bt, k_total), jnp.bfloat16)],
        compiler_params=pltpu.CompilerParams(
            dimension_semantics=("parallel",)),
        cost_estimate=pl.CostEstimate(
            flops=int(flops),
            transcendentals=int(b_pad * h_pad),
            bytes_accessed=int(bytes_accessed)),
    )(ids, kparams["folded"], kparams["b1"], kparams["w2"], kparams["b2"])

    return out[:B, :num_classes]


def init_params(key, input_dim, h_units, num_classes):
    kw, kp, kl, k1, k2, kb1, kb2 = jax.random.split(key, 7)
    # TODO(synk): linear layers use a simple small-uniform init instead of
    # nn.Linear's default fan-in uniform (embedding init matches the module).
    return {
        "word_embed": jax.random.uniform(kw, (input_dim[0], EMB_DIM),
                                         minval=-0.01, maxval=0.01, dtype=jnp.float32),
        "pos_embed": jax.random.uniform(kp, (input_dim[1], EMB_DIM),
                                        minval=-0.01, maxval=0.01, dtype=jnp.float32),
        "label_embed": jax.random.uniform(kl, (input_dim[2], EMB_DIM),
                                          minval=-0.01, maxval=0.01, dtype=jnp.float32),
        "w1": jax.random.uniform(k1, (FEAT_DIM, h_units),
                                 minval=-0.02, maxval=0.02, dtype=jnp.float32),
        "b1": jax.random.uniform(kb1, (1, h_units),
                                 minval=-0.02, maxval=0.02, dtype=jnp.float32),
        "w2": jax.random.uniform(k2, (h_units, num_classes),
                                 minval=-0.1, maxval=0.1, dtype=jnp.float32),
        "b2": jax.random.uniform(kb2, (1, num_classes),
                                 minval=-0.1, maxval=0.1, dtype=jnp.float32),
    }


if __name__ == "__main__":
    input_dim = (100, 20, 10)    # (word vocab, pos vocab, label vocab)
    h_units = 32
    num_classes = 4
    batch = 8

    key = jax.random.PRNGKey(0)
    kparam, kw, kp, kl = jax.random.split(key, 4)
    params = init_params(kparam, input_dim, h_units, num_classes)
    kparams = pack_params(params, num_classes)     # one-time layout conversion

    word_ids = jax.random.randint(kw, (1, batch, 18), 0, input_dim[0], dtype=jnp.int32)
    pos_ids = jax.random.randint(kp, (1, batch, 18), 0, input_dim[1], dtype=jnp.int32)
    lab_ids = jax.random.randint(kl, (1, batch, 12), 0, input_dim[2], dtype=jnp.int32)
    input_data = jnp.concatenate([word_ids, pos_ids, lab_ids], axis=2)  # (1, B, 48)

    out = onelayer_forward(input_data, kparams, num_classes)
    out = jax.block_until_ready(out)
    assert out.shape == (batch, num_classes)

    # Pure-JAX reference mirroring the kernel's math exactly: f32-accumulated
    # gather of the bf16 folded (embedding @ W1) rows + b1, f32 tanh, bf16
    # weights with f32 accumulation for the second layer.
    ids = jnp.squeeze(input_data, axis=0)
    groups, _ = _slot_layout(kparams["vocabs"])
    row_off = []
    for slot_start, n_slots, vocab, width, col_start in groups:
        row_off.extend(col_start + j * width for j in range(n_slots))
    row_off = jnp.asarray(row_off, jnp.int32)                       # (48,)
    folded_f32 = kparams["folded"].astype(jnp.float32)
    pre = folded_f32[row_off[None, :] + ids].sum(axis=1) + kparams["b1"]
    h_ref = jnp.tanh(pre)
    ref = jnp.dot(h_ref.astype(jnp.bfloat16).astype(jnp.float32),
                  kparams["w2"].astype(jnp.float32),
                  precision=jax.lax.Precision.HIGHEST) + kparams["b2"]
    ref = ref[:batch, :num_classes]

    assert jnp.allclose(out, ref, atol=1e-3, rtol=1e-3), \
        float(jnp.max(jnp.abs(out - ref)))
    print("KERNEL_OK")
</pallas_src>

<mosaic_0001>
module attributes {stable_mosaic.version = 11 : i64} {
  func.func @_onelayer_kernel(%arg0: i32, %arg1: memref<8x48xi32, #tpu.memory_space<vmem>>, %arg2: memref<6144x128xbf16, #tpu.memory_space<vmem>>, %arg3: memref<1x128xf32, #tpu.memory_space<vmem>>, %arg4: memref<128x128xbf16, #tpu.memory_space<vmem>>, %arg5: memref<1x128xf32, #tpu.memory_space<vmem>>, %arg6: memref<8x128xf32, #tpu.memory_space<vmem>>, %arg7: memref<8x6144xbf16, #tpu.memory_space<vmem>>) attributes {dimension_semantics = [#tpu.dimension_semantics<parallel>], iteration_bounds = array<i64: 1>, scalar_prefetch = 0 : i64, scratch_operands = 1 : i64, tpu.core_type = #tpu.core_type<tc>, window_params = [{transform_indices = @transform_0, window_bounds = array<i64: 8, 48>}, {pipeline_mode = #tpu.pipeline_mode<synchronous>, transform_indices = @transform_1, window_bounds = array<i64: 6144, 128>}, {pipeline_mode = #tpu.pipeline_mode<synchronous>, transform_indices = @transform_2, window_bounds = array<i64: 1, 128>}, {pipeline_mode = #tpu.pipeline_mode<synchronous>, transform_indices = @transform_3, window_bounds = array<i64: 128, 128>}, {pipeline_mode = #tpu.pipeline_mode<synchronous>, transform_indices = @transform_4, window_bounds = array<i64: 1, 128>}, {transform_indices = @transform_5, window_bounds = array<i64: 8, 128>}]} {
    %0 = tpu.iota {dimensions = array<i32: 1>} : vector<8x128xi32>
    %c0 = arith.constant 0 : index
    %c0_0 = arith.constant 0 : index
    %1 = vector.load %arg1[%c0, %c0_0] : memref<8x48xi32, #tpu.memory_space<vmem>>, vector<8x1xi32>
    %2 = vector.broadcast %1 : vector<8x1xi32> to vector<8x128xi32>
    %3 = arith.cmpi eq, %2, %0 : vector<8x128xi32>
    %cst = arith.constant 1.000000e+00 : f32
    %cst_1 = arith.constant 0.000000e+00 : f32
    %4 = vector.broadcast %cst : f32 to vector<8x128xf32>
    %5 = vector.broadcast %cst_1 : f32 to vector<8x128xf32>
    %6 = arith.select %3, %4, %5 : vector<8x128xi1>, vector<8x128xf32>
    %7 = arith.truncf %6 : vector<8x128xf32> to vector<8x128xbf16>
    %c0_2 = arith.constant 0 : index
    %c0_3 = arith.constant 0 : index
    %8 = vector.load %arg7[%c0_2, %c0_3] : memref<8x6144xbf16, #tpu.memory_space<vmem>>, vector<8x128xbf16>
    tpu.vector_store %arg7[%c0_2, %c0_3], %7 {strides = array<i32>} : memref<8x6144xbf16, #tpu.memory_space<vmem>>, vector<8x128xbf16>,
    %c0_4 = arith.constant 0 : index
    %c1 = arith.constant 1 : index
    %9 = vector.load %arg1[%c0_4, %c1] : memref<8x48xi32, #tpu.memory_space<vmem>>, vector<8x1xi32>
    %10 = vector.broadcast %9 : vector<8x1xi32> to vector<8x128xi32>
    %11 = arith.cmpi eq, %10, %0 : vector<8x128xi32>
    %cst_5 = arith.constant 1.000000e+00 : f32
    %cst_6 = arith.constant 0.000000e+00 : f32
    %12 = vector.broadcast %cst_5 : f32 to vector<8x128xf32>
    %13 = vector.broadcast %cst_6 : f32 to vector<8x128xf32>
    %14 = arith.select %11, %12, %13 : vector<8x128xi1>, vector<8x128xf32>
    %15 = arith.truncf %14 : vector<8x128xf32> to vector<8x128xbf16>
    %c0_7 = arith.constant 0 : index
    %c128 = arith.constant 128 : index
    %16 = vector.load %arg7[%c0_7, %c128] : memref<8x6144xbf16, #tpu.memory_space<vmem>>, vector<8x128xbf16>
    tpu.vector_store %arg7[%c0_7, %c128], %15 {strides = array<i32>} : memref<8x6144xbf16, #tpu.memory_space<vmem>>, vector<8x128xbf16>,
    %c0_8 = arith.constant 0 : index
    %c2 = arith.constant 2 : index
    %17 = vector.load %arg1[%c0_8, %c2] : memref<8x48xi32, #tpu.memory_space<vmem>>, vector<8x1xi32>
    %18 = vector.broadcast %17 : vector<8x1xi32> to vector<8x128xi32>
    %19 = arith.cmpi eq, %18, %0 : vector<8x128xi32>
    %cst_9 = arith.constant 1.000000e+00 : f32
    %cst_10 = arith.constant 0.000000e+00 : f32
    %20 = vector.broadcast %cst_9 : f32 to vector<8x128xf32>
    %21 = vector.broadcast %cst_10 : f32 to vector<8x128xf32>
    %22 = arith.select %19, %20, %21 : vector<8x128xi1>, vector<8x128xf32>
    %23 = arith.truncf %22 : vector<8x128xf32> to vector<8x128xbf16>
    %c0_11 = arith.constant 0 : index
    %c256 = arith.constant 256 : index
    %24 = vector.load %arg7[%c0_11, %c256] : memref<8x6144xbf16, #tpu.memory_space<vmem>>, vector<8x128xbf16>
    tpu.vector_store %arg7[%c0_11, %c256], %23 {strides = array<i32>} : memref<8x6144xbf16, #tpu.memory_space<vmem>>, vector<8x128xbf16>,
    %c0_12 = arith.constant 0 : index
    %c3 = arith.constant 3 : index
    %25 = vector.load %arg1[%c0_12, %c3] : memref<8x48xi32, #tpu.memory_space<vmem>>, vector<8x1xi32>
    %26 = vector.broadcast %25 : vector<8x1xi32> to vector<8x128xi32>
    %27 = arith.cmpi eq, %26, %0 : vector<8x128xi32>
    %cst_13 = arith.constant 1.000000e+00 : f32
    %cst_14 = arith.constant 0.000000e+00 : f32
    %28 = vector.broadcast %cst_13 : f32 to vector<8x128xf32>
    %29 = vector.broadcast %cst_14 : f32 to vector<8x128xf32>
    %30 = arith.select %27, %28, %29 : vector<8x128xi1>, vector<8x128xf32>
    %31 = arith.truncf %30 : vector<8x128xf32> to vector<8x128xbf16>
    %c0_15 = arith.constant 0 : index
    %c384 = arith.constant 384 : index
    %32 = vector.load %arg7[%c0_15, %c384] : memref<8x6144xbf16, #tpu.memory_space<vmem>>, vector<8x128xbf16>
    tpu.vector_store %arg7[%c0_15, %c384], %31 {strides = array<i32>} : memref<8x6144xbf16, #tpu.memory_space<vmem>>, vector<8x128xbf16>,
    %c0_16 = arith.constant 0 : index
    %c4 = arith.constant 4 : index
    %33 = vector.load %arg1[%c0_16, %c4] : memref<8x48xi32, #tpu.memory_space<vmem>>, vector<8x1xi32>
    %34 = vector.broadcast %33 : vector<8x1xi32> to vector<8x128xi32>
    %35 = arith.cmpi eq, %34, %0 : vector<8x128xi32>
    %cst_17 = arith.constant 1.000000e+00 : f32
    %cst_18 = arith.constant 0.000000e+00 : f32
    %36 = vector.broadcast %cst_17 : f32 to vector<8x128xf32>
    %37 = vector.broadcast %cst_18 : f32 to vector<8x128xf32>
    %38 = arith.select %35, %36, %37 : vector<8x128xi1>, vector<8x128xf32>
    %39 = arith.truncf %38 : vector<8x128xf32> to vector<8x128xbf16>
    %c0_19 = arith.constant 0 : index
    %c512 = arith.constant 512 : index
    %40 = vector.load %arg7[%c0_19, %c512] : memref<8x6144xbf16, #tpu.memory_space<vmem>>, vector<8x128xbf16>
    tpu.vector_store %arg7[%c0_19, %c512], %39 {strides = array<i32>} : memref<8x6144xbf16, #tpu.memory_space<vmem>>, vector<8x128xbf16>,
    %c0_20 = arith.constant 0 : index
    %c5 = arith.constant 5 : index
    %41 = vector.load %arg1[%c0_20, %c5] : memref<8x48xi32, #tpu.memory_space<vmem>>, vector<8x1xi32>
    %42 = vector.broadcast %41 : vector<8x1xi32> to vector<8x128xi32>
    %43 = arith.cmpi eq, %42, %0 : vector<8x128xi32>
    %cst_21 = arith.constant 1.000000e+00 : f32
    %cst_22 = arith.constant 0.000000e+00 : f32
    %44 = vector.broadcast %cst_21 : f32 to vector<8x128xf32>
    %45 = vector.broadcast %cst_22 : f32 to vector<8x128xf32>
    %46 = arith.select %43, %44, %45 : vector<8x128xi1>, vector<8x128xf32>
    %47 = arith.truncf %46 : vector<8x128xf32> to vector<8x128xbf16>
    %c0_23 = arith.constant 0 : index
    %c640 = arith.constant 640 : index
    %48 = vector.load %arg7[%c0_23, %c640] : memref<8x6144xbf16, #tpu.memory_space<vmem>>, vector<8x128xbf16>
    tpu.vector_store %arg7[%c0_23, %c640], %47 {strides = array<i32>} : memref<8x6144xbf16, #tpu.memory_space<vmem>>, vector<8x128xbf16>,
    %c0_24 = arith.constant 0 : index
    %c6 = arith.constant 6 : index
    %49 = vector.load %arg1[%c0_24, %c6] : memref<8x48xi32, #tpu.memory_space<vmem>>, vector<8x1xi32>
    %50 = vector.broadcast %49 : vector<8x1xi32> to vector<8x128xi32>
    %51 = arith.cmpi eq, %50, %0 : vector<8x128xi32>
    %cst_25 = arith.constant 1.000000e+00 : f32
    %cst_26 = arith.constant 0.000000e+00 : f32
    %52 = vector.broadcast %cst_25 : f32 to vector<8x128xf32>
    %53 = vector.broadcast %cst_26 : f32 to vector<8x128xf32>
    %54 = arith.select %51, %52, %53 : vector<8x128xi1>, vector<8x128xf32>
    %55 = arith.truncf %54 : vector<8x128xf32> to vector<8x128xbf16>
    %c0_27 = arith.constant 0 : index
    %c768 = arith.constant 768 : index
    %56 = vector.load %arg7[%c0_27, %c768] : memref<8x6144xbf16, #tpu.memory_space<vmem>>, vector<8x128xbf16>
    tpu.vector_store %arg7[%c0_27, %c768], %55 {strides = array<i32>} : memref<8x6144xbf16, #tpu.memory_space<vmem>>, vector<8x128xbf16>,
    %c0_28 = arith.constant 0 : index
    %c7 = arith.constant 7 : index
    %57 = vector.load %arg1[%c0_28, %c7] : memref<8x48xi32, #tpu.memory_space<vmem>>, vector<8x1xi32>
    %58 = vector.broadcast %57 : vector<8x1xi32> to vector<8x128xi32>
    %59 = arith.cmpi eq, %58, %0 : vector<8x128xi32>
    %cst_29 = arith.constant 1.000000e+00 : f32
    %cst_30 = arith.constant 0.000000e+00 : f32
    %60 = vector.broadcast %cst_29 : f32 to vector<8x128xf32>
    %61 = vector.broadcast %cst_30 : f32 to vector<8x128xf32>
    %62 = arith.select %59, %60, %61 : vector<8x128xi1>, vector<8x128xf32>
    %63 = arith.truncf %62 : vector<8x128xf32> to vector<8x128xbf16>
    %c0_31 = arith.constant 0 : index
    %c896 = arith.constant 896 : index
    %64 = vector.load %arg7[%c0_31, %c896] : memref<8x6144xbf16, #tpu.memory_space<vmem>>, vector<8x128xbf16>
    tpu.vector_store %arg7[%c0_31, %c896], %63 {strides = array<i32>} : memref<8x6144xbf16, #tpu.memory_space<vmem>>, vector<8x128xbf16>,
    %c0_32 = arith.constant 0 : index
    %c8 = arith.constant 8 : index
    %65 = vector.load %arg1[%c0_32, %c8] : memref<8x48xi32, #tpu.memory_space<vmem>>, vector<8x1xi32>
    %66 = vector.broadcast %65 : vector<8x1xi32> to vector<8x128xi32>
    %67 = arith.cmpi eq, %66, %0 : vector<8x128xi32>
    %cst_33 = arith.constant 1.000000e+00 : f32
    %cst_34 = arith.constant 0.000000e+00 : f32
    %68 = vector.broadcast %cst_33 : f32 to vector<8x128xf32>
    %69 = vector.broadcast %cst_34 : f32 to vector<8x128xf32>
    %70 = arith.select %67, %68, %69 : vector<8x128xi1>, vector<8x128xf32>
    %71 = arith.truncf %70 : vector<8x128xf32> to vector<8x128xbf16>
    %c0_35 = arith.constant 0 : index
    %c1024 = arith.constant 1024 : index
    %72 = vector.load %arg7[%c0_35, %c1024] : memref<8x6144xbf16, #tpu.memory_space<vmem>>, vector<8x128xbf16>
    tpu.vector_store %arg7[%c0_35, %c1024], %71 {strides = array<i32>} : memref<8x6144xbf16, #tpu.memory_space<vmem>>, vector<8x128xbf16>,
    %c0_36 = arith.constant 0 : index
    %c9 = arith.constant 9 : index
    %73 = vector.load %arg1[%c0_36, %c9] : memref<8x48xi32, #tpu.memory_space<vmem>>, vector<8x1xi32>
    %74 = vector.broadcast %73 : vector<8x1xi32> to vector<8x128xi32>
    %75 = arith.cmpi eq, %74, %0 : vector<8x128xi32>
    %cst_37 = arith.constant 1.000000e+00 : f32
    %cst_38 = arith.constant 0.000000e+00 : f32
    %76 = vector.broadcast %cst_37 : f32 to vector<8x128xf32>
    %77 = vector.broadcast %cst_38 : f32 to vector<8x128xf32>
    %78 = arith.select %75, %76, %77 : vector<8x128xi1>, vector<8x128xf32>
    %79 = arith.truncf %78 : vector<8x128xf32> to vector<8x128xbf16>
    %c0_39 = arith.constant 0 : index
    %c1152 = arith.constant 1152 : index
    %80 = vector.load %arg7[%c0_39, %c1152] : memref<8x6144xbf16, #tpu.memory_space<vmem>>, vector<8x128xbf16>
    tpu.vector_store %arg7[%c0_39, %c1152], %79 {strides = array<i32>} : memref<8x6144xbf16, #tpu.memory_space<vmem>>, vector<8x128xbf16>,
    %c0_40 = arith.constant 0 : index
    %c10 = arith.constant 10 : index
    %81 = vector.load %arg1[%c0_40, %c10] : memref<8x48xi32, #tpu.memory_space<vmem>>, vector<8x1xi32>
    %82 = vector.broadcast %81 : vector<8x1xi32> to vector<8x128xi32>
    %83 = arith.cmpi eq, %82, %0 : vector<8x128xi32>
    %cst_41 = arith.constant 1.000000e+00 : f32
    %cst_42 = arith.constant 0.000000e+00 : f32
    %84 = vector.broadcast %cst_41 : f32 to vector<8x128xf32>
    %85 = vector.broadcast %cst_42 : f32 to vector<8x128xf32>
    %86 = arith.select %83, %84, %85 : vector<8x128xi1>, vector<8x128xf32>
    %87 = arith.truncf %86 : vector<8x128xf32> to vector<8x128xbf16>
    %c0_43 = arith.constant 0 : index
    %c1280 = arith.constant 1280 : index
    %88 = vector.load %arg7[%c0_43, %c1280] : memref<8x6144xbf16, #tpu.memory_space<vmem>>, vector<8x128xbf16>
    tpu.vector_store %arg7[%c0_43, %c1280], %87 {strides = array<i32>} : memref<8x6144xbf16, #tpu.memory_space<vmem>>, vector<8x128xbf16>,
    %c0_44 = arith.constant 0 : index
    %c11 = arith.constant 11 : index
    %89 = vector.load %arg1[%c0_44, %c11] : memref<8x48xi32, #tpu.memory_space<vmem>>, vector<8x1xi32>
    %90 = vector.broadcast %89 : vector<8x1xi32> to vector<8x128xi32>
    %91 = arith.cmpi eq, %90, %0 : vector<8x128xi32>
    %cst_45 = arith.constant 1.000000e+00 : f32
    %cst_46 = arith.constant 0.000000e+00 : f32
    %92 = vector.broadcast %cst_45 : f32 to vector<8x128xf32>
    %93 = vector.broadcast %cst_46 : f32 to vector<8x128xf32>
    %94 = arith.select %91, %92, %93 : vector<8x128xi1>, vector<8x128xf32>
    %95 = arith.truncf %94 : vector<8x128xf32> to vector<8x128xbf16>
    %c0_47 = arith.constant 0 : index
    %c1408 = arith.constant 1408 : index
    %96 = vector.load %arg7[%c0_47, %c1408] : memref<8x6144xbf16, #tpu.memory_space<vmem>>, vector<8x128xbf16>
    tpu.vector_store %arg7[%c0_47, %c1408], %95 {strides = array<i32>} : memref<8x6144xbf16, #tpu.memory_space<vmem>>, vector<8x128xbf16>,
    %c0_48 = arith.constant 0 : index
    %c12 = arith.constant 12 : index
    %97 = vector.load %arg1[%c0_48, %c12] : memref<8x48xi32, #tpu.memory_space<vmem>>, vector<8x1xi32>
    %98 = vector.broadcast %97 : vector<8x1xi32> to vector<8x128xi32>
    %99 = arith.cmpi eq, %98, %0 : vector<8x128xi32>
    %cst_49 = arith.constant 1.000000e+00 : f32
    %cst_50 = arith.constant 0.000000e+00 : f32
    %100 = vector.broadcast %cst_49 : f32 to vector<8x128xf32>
    %101 = vector.broadcast %cst_50 : f32 to vector<8x128xf32>
    %102 = arith.select %99, %100, %101 : vector<8x128xi1>, vector<8x128xf32>
    %103 = arith.truncf %102 : vector<8x128xf32> to vector<8x128xbf16>
    %c0_51 = arith.constant 0 : index
    %c1536 = arith.constant 1536 : index
    %104 = vector.load %arg7[%c0_51, %c1536] : memref<8x6144xbf16, #tpu.memory_space<vmem>>, vector<8x128xbf16>
    tpu.vector_store %arg7[%c0_51, %c1536], %103 {strides = array<i32>} : memref<8x6144xbf16, #tpu.memory_space<vmem>>, vector<8x128xbf16>,
    %c0_52 = arith.constant 0 : index
    %c13 = arith.constant 13 : index
    %105 = vector.load %arg1[%c0_52, %c13] : memref<8x48xi32, #tpu.memory_space<vmem>>, vector<8x1xi32>
    %106 = vector.broadcast %105 : vector<8x1xi32> to vector<8x128xi32>
    %107 = arith.cmpi eq, %106, %0 : vector<8x128xi32>
    %cst_53 = arith.constant 1.000000e+00 : f32
    %cst_54 = arith.constant 0.000000e+00 : f32
    %108 = vector.broadcast %cst_53 : f32 to vector<8x128xf32>
    %109 = vector.broadcast %cst_54 : f32 to vector<8x128xf32>
    %110 = arith.select %107, %108, %109 : vector<8x128xi1>, vector<8x128xf32>
    %111 = arith.truncf %110 : vector<8x128xf32> to vector<8x128xbf16>
    %c0_55 = arith.constant 0 : index
    %c1664 = arith.constant 1664 : index
    %112 = vector.load %arg7[%c0_55, %c1664] : memref<8x6144xbf16, #tpu.memory_space<vmem>>, vector<8x128xbf16>
    tpu.vector_store %arg7[%c0_55, %c1664], %111 {strides = array<i32>} : memref<8x6144xbf16, #tpu.memory_space<vmem>>, vector<8x128xbf16>,
    %c0_56 = arith.constant 0 : index
    %c14 = arith.constant 14 : index
    %113 = vector.load %arg1[%c0_56, %c14] : memref<8x48xi32, #tpu.memory_space<vmem>>, vector<8x1xi32>
    %114 = vector.broadcast %113 : vector<8x1xi32> to vector<8x128xi32>
    %115 = arith.cmpi eq, %114, %0 : vector<8x128xi32>
    %cst_57 = arith.constant 1.000000e+00 : f32
    %cst_58 = arith.constant 0.000000e+00 : f32
    %116 = vector.broadcast %cst_57 : f32 to vector<8x128xf32>
    %117 = vector.broadcast %cst_58 : f32 to vector<8x128xf32>
    %118 = arith.select %115, %116, %117 : vector<8x128xi1>, vector<8x128xf32>
    %119 = arith.truncf %118 : vector<8x128xf32> to vector<8x128xbf16>
    %c0_59 = arith.constant 0 : index
    %c1792 = arith.constant 1792 : index
    %120 = vector.load %arg7[%c0_59, %c1792] : memref<8x6144xbf16, #tpu.memory_space<vmem>>, vector<8x128xbf16>
    tpu.vector_store %arg7[%c0_59, %c1792], %119 {strides = array<i32>} : memref<8x6144xbf16, #tpu.memory_space<vmem>>, vector<8x128xbf16>,
    %c0_60 = arith.constant 0 : index
    %c15 = arith.constant 15 : index
    %121 = vector.load %arg1[%c0_60, %c15] : memref<8x48xi32, #tpu.memory_space<vmem>>, vector<8x1xi32>
    %122 = vector.broadcast %121 : vector<8x1xi32> to vector<8x128xi32>
    %123 = arith.cmpi eq, %122, %0 : vector<8x128xi32>
    %cst_61 = arith.constant 1.000000e+00 : f32
    %cst_62 = arith.constant 0.000000e+00 : f32
    %124 = vector.broadcast %cst_61 : f32 to vector<8x128xf32>
    %125 = vector.broadcast %cst_62 : f32 to vector<8x128xf32>
    %126 = arith.select %123, %124, %125 : vector<8x128xi1>, vector<8x128xf32>
    %127 = arith.truncf %126 : vector<8x128xf32> to vector<8x128xbf16>
    %c0_63 = arith.constant 0 : index
    %c1920 = arith.constant 1920 : index
    %128 = vector.load %arg7[%c0_63, %c1920] : memref<8x6144xbf16, #tpu.memory_space<vmem>>, vector<8x128xbf16>
    tpu.vector_store %arg7[%c0_63, %c1920], %127 {strides = array<i32>} : memref<8x6144xbf16, #tpu.memory_space<vmem>>, vector<8x128xbf16>,
    %c0_64 = arith.constant 0 : index
    %c16 = arith.constant 16 : index
    %129 = vector.load %arg1[%c0_64, %c16] : memref<8x48xi32, #tpu.memory_space<vmem>>, vector<8x1xi32>
    %130 = vector.broadcast %129 : vector<8x1xi32> to vector<8x128xi32>
    %131 = arith.cmpi eq, %130, %0 : vector<8x128xi32>
    %cst_65 = arith.constant 1.000000e+00 : f32
    %cst_66 = arith.constant 0.000000e+00 : f32
    %132 = vector.broadcast %cst_65 : f32 to vector<8x128xf32>
    %133 = vector.broadcast %cst_66 : f32 to vector<8x128xf32>
    %134 = arith.select %131, %132, %133 : vector<8x128xi1>, vector<8x128xf32>
    %135 = arith.truncf %134 : vector<8x128xf32> to vector<8x128xbf16>
    %c0_67 = arith.constant 0 : index
    %c2048 = arith.constant 2048 : index
    %136 = vector.load %arg7[%c0_67, %c2048] : memref<8x6144xbf16, #tpu.memory_space<vmem>>, vector<8x128xbf16>
    tpu.vector_store %arg7[%c0_67, %c2048], %135 {strides = array<i32>} : memref<8x6144xbf16, #tpu.memory_space<vmem>>, vector<8x128xbf16>,
    %c0_68 = arith.constant 0 : index
    %c17 = arith.constant 17 : index
    %137 = vector.load %arg1[%c0_68, %c17] : memref<8x48xi32, #tpu.memory_space<vmem>>, vector<8x1xi32>
    %138 = vector.broadcast %137 : vector<8x1xi32> to vector<8x128xi32>
    %139 = arith.cmpi eq, %138, %0 : vector<8x128xi32>
    %cst_69 = arith.constant 1.000000e+00 : f32
    %cst_70 = arith.constant 0.000000e+00 : f32
    %140 = vector.broadcast %cst_69 : f32 to vector<8x128xf32>
    %141 = vector.broadcast %cst_70 : f32 to vector<8x128xf32>
    %142 = arith.select %139, %140, %141 : vector<8x128xi1>, vector<8x128xf32>
    %143 = arith.truncf %142 : vector<8x128xf32> to vector<8x128xbf16>
    %c0_71 = arith.constant 0 : index
    %c2176 = arith.constant 2176 : index
    %144 = vector.load %arg7[%c0_71, %c2176] : memref<8x6144xbf16, #tpu.memory_space<vmem>>, vector<8x128xbf16>
    tpu.vector_store %arg7[%c0_71, %c2176], %143 {strides = array<i32>} : memref<8x6144xbf16, #tpu.memory_space<vmem>>, vector<8x128xbf16>,
    %145 = tpu.iota {dimensions = array<i32: 1>} : vector<8x128xi32>
    %c0_72 = arith.constant 0 : index
    %c18 = arith.constant 18 : index
    %146 = vector.load %arg1[%c0_72, %c18] : memref<8x48xi32, #tpu.memory_space<vmem>>, vector<8x1xi32>
    %147 = vector.broadcast %146 : vector<8x1xi32> to vector<8x128xi32>
    %148 = arith.cmpi eq, %147, %145 : vector<8x128xi32>
    %cst_73 = arith.constant 1.000000e+00 : f32
    %cst_74 = arith.constant 0.000000e+00 : f32
    %149 = vector.broadcast %cst_73 : f32 to vector<8x128xf32>
    %150 = vector.broadcast %cst_74 : f32 to vector<8x128xf32>
    %151 = arith.select %148, %149, %150 : vector<8x128xi1>, vector<8x128xf32>
    %152 = arith.truncf %151 : vector<8x128xf32> to vector<8x128xbf16>
    %c0_75 = arith.constant 0 : index
    %c2304 = arith.constant 2304 : index
    %153 = vector.load %arg7[%c0_75, %c2304] : memref<8x6144xbf16, #tpu.memory_space<vmem>>, vector<8x128xbf16>
    tpu.vector_store %arg7[%c0_75, %c2304], %152 {strides = array<i32>} : memref<8x6144xbf16, #tpu.memory_space<vmem>>, vector<8x128xbf16>,
    %c0_76 = arith.constant 0 : index
    %c19 = arith.constant 19 : index
    %154 = vector.load %arg1[%c0_76, %c19] : memref<8x48xi32, #tpu.memory_space<vmem>>, vector<8x1xi32>
    %155 = vector.broadcast %154 : vector<8x1xi32> to vector<8x128xi32>
    %156 = arith.cmpi eq, %155, %145 : vector<8x128xi32>
    %cst_77 = arith.constant 1.000000e+00 : f32
    %cst_78 = arith.constant 0.000000e+00 : f32
    %157 = vector.broadcast %cst_77 : f32 to vector<8x128xf32>
    %158 = vector.broadcast %cst_78 : f32 to vector<8x128xf32>
    %159 = arith.select %156, %157, %158 : vector<8x128xi1>, vector<8x128xf32>
    %160 = arith.truncf %159 : vector<8x128xf32> to vector<8x128xbf16>
    %c0_79 = arith.constant 0 : index
    %c2432 = arith.constant 2432 : index
    %161 = vector.load %arg7[%c0_79, %c2432] : memref<8x6144xbf16, #tpu.memory_space<vmem>>, vector<8x128xbf16>
    tpu.vector_store %arg7[%c0_79, %c2432], %160 {strides = array<i32>} : memref<8x6144xbf16, #tpu.memory_space<vmem>>, vector<8x128xbf16>,
    %c0_80 = arith.constant 0 : index
    %c20 = arith.constant 20 : index
    %162 = vector.load %arg1[%c0_80, %c20] : memref<8x48xi32, #tpu.memory_space<vmem>>, vector<8x1xi32>
    %163 = vector.broadcast %162 : vector<8x1xi32> to vector<8x128xi32>
    %164 = arith.cmpi eq, %163, %145 : vector<8x128xi32>
    %cst_81 = arith.constant 1.000000e+00 : f32
    %cst_82 = arith.constant 0.000000e+00 : f32
    %165 = vector.broadcast %cst_81 : f32 to vector<8x128xf32>
    %166 = vector.broadcast %cst_82 : f32 to vector<8x128xf32>
    %167 = arith.select %164, %165, %166 : vector<8x128xi1>, vector<8x128xf32>
    %168 = arith.truncf %167 : vector<8x128xf32> to vector<8x128xbf16>
    %c0_83 = arith.constant 0 : index
    %c2560 = arith.constant 2560 : index
    %169 = vector.load %arg7[%c0_83, %c2560] : memref<8x6144xbf16, #tpu.memory_space<vmem>>, vector<8x128xbf16>
    tpu.vector_store %arg7[%c0_83, %c2560], %168 {strides = array<i32>} : memref<8x6144xbf16, #tpu.memory_space<vmem>>, vector<8x128xbf16>,
    %c0_84 = arith.constant 0 : index
    %c21 = arith.constant 21 : index
    %170 = vector.load %arg1[%c0_84, %c21] : memref<8x48xi32, #tpu.memory_space<vmem>>, vector<8x1xi32>
    %171 = vector.broadcast %170 : vector<8x1xi32> to vector<8x128xi32>
    %172 = arith.cmpi eq, %171, %145 : vector<8x128xi32>
    %cst_85 = arith.constant 1.000000e+00 : f32
    %cst_86 = arith.constant 0.000000e+00 : f32
    %173 = vector.broadcast %cst_85 : f32 to vector<8x128xf32>
    %174 = vector.broadcast %cst_86 : f32 to vector<8x128xf32>
    %175 = arith.select %172, %173, %174 : vector<8x128xi1>, vector<8x128xf32>
    %176 = arith.truncf %175 : vector<8x128xf32> to vector<8x128xbf16>
    %c0_87 = arith.constant 0 : index
    %c2688 = arith.constant 2688 : index
    %177 = vector.load %arg7[%c0_87, %c2688] : memref<8x6144xbf16, #tpu.memory_space<vmem>>, vector<8x128xbf16>
    tpu.vector_store %arg7[%c0_87, %c2688], %176 {strides = array<i32>} : memref<8x6144xbf16, #tpu.memory_space<vmem>>, vector<8x128xbf16>,
    %c0_88 = arith.constant 0 : index
    %c22 = arith.constant 22 : index
    %178 = vector.load %arg1[%c0_88, %c22] : memref<8x48xi32, #tpu.memory_space<vmem>>, vector<8x1xi32>
    %179 = vector.broadcast %178 : vector<8x1xi32> to vector<8x128xi32>
    %180 = arith.cmpi eq, %179, %145 : vector<8x128xi32>
    %cst_89 = arith.constant 1.000000e+00 : f32
    %cst_90 = arith.constant 0.000000e+00 : f32
    %181 = vector.broadcast %cst_89 : f32 to vector<8x128xf32>
    %182 = vector.broadcast %cst_90 : f32 to vector<8x128xf32>
    %183 = arith.select %180, %181, %182 : vector<8x128xi1>, vector<8x128xf32>
    %184 = arith.truncf %183 : vector<8x128xf32> to vector<8x128xbf16>
    %c0_91 = arith.constant 0 : index
    %c2816 = arith.constant 2816 : index
    %185 = vector.load %arg7[%c0_91, %c2816] : memref<8x6144xbf16, #tpu.memory_space<vmem>>, vector<8x128xbf16>
    tpu.vector_store %arg7[%c0_91, %c2816], %184 {strides = array<i32>} : memref<8x6144xbf16, #tpu.memory_space<vmem>>, vector<8x128xbf16>,
    %c0_92 = arith.constant 0 : index
    %c23 = arith.constant 23 : index
    %186 = vector.load %arg1[%c0_92, %c23] : memref<8x48xi32, #tpu.memory_space<vmem>>, vector<8x1xi32>
    %187 = vector.broadcast %186 : vector<8x1xi32> to vector<8x128xi32>
    %188 = arith.cmpi eq, %187, %145 : vector<8x128xi32>
    %cst_93 = arith.constant 1.000000e+00 : f32
    %cst_94 = arith.constant 0.000000e+00 : f32
    %189 = vector.broadcast %cst_93 : f32 to vector<8x128xf32>
    %190 = vector.broadcast %cst_94 : f32 to vector<8x128xf32>
    %191 = arith.select %188, %189, %190 : vector<8x128xi1>, vector<8x128xf32>
    %192 = arith.truncf %191 : vector<8x128xf32> to vector<8x128xbf16>
    %c0_95 = arith.constant 0 : index
    %c2944 = arith.constant 2944 : index
    %193 = vector.load %arg7[%c0_95, %c2944] : memref<8x6144xbf16, #tpu.memory_space<vmem>>, vector<8x128xbf16>
    tpu.vector_store %arg7[%c0_95, %c2944], %192 {strides = array<i32>} : memref<8x6144xbf16, #tpu.memory_space<vmem>>, vector<8x128xbf16>,
    %c0_96 = arith.constant 0 : index
    %c24 = arith.constant 24 : index
    %194 = vector.load %arg1[%c0_96, %c24] : memref<8x48xi32, #tpu.memory_space<vmem>>, vector<8x1xi32>
    %195 = vector.broadcast %194 : vector<8x1xi32> to vector<8x128xi32>
    %196 = arith.cmpi eq, %195, %145 : vector<8x128xi32>
    %cst_97 = arith.constant 1.000000e+00 : f32
    %cst_98 = arith.constant 0.000000e+00 : f32
    %197 = vector.broadcast %cst_97 : f32 to vector<8x128xf32>
    %198 = vector.broadcast %cst_98 : f32 to vector<8x128xf32>
    %199 = arith.select %196, %197, %198 : vector<8x128xi1>, vector<8x128xf32>
    %200 = arith.truncf %199 : vector<8x128xf32> to vector<8x128xbf16>
    %c0_99 = arith.constant 0 : index
    %c3072 = arith.constant 3072 : index
    %201 = vector.load %arg7[%c0_99, %c3072] : memref<8x6144xbf16, #tpu.memory_space<vmem>>, vector<8x128xbf16>
    tpu.vector_store %arg7[%c0_99, %c3072], %200 {strides = array<i32>} : memref<8x6144xbf16, #tpu.memory_space<vmem>>, vector<8x128xbf16>,
    %c0_100 = arith.constant 0 : index
    %c25 = arith.constant 25 : index
    %202 = vector.load %arg1[%c0_100, %c25] : memref<8x48xi32, #tpu.memory_space<vmem>>, vector<8x1xi32>
    %203 = vector.broadcast %202 : vector<8x1xi32> to vector<8x128xi32>
    %204 = arith.cmpi eq, %203, %145 : vector<8x128xi32>
    %cst_101 = arith.constant 1.000000e+00 : f32
    %cst_102 = arith.constant 0.000000e+00 : f32
    %205 = vector.broadcast %cst_101 : f32 to vector<8x128xf32>
    %206 = vector.broadcast %cst_102 : f32 to vector<8x128xf32>
    %207 = arith.select %204, %205, %206 : vector<8x128xi1>, vector<8x128xf32>
    %208 = arith.truncf %207 : vector<8x128xf32> to vector<8x128xbf16>
    %c0_103 = arith.constant 0 : index
    %c3200 = arith.constant 3200 : index
    %209 = vector.load %arg7[%c0_103, %c3200] : memref<8x6144xbf16, #tpu.memory_space<vmem>>, vector<8x128xbf16>
    tpu.vector_store %arg7[%c0_103, %c3200], %208 {strides = array<i32>} : memref<8x6144xbf16, #tpu.memory_space<vmem>>, vector<8x128xbf16>,
    %c0_104 = arith.constant 0 : index
    %c26 = arith.constant 26 : index
    %210 = vector.load %arg1[%c0_104, %c26] : memref<8x48xi32, #tpu.memory_space<vmem>>, vector<8x1xi32>
    %211 = vector.broadcast %210 : vector<8x1xi32> to vector<8x128xi32>
    %212 = arith.cmpi eq, %211, %145 : vector<8x128xi32>
    %cst_105 = arith.constant 1.000000e+00 : f32
    %cst_106 = arith.constant 0.000000e+00 : f32
    %213 = vector.broadcast %cst_105 : f32 to vector<8x128xf32>
    %214 = vector.broadcast %cst_106 : f32 to vector<8x128xf32>
    %215 = arith.select %212, %213, %214 : vector<8x128xi1>, vector<8x128xf32>
    %216 = arith.truncf %215 : vector<8x128xf32> to vector<8x128xbf16>
    %c0_107 = arith.constant 0 : index
    %c3328 = arith.constant 3328 : index
    %217 = vector.load %arg7[%c0_107, %c3328] : memref<8x6144xbf16, #tpu.memory_space<vmem>>, vector<8x128xbf16>
    tpu.vector_store %arg7[%c0_107, %c3328], %216 {strides = array<i32>} : memref<8x6144xbf16, #tpu.memory_space<vmem>>, vector<8x128xbf16>,
    %c0_108 = arith.constant 0 : index
    %c27 = arith.constant 27 : index
    %218 = vector.load %arg1[%c0_108, %c27] : memref<8x48xi32, #tpu.memory_space<vmem>>, vector<8x1xi32>
    %219 = vector.broadcast %218 : vector<8x1xi32> to vector<8x128xi32>
    %220 = arith.cmpi eq, %219, %145 : vector<8x128xi32>
    %cst_109 = arith.constant 1.000000e+00 : f32
    %cst_110 = arith.constant 0.000000e+00 : f32
    %221 = vector.broadcast %cst_109 : f32 to vector<8x128xf32>
    %222 = vector.broadcast %cst_110 : f32 to vector<8x128xf32>
    %223 = arith.select %220, %221, %222 : vector<8x128xi1>, vector<8x128xf32>
    %224 = arith.truncf %223 : vector<8x128xf32> to vector<8x128xbf16>
    %c0_111 = arith.constant 0 : index
    %c3456 = arith.constant 3456 : index
    %225 = vector.load %arg7[%c0_111, %c3456] : memref<8x6144xbf16, #tpu.memory_space<vmem>>, vector<8x128xbf16>
    tpu.vector_store %arg7[%c0_111, %c3456], %224 {strides = array<i32>} : memref<8x6144xbf16, #tpu.memory_space<vmem>>, vector<8x128xbf16>,
    %c0_112 = arith.constant 0 : index
    %c28 = arith.constant 28 : index
    %226 = vector.load %arg1[%c0_112, %c28] : memref<8x48xi32, #tpu.memory_space<vmem>>, vector<8x1xi32>
    %227 = vector.broadcast %226 : vector<8x1xi32> to vector<8x128xi32>
    %228 = arith.cmpi eq, %227, %145 : vector<8x128xi32>
    %cst_113 = arith.constant 1.000000e+00 : f32
    %cst_114 = arith.constant 0.000000e+00 : f32
    %229 = vector.broadcast %cst_113 : f32 to vector<8x128xf32>
    %230 = vector.broadcast %cst_114 : f32 to vector<8x128xf32>
    %231 = arith.select %228, %229, %230 : vector<8x128xi1>, vector<8x128xf32>
    %232 = arith.truncf %231 : vector<8x128xf32> to vector<8x128xbf16>
    %c0_115 = arith.constant 0 : index
    %c3584 = arith.constant 3584 : index
    %233 = vector.load %arg7[%c0_115, %c3584] : memref<8x6144xbf16, #tpu.memory_space<vmem>>, vector<8x128xbf16>
    tpu.vector_store %arg7[%c0_115, %c3584], %232 {strides = array<i32>} : memref<8x6144xbf16, #tpu.memory_space<vmem>>, vector<8x128xbf16>,
    %c0_116 = arith.constant 0 : index
    %c29 = arith.constant 29 : index
    %234 = vector.load %arg1[%c0_116, %c29] : memref<8x48xi32, #tpu.memory_space<vmem>>, vector<8x1xi32>
    %235 = vector.broadcast %234 : vector<8x1xi32> to vector<8x128xi32>
    %236 = arith.cmpi eq, %235, %145 : vector<8x128xi32>
    %cst_117 = arith.constant 1.000000e+00 : f32
    %cst_118 = arith.constant 0.000000e+00 : f32
    %237 = vector.broadcast %cst_117 : f32 to vector<8x128xf32>
    %238 = vector.broadcast %cst_118 : f32 to vector<8x128xf32>
    %239 = arith.select %236, %237, %238 : vector<8x128xi1>, vector<8x128xf32>
    %240 = arith.truncf %239 : vector<8x128xf32> to vector<8x128xbf16>
    %c0_119 = arith.constant 0 : index
    %c3712 = arith.constant 3712 : index
    %241 = vector.load %arg7[%c0_119, %c3712] : memref<8x6144xbf16, #tpu.memory_space<vmem>>, vector<8x128xbf16>
    tpu.vector_store %arg7[%c0_119, %c3712], %240 {strides = array<i32>} : memref<8x6144xbf16, #tpu.memory_space<vmem>>, vector<8x128xbf16>,
    %c0_120 = arith.constant 0 : index
    %c30 = arith.constant 30 : index
    %242 = vector.load %arg1[%c0_120, %c30] : memref<8x48xi32, #tpu.memory_space<vmem>>, vector<8x1xi32>
    %243 = vector.broadcast %242 : vector<8x1xi32> to vector<8x128xi32>
    %244 = arith.cmpi eq, %243, %145 : vector<8x128xi32>
    %cst_121 = arith.constant 1.000000e+00 : f32
    %cst_122 = arith.constant 0.000000e+00 : f32
    %245 = vector.broadcast %cst_121 : f32 to vector<8x128xf32>
    %246 = vector.broadcast %cst_122 : f32 to vector<8x128xf32>
    %247 = arith.select %244, %245, %246 : vector<8x128xi1>, vector<8x128xf32>
    %248 = arith.truncf %247 : vector<8x128xf32> to vector<8x128xbf16>
    %c0_123 = arith.constant 0 : index
    %c3840 = arith.constant 3840 : index
    %249 = vector.load %arg7[%c0_123, %c3840] : memref<8x6144xbf16, #tpu.memory_space<vmem>>, vector<8x128xbf16>
    tpu.vector_store %arg7[%c0_123, %c3840], %248 {strides = array<i32>} : memref<8x6144xbf16, #tpu.memory_space<vmem>>, vector<8x128xbf16>,
    %c0_124 = arith.constant 0 : index
    %c31 = arith.constant 31 : index
    %250 = vector.load %arg1[%c0_124, %c31] : memref<8x48xi32, #tpu.memory_space<vmem>>, vector<8x1xi32>
    %251 = vector.broadcast %250 : vector<8x1xi32> to vector<8x128xi32>
    %252 = arith.cmpi eq, %251, %145 : vector<8x128xi32>
    %cst_125 = arith.constant 1.000000e+00 : f32
    %cst_126 = arith.constant 0.000000e+00 : f32
    %253 = vector.broadcast %cst_125 : f32 to vector<8x128xf32>
    %254 = vector.broadcast %cst_126 : f32 to vector<8x128xf32>
    %255 = arith.select %252, %253, %254 : vector<8x128xi1>, vector<8x128xf32>
    %256 = arith.truncf %255 : vector<8x128xf32> to vector<8x128xbf16>
    %c0_127 = arith.constant 0 : index
    %c3968 = arith.constant 3968 : index
    %257 = vector.load %arg7[%c0_127, %c3968] : memref<8x6144xbf16, #tpu.memory_space<vmem>>, vector<8x128xbf16>
    tpu.vector_store %arg7[%c0_127, %c3968], %256 {strides = array<i32>} : memref<8x6144xbf16, #tpu.memory_space<vmem>>, vector<8x128xbf16>,
    %c0_128 = arith.constant 0 : index
    %c32 = arith.constant 32 : index
    %258 = vector.load %arg1[%c0_128, %c32] : memref<8x48xi32, #tpu.memory_space<vmem>>, vector<8x1xi32>
    %259 = vector.broadcast %258 : vector<8x1xi32> to vector<8x128xi32>
    %260 = arith.cmpi eq, %259, %145 : vector<8x128xi32>
    %cst_129 = arith.constant 1.000000e+00 : f32
    %cst_130 = arith.constant 0.000000e+00 : f32
    %261 = vector.broadcast %cst_129 : f32 to vector<8x128xf32>
    %262 = vector.broadcast %cst_130 : f32 to vector<8x128xf32>
    %263 = arith.select %260, %261, %262 : vector<8x128xi1>, vector<8x128xf32>
    %264 = arith.truncf %263 : vector<8x128xf32> to vector<8x128xbf16>
    %c0_131 = arith.constant 0 : index
    %c4096 = arith.constant 4096 : index
    %265 = vector.load %arg7[%c0_131, %c4096] : memref<8x6144xbf16, #tpu.memory_space<vmem>>, vector<8x128xbf16>
    tpu.vector_store %arg7[%c0_131, %c4096], %264 {strides = array<i32>} : memref<8x6144xbf16, #tpu.memory_space<vmem>>, vector<8x128xbf16>,
    %c0_132 = arith.constant 0 : index
    %c33 = arith.constant 33 : index
    %266 = vector.load %arg1[%c0_132, %c33] : memref<8x48xi32, #tpu.memory_space<vmem>>, vector<8x1xi32>
    %267 = vector.broadcast %266 : vector<8x1xi32> to vector<8x128xi32>
    %268 = arith.cmpi eq, %267, %145 : vector<8x128xi32>
    %cst_133 = arith.constant 1.000000e+00 : f32
    %cst_134 = arith.constant 0.000000e+00 : f32
    %269 = vector.broadcast %cst_133 : f32 to vector<8x128xf32>
    %270 = vector.broadcast %cst_134 : f32 to vector<8x128xf32>
    %271 = arith.select %268, %269, %270 : vector<8x128xi1>, vector<8x128xf32>
    %272 = arith.truncf %271 : vector<8x128xf32> to vector<8x128xbf16>
    %c0_135 = arith.constant 0 : index
    %c4224 = arith.constant 4224 : index
    %273 = vector.load %arg7[%c0_135, %c4224] : memref<8x6144xbf16, #tpu.memory_space<vmem>>, vector<8x128xbf16>
    tpu.vector_store %arg7[%c0_135, %c4224], %272 {strides = array<i32>} : memref<8x6144xbf16, #tpu.memory_space<vmem>>, vector<8x128xbf16>,
    %c0_136 = arith.constant 0 : index
    %c34 = arith.constant 34 : index
    %274 = vector.load %arg1[%c0_136, %c34] : memref<8x48xi32, #tpu.memory_space<vmem>>, vector<8x1xi32>
    %275 = vector.broadcast %274 : vector<8x1xi32> to vector<8x128xi32>
    %276 = arith.cmpi eq, %275, %145 : vector<8x128xi32>
    %cst_137 = arith.constant 1.000000e+00 : f32
    %cst_138 = arith.constant 0.000000e+00 : f32
    %277 = vector.broadcast %cst_137 : f32 to vector<8x128xf32>
    %278 = vector.broadcast %cst_138 : f32 to vector<8x128xf32>
    %279 = arith.select %276, %277, %278 : vector<8x128xi1>, vector<8x128xf32>
    %280 = arith.truncf %279 : vector<8x128xf32> to vector<8x128xbf16>
    %c0_139 = arith.constant 0 : index
    %c4352 = arith.constant 4352 : index
    %281 = vector.load %arg7[%c0_139, %c4352] : memref<8x6144xbf16, #tpu.memory_space<vmem>>, vector<8x128xbf16>
    tpu.vector_store %arg7[%c0_139, %c4352], %280 {strides = array<i32>} : memref<8x6144xbf16, #tpu.memory_space<vmem>>, vector<8x128xbf16>,
    %c0_140 = arith.constant 0 : index
    %c35 = arith.constant 35 : index
    %282 = vector.load %arg1[%c0_140, %c35] : memref<8x48xi32, #tpu.memory_space<vmem>>, vector<8x1xi32>
    %283 = vector.broadcast %282 : vector<8x1xi32> to vector<8x128xi32>
    %284 = arith.cmpi eq, %283, %145 : vector<8x128xi32>
    %cst_141 = arith.constant 1.000000e+00 : f32
    %cst_142 = arith.constant 0.000000e+00 : f32
    %285 = vector.broadcast %cst_141 : f32 to vector<8x128xf32>
    %286 = vector.broadcast %cst_142 : f32 to vector<8x128xf32>
    %287 = arith.select %284, %285, %286 : vector<8x128xi1>, vector<8x128xf32>
    %288 = arith.truncf %287 : vector<8x128xf32> to vector<8x128xbf16>
    %c0_143 = arith.constant 0 : index
    %c4480 = arith.constant 4480 : index
    %289 = vector.load %arg7[%c0_143, %c4480] : memref<8x6144xbf16, #tpu.memory_space<vmem>>, vector<8x128xbf16>
    tpu.vector_store %arg7[%c0_143, %c4480], %288 {strides = array<i32>} : memref<8x6144xbf16, #tpu.memory_space<vmem>>, vector<8x128xbf16>,
    %290 = tpu.iota {dimensions = array<i32: 1>} : vector<8x128xi32>
    %c0_144 = arith.constant 0 : index
    %c36 = arith.constant 36 : index
    %291 = vector.load %arg1[%c0_144, %c36] : memref<8x48xi32, #tpu.memory_space<vmem>>, vector<8x1xi32>
    %292 = vector.broadcast %291 : vector<8x1xi32> to vector<8x128xi32>
    %293 = arith.cmpi eq, %292, %290 : vector<8x128xi32>
    %cst_145 = arith.constant 1.000000e+00 : f32
    %cst_146 = arith.constant 0.000000e+00 : f32
    %294 = vector.broadcast %cst_145 : f32 to vector<8x128xf32>
    %295 = vector.broadcast %cst_146 : f32 to vector<8x128xf32>
    %296 = arith.select %293, %294, %295 : vector<8x128xi1>, vector<8x128xf32>
    %297 = arith.truncf %296 : vector<8x128xf32> to vector<8x128xbf16>
    %c0_147 = arith.constant 0 : index
    %c4608 = arith.constant 4608 : index
    %298 = vector.load %arg7[%c0_147, %c4608] : memref<8x6144xbf16, #tpu.memory_space<vmem>>, vector<8x128xbf16>
    tpu.vector_store %arg7[%c0_147, %c4608], %297 {strides = array<i32>} : memref<8x6144xbf16, #tpu.memory_space<vmem>>, vector<8x128xbf16>,
    %c0_148 = arith.constant 0 : index
    %c37 = arith.constant 37 : index
    %299 = vector.load %arg1[%c0_148, %c37] : memref<8x48xi32, #tpu.memory_space<vmem>>, vector<8x1xi32>
    %300 = vector.broadcast %299 : vector<8x1xi32> to vector<8x128xi32>
    %301 = arith.cmpi eq, %300, %290 : vector<8x128xi32>
    %cst_149 = arith.constant 1.000000e+00 : f32
    %cst_150 = arith.constant 0.000000e+00 : f32
    %302 = vector.broadcast %cst_149 : f32 to vector<8x128xf32>
    %303 = vector.broadcast %cst_150 : f32 to vector<8x128xf32>
    %304 = arith.select %301, %302, %303 : vector<8x128xi1>, vector<8x128xf32>
    %305 = arith.truncf %304 : vector<8x128xf32> to vector<8x128xbf16>
    %c0_151 = arith.constant 0 : index
    %c4736 = arith.constant 4736 : index
    %306 = vector.load %arg7[%c0_151, %c4736] : memref<8x6144xbf16, #tpu.memory_space<vmem>>, vector<8x128xbf16>
    tpu.vector_store %arg7[%c0_151, %c4736], %305 {strides = array<i32>} : memref<8x6144xbf16, #tpu.memory_space<vmem>>, vector<8x128xbf16>,
    %c0_152 = arith.constant 0 : index
    %c38 = arith.constant 38 : index
    %307 = vector.load %arg1[%c0_152, %c38] : memref<8x48xi32, #tpu.memory_space<vmem>>, vector<8x1xi32>
    %308 = vector.broadcast %307 : vector<8x1xi32> to vector<8x128xi32>
    %309 = arith.cmpi eq, %308, %290 : vector<8x128xi32>
    %cst_153 = arith.constant 1.000000e+00 : f32
    %cst_154 = arith.constant 0.000000e+00 : f32
    %310 = vector.broadcast %cst_153 : f32 to vector<8x128xf32>
    %311 = vector.broadcast %cst_154 : f32 to vector<8x128xf32>
    %312 = arith.select %309, %310, %311 : vector<8x128xi1>, vector<8x128xf32>
    %313 = arith.truncf %312 : vector<8x128xf32> to vector<8x128xbf16>
    %c0_155 = arith.constant 0 : index
    %c4864 = arith.constant 4864 : index
    %314 = vector.load %arg7[%c0_155, %c4864] : memref<8x6144xbf16, #tpu.memory_space<vmem>>, vector<8x128xbf16>
    tpu.vector_store %arg7[%c0_155, %c4864], %313 {strides = array<i32>} : memref<8x6144xbf16, #tpu.memory_space<vmem>>, vector<8x128xbf16>,
    %c0_156 = arith.constant 0 : index
    %c39 = arith.constant 39 : index
    %315 = vector.load %arg1[%c0_156, %c39] : memref<8x48xi32, #tpu.memory_space<vmem>>, vector<8x1xi32>
    %316 = vector.broadcast %315 : vector<8x1xi32> to vector<8x128xi32>
    %317 = arith.cmpi eq, %316, %290 : vector<8x128xi32>
    %cst_157 = arith.constant 1.000000e+00 : f32
    %cst_158 = arith.constant 0.000000e+00 : f32
    %318 = vector.broadcast %cst_157 : f32 to vector<8x128xf32>
    %319 = vector.broadcast %cst_158 : f32 to vector<8x128xf32>
    %320 = arith.select %317, %318, %319 : vector<8x128xi1>, vector<8x128xf32>
    %321 = arith.truncf %320 : vector<8x128xf32> to vector<8x128xbf16>
    %c0_159 = arith.constant 0 : index
    %c4992 = arith.constant 4992 : index
    %322 = vector.load %arg7[%c0_159, %c4992] : memref<8x6144xbf16, #tpu.memory_space<vmem>>, vector<8x128xbf16>
    tpu.vector_store %arg7[%c0_159, %c4992], %321 {strides = array<i32>} : memref<8x6144xbf16, #tpu.memory_space<vmem>>, vector<8x128xbf16>,
    %c0_160 = arith.constant 0 : index
    %c40 = arith.constant 40 : index
    %323 = vector.load %arg1[%c0_160, %c40] : memref<8x48xi32, #tpu.memory_space<vmem>>, vector<8x1xi32>
    %324 = vector.broadcast %323 : vector<8x1xi32> to vector<8x128xi32>
    %325 = arith.cmpi eq, %324, %290 : vector<8x128xi32>
    %cst_161 = arith.constant 1.000000e+00 : f32
    %cst_162 = arith.constant 0.000000e+00 : f32
    %326 = vector.broadcast %cst_161 : f32 to vector<8x128xf32>
    %327 = vector.broadcast %cst_162 : f32 to vector<8x128xf32>
    %328 = arith.select %325, %326, %327 : vector<8x128xi1>, vector<8x128xf32>
    %329 = arith.truncf %328 : vector<8x128xf32> to vector<8x128xbf16>
    %c0_163 = arith.constant 0 : index
    %c5120 = arith.constant 5120 : index
    %330 = vector.load %arg7[%c0_163, %c5120] : memref<8x6144xbf16, #tpu.memory_space<vmem>>, vector<8x128xbf16>
    tpu.vector_store %arg7[%c0_163, %c5120], %329 {strides = array<i32>} : memref<8x6144xbf16, #tpu.memory_space<vmem>>, vector<8x128xbf16>,
    %c0_164 = arith.constant 0 : index
    %c41 = arith.constant 41 : index
    %331 = vector.load %arg1[%c0_164, %c41] : memref<8x48xi32, #tpu.memory_space<vmem>>, vector<8x1xi32>
    %332 = vector.broadcast %331 : vector<8x1xi32> to vector<8x128xi32>
    %333 = arith.cmpi eq, %332, %290 : vector<8x128xi32>
    %cst_165 = arith.constant 1.000000e+00 : f32
    %cst_166 = arith.constant 0.000000e+00 : f32
    %334 = vector.broadcast %cst_165 : f32 to vector<8x128xf32>
    %335 = vector.broadcast %cst_166 : f32 to vector<8x128xf32>
    %336 = arith.select %333, %334, %335 : vector<8x128xi1>, vector<8x128xf32>
    %337 = arith.truncf %336 : vector<8x128xf32> to vector<8x128xbf16>
    %c0_167 = arith.constant 0 : index
    %c5248 = arith.constant 5248 : index
    %338 = vector.load %arg7[%c0_167, %c5248] : memref<8x6144xbf16, #tpu.memory_space<vmem>>, vector<8x128xbf16>
    tpu.vector_store %arg7[%c0_167, %c5248], %337 {strides = array<i32>} : memref<8x6144xbf16, #tpu.memory_space<vmem>>, vector<8x128xbf16>,
    %c0_168 = arith.constant 0 : index
    %c42 = arith.constant 42 : index
    %339 = vector.load %arg1[%c0_168, %c42] : memref<8x48xi32, #tpu.memory_space<vmem>>, vector<8x1xi32>
    %340 = vector.broadcast %339 : vector<8x1xi32> to vector<8x128xi32>
    %341 = arith.cmpi eq, %340, %290 : vector<8x128xi32>
    %cst_169 = arith.constant 1.000000e+00 : f32
    %cst_170 = arith.constant 0.000000e+00 : f32
    %342 = vector.broadcast %cst_169 : f32 to vector<8x128xf32>
    %343 = vector.broadcast %cst_170 : f32 to vector<8x128xf32>
    %344 = arith.select %341, %342, %343 : vector<8x128xi1>, vector<8x128xf32>
    %345 = arith.truncf %344 : vector<8x128xf32> to vector<8x128xbf16>
    %c0_171 = arith.constant 0 : index
    %c5376 = arith.constant 5376 : index
    %346 = vector.load %arg7[%c0_171, %c5376] : memref<8x6144xbf16, #tpu.memory_space<vmem>>, vector<8x128xbf16>
    tpu.vector_store %arg7[%c0_171, %c5376], %345 {strides = array<i32>} : memref<8x6144xbf16, #tpu.memory_space<vmem>>, vector<8x128xbf16>,
    %c0_172 = arith.constant 0 : index
    %c43 = arith.constant 43 : index
    %347 = vector.load %arg1[%c0_172, %c43] : memref<8x48xi32, #tpu.memory_space<vmem>>, vector<8x1xi32>
    %348 = vector.broadcast %347 : vector<8x1xi32> to vector<8x128xi32>
    %349 = arith.cmpi eq, %348, %290 : vector<8x128xi32>
    %cst_173 = arith.constant 1.000000e+00 : f32
    %cst_174 = arith.constant 0.000000e+00 : f32
    %350 = vector.broadcast %cst_173 : f32 to vector<8x128xf32>
    %351 = vector.broadcast %cst_174 : f32 to vector<8x128xf32>
    %352 = arith.select %349, %350, %351 : vector<8x128xi1>, vector<8x128xf32>
    %353 = arith.truncf %352 : vector<8x128xf32> to vector<8x128xbf16>
    %c0_175 = arith.constant 0 : index
    %c5504 = arith.constant 5504 : index
    %354 = vector.load %arg7[%c0_175, %c5504] : memref<8x6144xbf16, #tpu.memory_space<vmem>>, vector<8x128xbf16>
    tpu.vector_store %arg7[%c0_175, %c5504], %353 {strides = array<i32>} : memref<8x6144xbf16, #tpu.memory_space<vmem>>, vector<8x128xbf16>,
    %c0_176 = arith.constant 0 : index
    %c44 = arith.constant 44 : index
    %355 = vector.load %arg1[%c0_176, %c44] : memref<8x48xi32, #tpu.memory_space<vmem>>, vector<8x1xi32>
    %356 = vector.broadcast %355 : vector<8x1xi32> to vector<8x128xi32>
    %357 = arith.cmpi eq, %356, %290 : vector<8x128xi32>
    %cst_177 = arith.constant 1.000000e+00 : f32
    %cst_178 = arith.constant 0.000000e+00 : f32
    %358 = vector.broadcast %cst_177 : f32 to vector<8x128xf32>
    %359 = vector.broadcast %cst_178 : f32 to vector<8x128xf32>
    %360 = arith.select %357, %358, %359 : vector<8x128xi1>, vector<8x128xf32>
    %361 = arith.truncf %360 : vector<8x128xf32> to vector<8x128xbf16>
    %c0_179 = arith.constant 0 : index
    %c5632 = arith.constant 5632 : index
    %362 = vector.load %arg7[%c0_179, %c5632] : memref<8x6144xbf16, #tpu.memory_space<vmem>>, vector<8x128xbf16>
    tpu.vector_store %arg7[%c0_179, %c5632], %361 {strides = array<i32>} : memref<8x6144xbf16, #tpu.memory_space<vmem>>, vector<8x128xbf16>,
    %c0_180 = arith.constant 0 : index
    %c45 = arith.constant 45 : index
    %363 = vector.load %arg1[%c0_180, %c45] : memref<8x48xi32, #tpu.memory_space<vmem>>, vector<8x1xi32>
    %364 = vector.broadcast %363 : vector<8x1xi32> to vector<8x128xi32>
    %365 = arith.cmpi eq, %364, %290 : vector<8x128xi32>
    %cst_181 = arith.constant 1.000000e+00 : f32
    %cst_182 = arith.constant 0.000000e+00 : f32
    %366 = vector.broadcast %cst_181 : f32 to vector<8x128xf32>
    %367 = vector.broadcast %cst_182 : f32 to vector<8x128xf32>
    %368 = arith.select %365, %366, %367 : vector<8x128xi1>, vector<8x128xf32>
    %369 = arith.truncf %368 : vector<8x128xf32> to vector<8x128xbf16>
    %c0_183 = arith.constant 0 : index
    %c5760 = arith.constant 5760 : index
    %370 = vector.load %arg7[%c0_183, %c5760] : memref<8x6144xbf16, #tpu.memory_space<vmem>>, vector<8x128xbf16>
    tpu.vector_store %arg7[%c0_183, %c5760], %369 {strides = array<i32>} : memref<8x6144xbf16, #tpu.memory_space<vmem>>, vector<8x128xbf16>,
    %c0_184 = arith.constant 0 : index
    %c46 = arith.constant 46 : index
    %371 = vector.load %arg1[%c0_184, %c46] : memref<8x48xi32, #tpu.memory_space<vmem>>, vector<8x1xi32>
    %372 = vector.broadcast %371 : vector<8x1xi32> to vector<8x128xi32>
    %373 = arith.cmpi eq, %372, %290 : vector<8x128xi32>
    %cst_185 = arith.constant 1.000000e+00 : f32
    %cst_186 = arith.constant 0.000000e+00 : f32
    %374 = vector.broadcast %cst_185 : f32 to vector<8x128xf32>
    %375 = vector.broadcast %cst_186 : f32 to vector<8x128xf32>
    %376 = arith.select %373, %374, %375 : vector<8x128xi1>, vector<8x128xf32>
    %377 = arith.truncf %376 : vector<8x128xf32> to vector<8x128xbf16>
    %c0_187 = arith.constant 0 : index
    %c5888 = arith.constant 5888 : index
    %378 = vector.load %arg7[%c0_187, %c5888] : memref<8x6144xbf16, #tpu.memory_space<vmem>>, vector<8x128xbf16>
    tpu.vector_store %arg7[%c0_187, %c5888], %377 {strides = array<i32>} : memref<8x6144xbf16, #tpu.memory_space<vmem>>, vector<8x128xbf16>,
    %c0_188 = arith.constant 0 : index
    %c47 = arith.constant 47 : index
    %379 = vector.load %arg1[%c0_188, %c47] : memref<8x48xi32, #tpu.memory_space<vmem>>, vector<8x1xi32>
    %380 = vector.broadcast %379 : vector<8x1xi32> to vector<8x128xi32>
    %381 = arith.cmpi eq, %380, %290 : vector<8x128xi32>
    %cst_189 = arith.constant 1.000000e+00 : f32
    %cst_190 = arith.constant 0.000000e+00 : f32
    %382 = vector.broadcast %cst_189 : f32 to vector<8x128xf32>
    %383 = vector.broadcast %cst_190 : f32 to vector<8x128xf32>
    %384 = arith.select %381, %382, %383 : vector<8x128xi1>, vector<8x128xf32>
    %385 = arith.truncf %384 : vector<8x128xf32> to vector<8x128xbf16>
    %c0_191 = arith.constant 0 : index
    %c6016 = arith.constant 6016 : index
    %386 = vector.load %arg7[%c0_191, %c6016] : memref<8x6144xbf16, #tpu.memory_space<vmem>>, vector<8x128xbf16>
    tpu.vector_store %arg7[%c0_191, %c6016], %385 {strides = array<i32>} : memref<8x6144xbf16, #tpu.memory_space<vmem>>, vector<8x128xbf16>,
    %c0_192 = arith.constant 0 : index
    %c0_193 = arith.constant 0 : index
    %387 = vector.load %arg7[%c0_192, %c0_193] : memref<8x6144xbf16, #tpu.memory_space<vmem>>, vector<8x6144xbf16>
    %c0_194 = arith.constant 0 : index
    %c0_195 = arith.constant 0 : index
    %388 = vector.load %arg2[%c0_194, %c0_195] : memref<6144x128xbf16, #tpu.memory_space<vmem>>, vector<6144x128xbf16>
    %cst_196 = arith.constant dense<0.000000e+00> : vector<8x128xf32>
    %389 = tpu.matmul %387, %388, %cst_196 {dimension_numbers = #tpu.dot_dimension_numbers<[1], [0], [0], [1], [0, 0, 1, 1], [], []>} : vector<8x6144xbf16>, vector<6144x128xbf16>, vector<8x128xf32> -> vector<8x128xf32>
    %c0_197 = arith.constant 0 : index
    %c0_198 = arith.constant 0 : index
    %390 = vector.load %arg3[%c0_197, %c0_198] : memref<1x128xf32, #tpu.memory_space<vmem>>, vector<1x128xf32>
    %391 = vector.broadcast %390 : vector<1x128xf32> to vector<8x128xf32>
    %392 = arith.addf %389, %391 : vector<8x128xf32>
    %393 = math.tanh %392 : vector<8x128xf32>
    %394 = arith.truncf %393 : vector<8x128xf32> to vector<8x128xbf16>
    %c0_199 = arith.constant 0 : index
    %c0_200 = arith.constant 0 : index
    %395 = vector.load %arg4[%c0_199, %c0_200] : memref<128x128xbf16, #tpu.memory_space<vmem>>, vector<128x128xbf16>
    %cst_201 = arith.constant dense<0.000000e+00> : vector<8x128xf32>
    %396 = tpu.matmul %394, %395, %cst_201 {dimension_numbers = #tpu.dot_dimension_numbers<[1], [0], [0], [1], [0, 0, 1, 1], [], []>} : vector<8x128xbf16>, vector<128x128xbf16>, vector<8x128xf32> -> vector<8x128xf32>
    %c0_202 = arith.constant 0 : index
    %c0_203 = arith.constant 0 : index
    %397 = vector.load %arg5[%c0_202, %c0_203] : memref<1x128xf32, #tpu.memory_space<vmem>>, vector<1x128xf32>
    %398 = vector.broadcast %397 : vector<1x128xf32> to vector<8x128xf32>
    %399 = arith.addf %396, %398 : vector<8x128xf32>
    %c0_204 = arith.constant 0 : index
    %c0_205 = arith.constant 0 : index
    %400 = vector.load %arg6[%c0_204, %c0_205] : memref<8x128xf32, #tpu.memory_space<vmem>>, vector<8x128xf32>
    tpu.vector_store %arg6[%c0_204, %c0_205], %399 {strides = array<i32>} : memref<8x128xf32, #tpu.memory_space<vmem>>, vector<8x128xf32>,
    return
  }
  func.func @transform_0(%arg0: i32) -> (i32, i32) {
    %c0_i32 = arith.constant 0 : i32
    %c0_i32_0 = arith.constant 0 : i32
    return %arg0, %c0_i32 : i32, i32
  }
  func.func @transform_1(%arg0: i32) -> (i32, i32) {
    %c0_i32 = arith.constant 0 : i32
    %c0_i32_0 = arith.constant 0 : i32
    %c0_i32_1 = arith.constant 0 : i32
    return %c0_i32, %c0_i32_0 : i32, i32
  }
  func.func @transform_2(%arg0: i32) -> (i32, i32) {
    %c0_i32 = arith.constant 0 : i32
    %c0_i32_0 = arith.constant 0 : i32
    %c0_i32_1 = arith.constant 0 : i32
    return %c0_i32, %c0_i32_0 : i32, i32
  }
  func.func @transform_3(%arg0: i32) -> (i32, i32) {
    %c0_i32 = arith.constant 0 : i32
    %c0_i32_0 = arith.constant 0 : i32
    %c0_i32_1 = arith.constant 0 : i32
    return %c0_i32, %c0_i32_0 : i32, i32
  }
  func.func @transform_4(%arg0: i32) -> (i32, i32) {
    %c0_i32 = arith.constant 0 : i32
    %c0_i32_0 = arith.constant 0 : i32
    %c0_i32_1 = arith.constant 0 : i32
    return %c0_i32, %c0_i32_0 : i32, i32
  }
  func.func @transform_5(%arg0: i32) -> (i32, i32) {
    %c0_i32 = arith.constant 0 : i32
    %c0_i32_0 = arith.constant 0 : i32
    return %arg0, %c0_i32 : i32, i32
  }
}

</mosaic_0001>

<llo_original>
// kernel: tpu_custom_call.1
$region0: #{tpu_custom_call.1}
  #allocation0 [shape = 'u32[]', space=smem, size = 0x4, offset = 0x4, fixed_abs, tag = 'smem constant byte address 0x4 - core index']
  #allocation1 [shape = 'u32[72,128]{1,0:T(1,128)}', space=vmem, size = 0x9000, scoped, tag = 'internal scratch']
  #allocation2 [shape = 'bf16[8,6144]{1,0:T(8,128)(2,1)}', space=vmem, size = 0x18000, scoped, tag = 'scratch operand']
  %s0 = inlined_call_operand.hbm [shape: s32[8,48], index: 0, kind: input, shape index: {}]
  %s1 = inlined_call_operand.hbm [shape: bf16[6144,128], index: 1, kind: input, shape index: {}]
  %s2 = inlined_call_operand.hbm [shape: f32[1,128], index: 2, kind: input, shape index: {}]
  %s3 = inlined_call_operand.hbm [shape: bf16[128,128], index: 3, kind: input, shape index: {}]
  %s4 = inlined_call_operand.hbm [shape: f32[1,128], index: 4, kind: input, shape index: {}]
  %s5 = inlined_call_operand.hbm [shape: f32[8,128], index: 5, kind: output, shape index: {}]
  %s6 = sld [smem:[#allocation0]]
  $region50: #{tpu_custom_call.1} parent=0
    _
  %s8 = ssub.s32 1, %s6
  %s9 = scalar_select 0, %s8, %s6
  $region1: #{tpu_custom_call.1} parent=0
    #allocation3 [shape = 'u8[4096]{0}', space=vmem, size = 0x1000, scoped, tag = 'input window, operand 0, single buffered']
    #allocation4 [shape = 's32[1]{0}', space=sflag, size = 0x4, scoped, tag = 'scoped memory for tpu_custom_call.1']
    #allocation5 [shape = 's32[1]{0}', space=sflag, size = 0x4, scoped, tag = 'scoped memory for tpu_custom_call.1']
    #allocation6 [shape = 'u8[1572864]{0}', space=vmem, size = 0x180000, scoped, tag = 'input window, operand 1, single buffered']
    #allocation7 [shape = 's32[1]{0}', space=sflag, size = 0x4, scoped, tag = 'scoped memory for tpu_custom_call.1']
    #allocation8 [shape = 'u8[512]{0}', space=vmem, size = 0x400, scoped, tag = 'input window, operand 2, single buffered']
    #allocation9 [shape = 'u8[32768]{0}', space=vmem, size = 0x8000, scoped, tag = 'input window, operand 3, single buffered']
    #allocation10 [shape = 's32[1]{0}', space=sflag, size = 0x4, scoped, tag = 'scoped memory for tpu_custom_call.1']
    #allocation11 [shape = 'u8[512]{0}', space=vmem, size = 0x400, scoped, tag = 'input window, operand 4, single buffered']
    #allocation12 [shape = 'u8[4096]{0}', space=vmem, size = 0x1000, scoped, tag = 'output window, operand 0, single buffered']
    %10 = vsyncpa [#allocation4], 0
    %11 = vsyncpa [#allocation7], 0
    %12 = vsyncpa [#allocation10], 0
    %13 = vsyncpa [#allocation5], 0
    // Predicated region
    $region2: #{tpu_custom_call.1} parent=1 // pred_check
      _
    $region3: #{tpu_custom_call.1} parent=1 // pred_check_branch
      %15 = sbr.rel (0) target = $region5
    $region4: #{tpu_custom_call.1} parent=1 // pred_region
      %17 = vsyncadd [#allocation4], 0
      %s19 = sshll.u32 %s0, 4
      %s20 = int_to_ptr.hbm [resolvable:$true] %s19
      %s21 = sshll.u32 [#allocation3], 4
      %s22 = int_to_ptr.vmem [resolvable:$true] %s21
      %24 = dma.hbm_to_vmem [thread:$0]  %s20, 128, %s22, [#allocation4]
    $region5: #{tpu_custom_call.1} parent=1 // pred_fallthru
      _
    // Predicated region
    $region6: #{tpu_custom_call.1} parent=1 // pred_check
      _
    $region7: #{tpu_custom_call.1} parent=1 // pred_check_branch
      %26 = sbr.rel (0) target = $region9
    $region8: #{tpu_custom_call.1} parent=1 // pred_region
      %28 = vsyncadd [#allocation7], 0
      %s29 = sshll.u32 %s1, 4
      %s30 = int_to_ptr.hbm [resolvable:$true] %s29
      %s31 = sshll.u32 [#allocation6], 4
      %s32 = int_to_ptr.vmem [resolvable:$true] %s31
      %37 = dma.hbm_to_vmem [thread:$0]  %s30, 49152, %s32, [#allocation7], 64, 64, 4
    $region9: #{tpu_custom_call.1} parent=1 // pred_fallthru
      _
    // Predicated region
    $region10: #{tpu_custom_call.1} parent=1 // pred_check
      _
    $region11: #{tpu_custom_call.1} parent=1 // pred_check_branch
      %39 = sbr.rel (0) target = $region13
    $region12: #{tpu_custom_call.1} parent=1 // pred_region
      %41 = vsyncadd [#allocation7], 0
      %s43 = sshll.u32 %s2, 4
      %s44 = int_to_ptr.hbm [resolvable:$true] %s43
      %s45 = sshll.u32 [#allocation8], 4
      %s46 = int_to_ptr.vmem [resolvable:$true] %s45
      %48 = dma.hbm_to_vmem [thread:$0]  %s44, 16, %s46, [#allocation7]
    $region13: #{tpu_custom_call.1} parent=1 // pred_fallthru
      _
    // Predicated region
    $region14: #{tpu_custom_call.1} parent=1 // pred_check
      _
    $region15: #{tpu_custom_call.1} parent=1 // pred_check_branch
      %50 = sbr.rel (0) target = $region17
    $region16: #{tpu_custom_call.1} parent=1 // pred_region
      %52 = vsyncadd [#allocation10], 0
      %s53 = sshll.u32 %s3, 4
      %s54 = int_to_ptr.hbm [resolvable:$true] %s53
      %s55 = sshll.u32 [#allocation9], 4
      %s56 = int_to_ptr.vmem [resolvable:$true] %s55
      %61 = dma.hbm_to_vmem [thread:$0]  %s54, 1024, %s56, [#allocation10], 64, 64, 4
    $region17: #{tpu_custom_call.1} parent=1 // pred_fallthru
      _
    // Predicated region
    $region18: #{tpu_custom_call.1} parent=1 // pred_check
      _
    $region19: #{tpu_custom_call.1} parent=1 // pred_check_branch
      %63 = sbr.rel (0) target = $region21
    $region20: #{tpu_custom_call.1} parent=1 // pred_region
      %65 = vsyncadd [#allocation10], 0
      %s67 = sshll.u32 %s4, 4
      %s68 = int_to_ptr.hbm [resolvable:$true] %s67
      %s69 = sshll.u32 [#allocation11], 4
      %s70 = int_to_ptr.vmem [resolvable:$true] %s69
      %72 = dma.hbm_to_vmem [thread:$0]  %s68, 16, %s70, [#allocation10]
    $region21: #{tpu_custom_call.1} parent=1 // pred_fallthru
      _
    // Predicated region
    $region22: #{tpu_custom_call.1} parent=1 // pred_check
      _
    $region23: #{tpu_custom_call.1} parent=1 // pred_check_branch
      %74 = sbr.rel (0) target = $region25
    $region24: #{tpu_custom_call.1} parent=1 // pred_region
      %76 = dma.done [#allocation4], 128
    $region25: #{tpu_custom_call.1} parent=1 // pred_fallthru
      _
    // Predicated region
    $region26: #{tpu_custom_call.1} parent=1 // pred_check
      _
    $region27: #{tpu_custom_call.1} parent=1 // pred_check_branch
      %78 = sbr.rel (0) target = $region29
    $region28: #{tpu_custom_call.1} parent=1 // pred_region
      %80 = dma.done [#allocation7], 49152
    $region29: #{tpu_custom_call.1} parent=1 // pred_fallthru
      _
    // Predicated region
    $region30: #{tpu_custom_call.1} parent=1 // pred_check
      _
    $region31: #{tpu_custom_call.1} parent=1 // pred_check_branch
      %82 = sbr.rel (0) target = $region33
    $region32: #{tpu_custom_call.1} parent=1 // pred_region
      %84 = dma.done [#allocation7], 16
    $region33: #{tpu_custom_call.1} parent=1 // pred_fallthru
      _
    // Predicated region
    $region34: #{tpu_custom_call.1} parent=1 // pred_check
      _
    $region35: #{tpu_custom_call.1} parent=1 // pred_check_branch
      %86 = sbr.rel (0) target = $region37
    $region36: #{tpu_custom_call.1} parent=1 // pred_region
      %88 = dma.done [#allocation10], 1024
    $region37: #{tpu_custom_call.1} parent=1 // pred_fallthru
      _
    // Predicated region
    $region38: #{tpu_custom_call.1} parent=1 // pred_check
      _
    $region39: #{tpu_custom_call.1} parent=1 // pred_check_branch
      %90 = sbr.rel (0) target = $region41
    $region40: #{tpu_custom_call.1} parent=1 // pred_region
      %92 = dma.done [#allocation10], 16
    $region41: #{tpu_custom_call.1} parent=1 // pred_fallthru
      _
    %v93 = vlaneseq
    %v94 = vand.u32 %v93, 127
    %v95 = vld [vmem:[#allocation3] sm:$0xff]
    %96 = vset.pattern.permute.xlu0 0
    %97 = vperm.xlu0 %96, %v95
    %v98 = vpop.permute.xlu0 %97
    %vm99 = vcmp.eq.s32.totalorder %v98, %v94
    %v100 = vsel %vm99, 1.0, 0.0
    %v101 = vpack.c.bf16 %v100, %v100
    %102 = vst [vmem:[#allocation2] sm:$0xf] %v101
    %v103 = vld [vmem:[#allocation3] sm:$0xff]
    %104 = vset.pattern.permute.xlu0 1
    %105 = vperm.xlu0 %104, %v103
    %v106 = vpop.permute.xlu0 %105
    %vm107 = vcmp.eq.s32.totalorder %v106, %v94
    %v108 = vsel %vm107, 1.0, 0.0
    %v109 = vpack.c.bf16 %v108, %v108
    %110 = vst [vmem:[#allocation2 + $0x4] sm:$0xf] %v109
    %v111 = vld [vmem:[#allocation3] sm:$0xff]
    %112 = vset.pattern.permute.xlu0 2
    %113 = vperm.xlu0 %112, %v111
    %v114 = vpop.permute.xlu0 %113
    %vm115 = vcmp.eq.s32.totalorder %v114, %v94
    %v116 = vsel %vm115, 1.0, 0.0
    %v117 = vpack.c.bf16 %v116, %v116
    %118 = vst [vmem:[#allocation2 + $0x8] sm:$0xf] %v117
    %v119 = vld [vmem:[#allocation3] sm:$0xff]
    %120 = vset.pattern.permute.xlu0 3
    %121 = vperm.xlu0 %120, %v119
    %v122 = vpop.permute.xlu0 %121
    %vm123 = vcmp.eq.s32.totalorder %v122, %v94
    %v124 = vsel %vm123, 1.0, 0.0
    %v125 = vpack.c.bf16 %v124, %v124
    %126 = vst [vmem:[#allocation2 + $0xc] sm:$0xf] %v125
    %v127 = vld [vmem:[#allocation3] sm:$0xff]
    %128 = vset.pattern.permute.xlu0 4
    %129 = vperm.xlu0 %128, %v127
    %v130 = vpop.permute.xlu0 %129
    %vm131 = vcmp.eq.s32.totalorder %v130, %v94
    %v132 = vsel %vm131, 1.0, 0.0
    %v133 = vpack.c.bf16 %v132, %v132
    %134 = vst [vmem:[#allocation2 + $0x10] sm:$0xf] %v133
    %v135 = vld [vmem:[#allocation3] sm:$0xff]
    %136 = vset.pattern.permute.xlu0 5
    %137 = vperm.xlu0 %136, %v135
    %v138 = vpop.permute.xlu0 %137
    %vm139 = vcmp.eq.s32.totalorder %v138, %v94
    %v140 = vsel %vm139, 1.0, 0.0
    %v141 = vpack.c.bf16 %v140, %v140
    %142 = vst [vmem:[#allocation2 + $0x14] sm:$0xf] %v141
    %v143 = vld [vmem:[#allocation3] sm:$0xff]
    %144 = vset.pattern.permute.xlu0 6
    %145 = vperm.xlu0 %144, %v143
    %v146 = vpop.permute.xlu0 %145
    %vm147 = vcmp.eq.s32.totalorder %v146, %v94
    %v148 = vsel %vm147, 1.0, 0.0
    %v149 = vpack.c.bf16 %v148, %v148
    %150 = vst [vmem:[#allocation2 + $0x18] sm:$0xf] %v149
    %v151 = vld [vmem:[#allocation3] sm:$0xff]
    %152 = vset.pattern.permute.xlu0 7
    %153 = vperm.xlu0 %152, %v151
    %v154 = vpop.permute.xlu0 %153
    %vm155 = vcmp.eq.s32.totalorder %v154, %v94
    %v156 = vsel %vm155, 1.0, 0.0
    %v157 = vpack.c.bf16 %v156, %v156
    %158 = vst [vmem:[#allocation2 + $0x1c] sm:$0xf] %v157
    %v159 = vld [vmem:[#allocation3] sm:$0xff]
    %160 = vset.pattern.permute.xlu0 8
    %161 = vperm.xlu0 %160, %v159
    %v162 = vpop.permute.xlu0 %161
    %vm163 = vcmp.eq.s32.totalorder %v162, %v94
    %v164 = vsel %vm163, 1.0, 0.0
    %v165 = vpack.c.bf16 %v164, %v164
    %166 = vst [vmem:[#allocation2 + $0x20] sm:$0xf] %v165
    %v167 = vld [vmem:[#allocation3] sm:$0xff]
    %168 = vset.pattern.permute.xlu0 9
    %169 = vperm.xlu0 %168, %v167
    %v170 = vpop.permute.xlu0 %169
    %vm171 = vcmp.eq.s32.totalorder %v170, %v94
    %v172 = vsel %vm171, 1.0, 0.0
    %v173 = vpack.c.bf16 %v172, %v172
    %174 = vst [vmem:[#allocation2 + $0x24] sm:$0xf] %v173
    %v175 = vld [vmem:[#allocation3] sm:$0xff]
    %176 = vset.pattern.permute.xlu0 10
    %177 = vperm.xlu0 %176, %v175
    %v178 = vpop.permute.xlu0 %177
    %vm179 = vcmp.eq.s32.totalorder %v178, %v94
    %v180 = vsel %vm179, 1.0, 0.0
    %v181 = vpack.c.bf16 %v180, %v180
    %182 = vst [vmem:[#allocation2 + $0x28] sm:$0xf] %v181
    %v183 = vld [vmem:[#allocation3] sm:$0xff]
    %184 = vset.pattern.permute.xlu0 11
    %185 = vperm.xlu0 %184, %v183
    %v186 = vpop.permute.xlu0 %185
    %vm187 = vcmp.eq.s32.totalorder %v186, %v94
    %v188 = vsel %vm187, 1.0, 0.0
    %v189 = vpack.c.bf16 %v188, %v188
    %190 = vst [vmem:[#allocation2 + $0x2c] sm:$0xf] %v189
    %v191 = vld [vmem:[#allocation3] sm:$0xff]
    %192 = vset.pattern.permute.xlu0 12
    %193 = vperm.xlu0 %192, %v191
    %v194 = vpop.permute.xlu0 %193
    %vm195 = vcmp.eq.s32.totalorder %v194, %v94
    %v196 = vsel %vm195, 1.0, 0.0
    %v197 = vpack.c.bf16 %v196, %v196
    %198 = vst [vmem:[#allocation2 + $0x30] sm:$0xf] %v197
    %v199 = vld [vmem:[#allocation3] sm:$0xff]
    %200 = vset.pattern.permute.xlu0 13
    %201 = vperm.xlu0 %200, %v199
    %v202 = vpop.permute.xlu0 %201
    %vm203 = vcmp.eq.s32.totalorder %v202, %v94
    %v204 = vsel %vm203, 1.0, 0.0
    %v205 = vpack.c.bf16 %v204, %v204
    %206 = vst [vmem:[#allocation2 + $0x34] sm:$0xf] %v205
    %v207 = vld [vmem:[#allocation3] sm:$0xff]
    %208 = vset.pattern.permute.xlu0 14
    %209 = vperm.xlu0 %208, %v207
    %v210 = vpop.permute.xlu0 %209
    %vm211 = vcmp.eq.s32.totalorder %v210, %v94
    %v212 = vsel %vm211, 1.0, 0.0
    %v213 = vpack.c.bf16 %v212, %v212
    %214 = vst [vmem:[#allocation2 + $0x38] sm:$0xf] %v213
    %v215 = vld [vmem:[#allocation3] sm:$0xff]
    %216 = vset.pattern.permute.xlu0 15
    %217 = vperm.xlu0 %216, %v215
    %v218 = vpop.permute.xlu0 %217
    %vm219 = vcmp.eq.s32.totalorder %v218, %v94
    %v220 = vsel %vm219, 1.0, 0.0
    %v221 = vpack.c.bf16 %v220, %v220
    %222 = vst [vmem:[#allocation2 + $0x3c] sm:$0xf] %v221
    %v223 = vld [vmem:[#allocation3] sm:$0xff]
    %224 = vset.pattern.permute.xlu0 16
    %225 = vperm.xlu0 %224, %v223
    %v226 = vpop.permute.xlu0 %225
    %vm227 = vcmp.eq.s32.totalorder %v226, %v94
    %v228 = vsel %vm227, 1.0, 0.0
    %v229 = vpack.c.bf16 %v228, %v228
    %230 = vst [vmem:[#allocation2 + $0x40] sm:$0xf] %v229
    %v231 = vld [vmem:[#allocation3] sm:$0xff]
    %232 = vset.pattern.permute.xlu0 17
    %233 = vperm.xlu0 %232, %v231
    %v234 = vpop.permute.xlu0 %233
    %vm235 = vcmp.eq.s32.totalorder %v234, %v94
    %v236 = vsel %vm235, 1.0, 0.0
    %v237 = vpack.c.bf16 %v236, %v236
    %238 = vst [vmem:[#allocation2 + $0x44] sm:$0xf] %v237
    %v239 = vld [vmem:[#allocation3] sm:$0xff]
    %240 = vset.pattern.permute.xlu0 18
    %241 = vperm.xlu0 %240, %v239
    %v242 = vpop.permute.xlu0 %241
    %vm243 = vcmp.eq.s32.totalorder %v242, %v94
    %v244 = vsel %vm243, 1.0, 0.0
    %v245 = vpack.c.bf16 %v244, %v244
    %246 = vst [vmem:[#allocation2 + $0x48] sm:$0xf] %v245
    %v247 = vld [vmem:[#allocation3] sm:$0xff]
    %248 = vset.pattern.permute.xlu0 19
    %249 = vperm.xlu0 %248, %v247
    %v250 = vpop.permute.xlu0 %249
    %vm251 = vcmp.eq.s32.totalorder %v250, %v94
    %v252 = vsel %vm251, 1.0, 0.0
    %v253 = vpack.c.bf16 %v252, %v252
    %254 = vst [vmem:[#allocation2 + $0x4c] sm:$0xf] %v253
    %v255 = vld [vmem:[#allocation3] sm:$0xff]
    %256 = vset.pattern.permute.xlu0 20
    %257 = vperm.xlu0 %256, %v255
    %v258 = vpop.permute.xlu0 %257
    %vm259 = vcmp.eq.s32.totalorder %v258, %v94
    %v260 = vsel %vm259, 1.0, 0.0
    %v261 = vpack.c.bf16 %v260, %v260
    %262 = vst [vmem:[#allocation2 + $0x50] sm:$0xf] %v261
    %v263 = vld [vmem:[#allocation3] sm:$0xff]
    %264 = vset.pattern.permute.xlu0 21
    %265 = vperm.xlu0 %264, %v263
    %v266 = vpop.permute.xlu0 %265
    %vm267 = vcmp.eq.s32.totalorder %v266, %v94
    %v268 = vsel %vm267, 1.0, 0.0
    %v269 = vpack.c.bf16 %v268, %v268
    %270 = vst [vmem:[#allocation2 + $0x54] sm:$0xf] %v269
    %v271 = vld [vmem:[#allocation3] sm:$0xff]
    %272 = vset.pattern.permute.xlu0 22
    %273 = vperm.xlu0 %272, %v271
    %v274 = vpop.permute.xlu0 %273
    %vm275 = vcmp.eq.s32.totalorder %v274, %v94
    %v276 = vsel %vm275, 1.0, 0.0
    %v277 = vpack.c.bf16 %v276, %v276
    %278 = vst [vmem:[#allocation2 + $0x58] sm:$0xf] %v277
    %v279 = vld [vmem:[#allocation3] sm:$0xff]
    %280 = vset.pattern.permute.xlu0 23
    %281 = vperm.xlu0 %280, %v279
    %v282 = vpop.permute.xlu0 %281
    %vm283 = vcmp.eq.s32.totalorder %v282, %v94
    %v284 = vsel %vm283, 1.0, 0.0
    %v285 = vpack.c.bf16 %v284, %v284
    %286 = vst [vmem:[#allocation2 + $0x5c] sm:$0xf] %v285
    %v287 = vld [vmem:[#allocation3] sm:$0xff]
    %288 = vset.pattern.permute.xlu0 24
    %289 = vperm.xlu0 %288, %v287
    %v290 = vpop.permute.xlu0 %289
    %vm291 = vcmp.eq.s32.totalorder %v290, %v94
    %v292 = vsel %vm291, 1.0, 0.0
    %v293 = vpack.c.bf16 %v292, %v292
    %294 = vst [vmem:[#allocation2 + $0x60] sm:$0xf] %v293
    %v295 = vld [vmem:[#allocation3] sm:$0xff]
    %296 = vset.pattern.permute.xlu0 25
    %297 = vperm.xlu0 %296, %v295
    %v298 = vpop.permute.xlu0 %297
    %vm299 = vcmp.eq.s32.totalorder %v298, %v94
    %v300 = vsel %vm299, 1.0, 0.0
    %v301 = vpack.c.bf16 %v300, %v300
    %302 = vst [vmem:[#allocation2 + $0x64] sm:$0xf] %v301
    %v303 = vld [vmem:[#allocation3] sm:$0xff]
    %304 = vset.pattern.permute.xlu0 26
    %305 = vperm.xlu0 %304, %v303
    %v306 = vpop.permute.xlu0 %305
    %vm307 = vcmp.eq.s32.totalorder %v306, %v94
    %v308 = vsel %vm307, 1.0, 0.0
    %v309 = vpack.c.bf16 %v308, %v308
    %310 = vst [vmem:[#allocation2 + $0x68] sm:$0xf] %v309
    %v311 = vld [vmem:[#allocation3] sm:$0xff]
    %312 = vset.pattern.permute.xlu0 27
    %313 = vperm.xlu0 %312, %v311
    %v314 = vpop.permute.xlu0 %313
    %vm315 = vcmp.eq.s32.totalorder %v314, %v94
    %v316 = vsel %vm315, 1.0, 0.0
    %v317 = vpack.c.bf16 %v316, %v316
    %318 = vst [vmem:[#allocation2 + $0x6c] sm:$0xf] %v317
    %v319 = vld [vmem:[#allocation3] sm:$0xff]
    %320 = vset.pattern.permute.xlu0 28
    %321 = vperm.xlu0 %320, %v319
    %v322 = vpop.permute.xlu0 %321
    %vm323 = vcmp.eq.s32.totalorder %v322, %v94
    %v324 = vsel %vm323, 1.0, 0.0
    %v325 = vpack.c.bf16 %v324, %v324
    %326 = vst [vmem:[#allocation2 + $0x70] sm:$0xf] %v325
    %v327 = vld [vmem:[#allocation3] sm:$0xff]
    %328 = vset.pattern.permute.xlu0 29
    %329 = vperm.xlu0 %328, %v327
    %v330 = vpop.permute.xlu0 %329
    %vm331 = vcmp.eq.s32.totalorder %v330, %v94
    %v332 = vsel %vm331, 1.0, 0.0
    %v333 = vpack.c.bf16 %v332, %v332
    %334 = vst [vmem:[#allocation2 + $0x74] sm:$0xf] %v333
    %v335 = vld [vmem:[#allocation3] sm:$0xff]
    %336 = vset.pattern.permute.xlu0 30
    %337 = vperm.xlu0 %336, %v335
    %v338 = vpop.permute.xlu0 %337
    %vm339 = vcmp.eq.s32.totalorder %v338, %v94
    %v340 = vsel %vm339, 1.0, 0.0
    %v341 = vpack.c.bf16 %v340, %v340
    %342 = vst [vmem:[#allocation2 + $0x78] sm:$0xf] %v341
    %v343 = vld [vmem:[#allocation3] sm:$0xff]
    %344 = vset.pattern.permute.xlu0 31
    %345 = vperm.xlu0 %344, %v343
    %v346 = vpop.permute.xlu0 %345
    %vm347 = vcmp.eq.s32.totalorder %v346, %v94
    %v348 = vsel %vm347, 1.0, 0.0
    %v349 = vpack.c.bf16 %v348, %v348
    %350 = vst [vmem:[#allocation2 + $0x7c] sm:$0xf] %v349
    %v351 = vld [vmem:[#allocation3] sm:$0xff]
    %352 = vset.pattern.permute.xlu0 32
    %353 = vperm.xlu0 %352, %v351
    %v354 = vpop.permute.xlu0 %353
    %vm355 = vcmp.eq.s32.totalorder %v354, %v94
    %v356 = vsel %vm355, 1.0, 0.0
    %v357 = vpack.c.bf16 %v356, %v356
    %358 = vst [vmem:[#allocation2 + $0x80] sm:$0xf] %v357
    %v359 = vld [vmem:[#allocation3] sm:$0xff]
    %360 = vset.pattern.permute.xlu0 33
    %361 = vperm.xlu0 %360, %v359
    %v362 = vpop.permute.xlu0 %361
    %vm363 = vcmp.eq.s32.totalorder %v362, %v94
    %v364 = vsel %vm363, 1.0, 0.0
    %v365 = vpack.c.bf16 %v364, %v364
    %366 = vst [vmem:[#allocation2 + $0x84] sm:$0xf] %v365
    %v367 = vld [vmem:[#allocation3] sm:$0xff]
    %368 = vset.pattern.permute.xlu0 34
    %369 = vperm.xlu0 %368, %v367
    %v370 = vpop.permute.xlu0 %369
    %vm371 = vcmp.eq.s32.totalorder %v370, %v94
    %v372 = vsel %vm371, 1.0, 0.0
    %v373 = vpack.c.bf16 %v372, %v372
    %374 = vst [vmem:[#allocation2 + $0x88] sm:$0xf] %v373
    %v375 = vld [vmem:[#allocation3] sm:$0xff]
    %376 = vset.pattern.permute.xlu0 35
    %377 = vperm.xlu0 %376, %v375
    %v378 = vpop.permute.xlu0 %377
    %vm379 = vcmp.eq.s32.totalorder %v378, %v94
    %v380 = vsel %vm379, 1.0, 0.0
    %v381 = vpack.c.bf16 %v380, %v380
    %382 = vst [vmem:[#allocation2 + $0x8c] sm:$0xf] %v381
    %v383 = vld [vmem:[#allocation3] sm:$0xff]
    %384 = vset.pattern.permute.xlu0 36
    %385 = vperm.xlu0 %384, %v383
    %v386 = vpop.permute.xlu0 %385
    %vm387 = vcmp.eq.s32.totalorder %v386, %v94
    %v388 = vsel %vm387, 1.0, 0.0
    %v389 = vpack.c.bf16 %v388, %v388
    %390 = vst [vmem:[#allocation2 + $0x90] sm:$0xf] %v389
    %v391 = vld [vmem:[#allocation3] sm:$0xff]
    %392 = vset.pattern.permute.xlu0 37
    %393 = vperm.xlu0 %392, %v391
    %v394 = vpop.permute.xlu0 %393
    %vm395 = vcmp.eq.s32.totalorder %v394, %v94
    %v396 = vsel %vm395, 1.0, 0.0
    %v397 = vpack.c.bf16 %v396, %v396
    %398 = vst [vmem:[#allocation2 + $0x94] sm:$0xf] %v397
    %v399 = vld [vmem:[#allocation3] sm:$0xff]
    %400 = vset.pattern.permute.xlu0 38
    %401 = vperm.xlu0 %400, %v399
    %v402 = vpop.permute.xlu0 %401
    %vm403 = vcmp.eq.s32.totalorder %v402, %v94
    %v404 = vsel %vm403, 1.0, 0.0
    %v405 = vpack.c.bf16 %v404, %v404
    %406 = vst [vmem:[#allocation2 + $0x98] sm:$0xf] %v405
    %v407 = vld [vmem:[#allocation3] sm:$0xff]
    %408 = vset.pattern.permute.xlu0 39
    %409 = vperm.xlu0 %408, %v407
    %v410 = vpop.permute.xlu0 %409
    %vm411 = vcmp.eq.s32.totalorder %v410, %v94
    %v412 = vsel %vm411, 1.0, 0.0
    %v413 = vpack.c.bf16 %v412, %v412
    %414 = vst [vmem:[#allocation2 + $0x9c] sm:$0xf] %v413
    %v415 = vld [vmem:[#allocation3] sm:$0xff]
    %416 = vset.pattern.permute.xlu0 40
    %417 = vperm.xlu0 %416, %v415
    %v418 = vpop.permute.xlu0 %417
    %vm419 = vcmp.eq.s32.totalorder %v418, %v94
    %v420 = vsel %vm419, 1.0, 0.0
    %v421 = vpack.c.bf16 %v420, %v420
    %422 = vst [vmem:[#allocation2 + $0xa0] sm:$0xf] %v421
    %v423 = vld [vmem:[#allocation3] sm:$0xff]
    %424 = vset.pattern.permute.xlu0 41
    %425 = vperm.xlu0 %424, %v423
    %v426 = vpop.permute.xlu0 %425
    %vm427 = vcmp.eq.s32.totalorder %v426, %v94
    %v428 = vsel %vm427, 1.0, 0.0
    %v429 = vpack.c.bf16 %v428, %v428
    %430 = vst [vmem:[#allocation2 + $0xa4] sm:$0xf] %v429
    %v431 = vld [vmem:[#allocation3] sm:$0xff]
    %432 = vset.pattern.permute.xlu0 42
    %433 = vperm.xlu0 %432, %v431
    %v434 = vpop.permute.xlu0 %433
    %vm435 = vcmp.eq.s32.totalorder %v434, %v94
    %v436 = vsel %vm435, 1.0, 0.0
    %v437 = vpack.c.bf16 %v436, %v436
    %438 = vst [vmem:[#allocation2 + $0xa8] sm:$0xf] %v437
    %v439 = vld [vmem:[#allocation3] sm:$0xff]
    %440 = vset.pattern.permute.xlu0 43
    %441 = vperm.xlu0 %440, %v439
    %v442 = vpop.permute.xlu0 %441
    %vm443 = vcmp.eq.s32.totalorder %v442, %v94
    %v444 = vsel %vm443, 1.0, 0.0
    %v445 = vpack.c.bf16 %v444, %v444
    %446 = vst [vmem:[#allocation2 + $0xac] sm:$0xf] %v445
    %v447 = vld [vmem:[#allocation3] sm:$0xff]
    %448 = vset.pattern.permute.xlu0 44
    %449 = vperm.xlu0 %448, %v447
    %v450 = vpop.permute.xlu0 %449
    %vm451 = vcmp.eq.s32.totalorder %v450, %v94
    %v452 = vsel %vm451, 1.0, 0.0
    %v453 = vpack.c.bf16 %v452, %v452
    %454 = vst [vmem:[#allocation2 + $0xb0] sm:$0xf] %v453
    %v455 = vld [vmem:[#allocation3] sm:$0xff]
    %456 = vset.pattern.permute.xlu0 45
    %457 = vperm.xlu0 %456, %v455
    %v458 = vpop.permute.xlu0 %457
    %vm459 = vcmp.eq.s32.totalorder %v458, %v94
    %v460 = vsel %vm459, 1.0, 0.0
    %v461 = vpack.c.bf16 %v460, %v460
    %462 = vst [vmem:[#allocation2 + $0xb4] sm:$0xf] %v461
    %v463 = vld [vmem:[#allocation3] sm:$0xff]
    %464 = vset.pattern.permute.xlu0 46
    %465 = vperm.xlu0 %464, %v463
    %v466 = vpop.permute.xlu0 %465
    %vm467 = vcmp.eq.s32.totalorder %v466, %v94
    %v468 = vsel %vm467, 1.0, 0.0
    %v469 = vpack.c.bf16 %v468, %v468
    %470 = vst [vmem:[#allocation2 + $0xb8] sm:$0xf] %v469
    %v471 = vld [vmem:[#allocation3] sm:$0xff]
    %472 = vset.pattern.permute.xlu0 47
    %473 = vperm.xlu0 %472, %v471
    %v474 = vpop.permute.xlu0 %473
    %vm475 = vcmp.eq.s32.totalorder %v474, %v94
    %v476 = vsel %vm475, 1.0, 0.0
    %v477 = vpack.c.bf16 %v476, %v476
    %478 = vst [vmem:[#allocation2 + $0xbc] sm:$0xf] %v477
    %v479 = vld [vmem:[#allocation2] sm:$0xff]
    %v480 = vld [vmem:[#allocation2 + $0x8] sm:$0xff]
    %v481 = vld [vmem:[#allocation2 + $0x10] sm:$0xff]
    %v482 = vld [vmem:[#allocation2 + $0x18] sm:$0xff]
    %v483 = vld [vmem:[#allocation2 + $0x20] sm:$0xff]
    %v484 = vld [vmem:[#allocation2 + $0x28] sm:$0xff]
    %v485 = vld [vmem:[#allocation2 + $0x30] sm:$0xff]
    %v486 = vld [vmem:[#allocation2 + $0x38] sm:$0xff]
    %v487 = vld [vmem:[#allocation2 + $0x40] sm:$0xff]
    %v488 = vld [vmem:[#allocation2 + $0x48] sm:$0xff]
    %v489 = vld [vmem:[#allocation2 + $0x50] sm:$0xff]
    %v490 = vld [vmem:[#allocation2 + $0x58] sm:$0xff]
    %v491 = vld [vmem:[#allocation2 + $0x60] sm:$0xff]
    %v492 = vld [vmem:[#allocation2 + $0x68] sm:$0xff]
    %v493 = vld [vmem:[#allocation2 + $0x70] sm:$0xff]
    %v494 = vld [vmem:[#allocation2 + $0x78] sm:$0xff]
    %v495 = vld [vmem:[#allocation2 + $0x80] sm:$0xff]
    %v496 = vld [vmem:[#allocation2 + $0x88] sm:$0xff]
    %v497 = vld [vmem:[#allocation2 + $0x90] sm:$0xff]
    %v498 = vld [vmem:[#allocation2 + $0x98] sm:$0xff]
    %v499 = vld [vmem:[#allocation2 + $0xa0] sm:$0xff]
    %v500 = vld [vmem:[#allocation2 + $0xa8] sm:$0xff]
    %v501 = vld [vmem:[#allocation2 + $0xb0] sm:$0xff]
    %v502 = vld [vmem:[#allocation2 + $0xb8] sm:$0xff]
    %v503 = vld [vmem:[#allocation6] sm:$0xf]
    %v504 = vld [vmem:[#allocation6 + $0x4] sm:$0xf]
    %v505 = vld [vmem:[#allocation6 + $0x8] sm:$0xf]
    %v506 = vld [vmem:[#allocation6 + $0xc] sm:$0xf]
    %v507 = vld [vmem:[#allocation6 + $0x10] sm:$0xf]
    %v508 = vld [vmem:[#allocation6 + $0x14] sm:$0xf]
    %v509 = vld [vmem:[#allocation6 + $0x18] sm:$0xf]
    %v510 = vld [vmem:[#allocation6 + $0x1c] sm:$0xf]
    %v511 = vld [vmem:[#allocation6 + $0x20] sm:$0xf]
    %v512 = vld [vmem:[#allocation6 + $0x24] sm:$0xf]
    %v513 = vld [vmem:[#allocation6 + $0x28] sm:$0xf]
    %v514 = vld [vmem:[#allocation6 + $0x2c] sm:$0xf]
    %v515 = vld [vmem:[#allocation6 + $0x30] sm:$0xf]
    %v516 = vld [vmem:[#allocation6 + $0x34] sm:$0xf]
    %v517 = vld [vmem:[#allocation6 + $0x38] sm:$0xf]
    %v518 = vld [vmem:[#allocation6 + $0x3c] sm:$0xf]
    %v519 = vld [vmem:[#allocation6 + $0x40] sm:$0xf]
    %v520 = vld [vmem:[#allocation6 + $0x44] sm:$0xf]
    %v521 = vld [vmem:[#allocation6 + $0x48] sm:$0xf]
    %v522 = vld [vmem:[#allocation6 + $0x4c] sm:$0xf]
    %v523 = vld [vmem:[#allocation6 + $0x50] sm:$0xf]
    %v524 = vld [vmem:[#allocation6 + $0x54] sm:$0xf]
    %v525 = vld [vmem:[#allocation6 + $0x58] sm:$0xf]
    %v526 = vld [vmem:[#allocation6 + $0x5c] sm:$0xf]
    %v527 = vld [vmem:[#allocation6 + $0x60] sm:$0xf]
    %v528 = vld [vmem:[#allocation6 + $0x64] sm:$0xf]
    %v529 = vld [vmem:[#allocation6 + $0x68] sm:$0xf]
    %v530 = vld [vmem:[#allocation6 + $0x6c] sm:$0xf]
    %v531 = vld [vmem:[#allocation6 + $0x70] sm:$0xf]
    %v532 = vld [vmem:[#allocation6 + $0x74] sm:$0xf]
    %v533 = vld [vmem:[#allocation6 + $0x78] sm:$0xf]
    %v534 = vld [vmem:[#allocation6 + $0x7c] sm:$0xf]
    %v535 = vld [vmem:[#allocation6 + $0x80] sm:$0xf]
    %v536 = vld [vmem:[#allocation6 + $0x84] sm:$0xf]
    %v537 = vld [vmem:[#allocation6 + $0x88] sm:$0xf]
    %v538 = vld [vmem:[#allocation6 + $0x8c] sm:$0xf]
    %v539 = vld [vmem:[#allocation6 + $0x90] sm:$0xf]
    %v540 = vld [vmem:[#allocation6 + $0x94] sm:$0xf]
    %v541 = vld [vmem:[#allocation6 + $0x98] sm:$0xf]
    %v542 = vld [vmem:[#allocation6 + $0x9c] sm:$0xf]
    %v543 = vld [vmem:[#allocation6 + $0xa0] sm:$0xf]
    %v544 = vld [vmem:[#allocation6 + $0xa4] sm:$0xf]
    %v545 = vld [vmem:[#allocation6 + $0xa8] sm:$0xf]
    %v546 = vld [vmem:[#allocation6 + $0xac] sm:$0xf]
    %v547 = vld [vmem:[#allocation6 + $0xb0] sm:$0xf]
    %v548 = vld [vmem:[#allocation6 + $0xb4] sm:$0xf]
    %v549 = vld [vmem:[#allocation6 + $0xb8] sm:$0xf]
    %v550 = vld [vmem:[#allocation6 + $0xbc] sm:$0xf]
    %v551 = vld [vmem:[#allocation6 + $0xc0] sm:$0xf]
    %v552 = vld [vmem:[#allocation6 + $0xc4] sm:$0xf]
    %v553 = vld [vmem:[#allocation6 + $0xc8] sm:$0xf]
    %v554 = vld [vmem:[#allocation6 + $0xcc] sm:$0xf]
    %v555 = vld [vmem:[#allocation6 + $0xd0] sm:$0xf]
    %v556 = vld [vmem:[#allocation6 + $0xd4] sm:$0xf]
    %v557 = vld [vmem:[#allocation6 + $0xd8] sm:$0xf]
    %v558 = vld [vmem:[#allocation6 + $0xdc] sm:$0xf]
    %v559 = vld [vmem:[#allocation6 + $0xe0] sm:$0xf]
    %v560 = vld [vmem:[#allocation6 + $0xe4] sm:$0xf]
    %v561 = vld [vmem:[#allocation6 + $0xe8] sm:$0xf]
    %v562 = vld [vmem:[#allocation6 + $0xec] sm:$0xf]
    %v563 = vld [vmem:[#allocation6 + $0xf0] sm:$0xf]
    %v564 = vld [vmem:[#allocation6 + $0xf4] sm:$0xf]
    %v565 = vld [vmem:[#allocation6 + $0xf8] sm:$0xf]
    %v566 = vld [vmem:[#allocation6 + $0xfc] sm:$0xf]
    %v567 = vld [vmem:[#allocation6 + $0x100] sm:$0xf]
    %v568 = vld [vmem:[#allocation6 + $0x104] sm:$0xf]
    %v569 = vld [vmem:[#allocation6 + $0x108] sm:$0xf]
    %v570 = vld [vmem:[#allocation6 + $0x10c] sm:$0xf]
    %v571 = vld [vmem:[#allocation6 + $0x110] sm:$0xf]
    %v572 = vld [vmem:[#allocation6 + $0x114] sm:$0xf]
    %v573 = vld [vmem:[#allocation6 + $0x118] sm:$0xf]
    %v574 = vld [vmem:[#allocation6 + $0x11c] sm:$0xf]
    %v575 = vld [vmem:[#allocation6 + $0x120] sm:$0xf]
    %v576 = vld [vmem:[#allocation6 + $0x124] sm:$0xf]
    %v577 = vld [vmem:[#allocation6 + $0x128] sm:$0xf]
    %v578 = vld [vmem:[#allocation6 + $0x12c] sm:$0xf]
    %v579 = vld [vmem:[#allocation6 + $0x130] sm:$0xf]
    %v580 = vld [vmem:[#allocation6 + $0x134] sm:$0xf]
    %v581 = vld [vmem:[#allocation6 + $0x138] sm:$0xf]
    %v582 = vld [vmem:[#allocation6 + $0x13c] sm:$0xf]
    %v583 = vld [vmem:[#allocation6 + $0x140] sm:$0xf]
    %v584 = vld [vmem:[#allocation6 + $0x144] sm:$0xf]
    %v585 = vld [vmem:[#allocation6 + $0x148] sm:$0xf]
    %v586 = vld [vmem:[#allocation6 + $0x14c] sm:$0xf]
    %v587 = vld [vmem:[#allocation6 + $0x150] sm:$0xf]
    %v588 = vld [vmem:[#allocation6 + $0x154] sm:$0xf]
    %v589 = vld [vmem:[#allocation6 + $0x158] sm:$0xf]
    %v590 = vld [vmem:[#allocation6 + $0x15c] sm:$0xf]
    %v591 = vld [vmem:[#allocation6 + $0x160] sm:$0xf]
    %v592 = vld [vmem:[#allocation6 + $0x164] sm:$0xf]
    %v593 = vld [vmem:[#allocation6 + $0x168] sm:$0xf]
    %v594 = vld [vmem:[#allocation6 + $0x16c] sm:$0xf]
    %v595 = vld [vmem:[#allocation6 + $0x170] sm:$0xf]
    %v596 = vld [vmem:[#allocation6 + $0x174] sm:$0xf]
    %v597 = vld [vmem:[#allocation6 + $0x178] sm:$0xf]
    %v598 = vld [vmem:[#allocation6 + $0x17c] sm:$0xf]
    %v599 = vld [vmem:[#allocation6 + $0x180] sm:$0xf]
    %v600 = vld [vmem:[#allocation6 + $0x184] sm:$0xf]
    %v601 = vld [vmem:[#allocation6 + $0x188] sm:$0xf]
    %v602 = vld [vmem:[#allocation6 + $0x18c] sm:$0xf]
    %v603 = vld [vmem:[#allocation6 + $0x190] sm:$0xf]
    %v604 = vld [vmem:[#allocation6 + $0x194] sm:$0xf]
    %v605 = vld [vmem:[#allocation6 + $0x198] sm:$0xf]
    %v606 = vld [vmem:[#allocation6 + $0x19c] sm:$0xf]
    %v607 = vld [vmem:[#allocation6 + $0x1a0] sm:$0xf]
    %v608 = vld [vmem:[#allocation6 + $0x1a4] sm:$0xf]
    %v609 = vld [vmem:[#allocation6 + $0x1a8] sm:$0xf]
    %v610 = vld [vmem:[#allocation6 + $0x1ac] sm:$0xf]
    %v611 = vld [vmem:[#allocation6 + $0x1b0] sm:$0xf]
    %v612 = vld [vmem:[#allocation6 + $0x1b4] sm:$0xf]
    %v613 = vld [vmem:[#allocation6 + $0x1b8] sm:$0xf]
    %v614 = vld [vmem:[#allocation6 + $0x1bc] sm:$0xf]
    %v615 = vld [vmem:[#allocation6 + $0x1c0] sm:$0xf]
    %v616 = vld [vmem:[#allocation6 + $0x1c4] sm:$0xf]
    %v617 = vld [vmem:[#allocation6 + $0x1c8] sm:$0xf]
    %v618 = vld [vmem:[#allocation6 + $0x1cc] sm:$0xf]
    %v619 = vld [vmem:[#allocation6 + $0x1d0] sm:$0xf]
    %v620 = vld [vmem:[#allocation6 + $0x1d4] sm:$0xf]
    %v621 = vld [vmem:[#allocation6 + $0x1d8] sm:$0xf]
    %v622 = vld [vmem:[#allocation6 + $0x1dc] sm:$0xf]
    %v623 = vld [vmem:[#allocation6 + $0x1e0] sm:$0xf]
    %v624 = vld [vmem:[#allocation6 + $0x1e4] sm:$0xf]
    %v625 = vld [vmem:[#allocation6 + $0x1e8] sm:$0xf]
    %v626 = vld [vmem:[#allocation6 + $0x1ec] sm:$0xf]
    %v627 = vld [vmem:[#allocation6 + $0x1f0] sm:$0xf]
    %v628 = vld [vmem:[#allocation6 + $0x1f4] sm:$0xf]
    %v629 = vld [vmem:[#allocation6 + $0x1f8] sm:$0xf]
    %v630 = vld [vmem:[#allocation6 + $0x1fc] sm:$0xf]
    %v631 = vld [vmem:[#allocation6 + $0x200] sm:$0xf]
    %v632 = vld [vmem:[#allocation6 + $0x204] sm:$0xf]
    %v633 = vld [vmem:[#allocation6 + $0x208] sm:$0xf]
    %v634 = vld [vmem:[#allocation6 + $0x20c] sm:$0xf]
    %v635 = vld [vmem:[#allocation6 + $0x210] sm:$0xf]
    %v636 = vld [vmem:[#allocation6 + $0x214] sm:$0xf]
    %v637 = vld [vmem:[#allocation6 + $0x218] sm:$0xf]
    %v638 = vld [vmem:[#allocation6 + $0x21c] sm:$0xf]
    %v639 = vld [vmem:[#allocation6 + $0x220] sm:$0xf]
    %v640 = vld [vmem:[#allocation6 + $0x224] sm:$0xf]
    %v641 = vld [vmem:[#allocation6 + $0x228] sm:$0xf]
    %v642 = vld [vmem:[#allocation6 + $0x22c] sm:$0xf]
    %v643 = vld [vmem:[#allocation6 + $0x230] sm:$0xf]
    %v644 = vld [vmem:[#allocation6 + $0x234] sm:$0xf]
    %v645 = vld [vmem:[#allocation6 + $0x238] sm:$0xf]
    %v646 = vld [vmem:[#allocation6 + $0x23c] sm:$0xf]
    %v647 = vld [vmem:[#allocation6 + $0x240] sm:$0xf]
    %v648 = vld [vmem:[#allocation6 + $0x244] sm:$0xf]
    %v649 = vld [vmem:[#allocation6 + $0x248] sm:$0xf]
    %v650 = vld [vmem:[#allocation6 + $0x24c] sm:$0xf]
    %v651 = vld [vmem:[#allocation6 + $0x250] sm:$0xf]
    %v652 = vld [vmem:[#allocation6 + $0x254] sm:$0xf]
    %v653 = vld [vmem:[#allocation6 + $0x258] sm:$0xf]
    %v654 = vld [vmem:[#allocation6 + $0x25c] sm:$0xf]
    %v655 = vld [vmem:[#allocation6 + $0x260] sm:$0xf]
    %v656 = vld [vmem:[#allocation6 + $0x264] sm:$0xf]
    %v657 = vld [vmem:[#allocation6 + $0x268] sm:$0xf]
    %v658 = vld [vmem:[#allocation6 + $0x26c] sm:$0xf]
    %v659 = vld [vmem:[#allocation6 + $0x270] sm:$0xf]
    %v660 = vld [vmem:[#allocation6 + $0x274] sm:$0xf]
    %v661 = vld [vmem:[#allocation6 + $0x278] sm:$0xf]
    %v662 = vld [vmem:[#allocation6 + $0x27c] sm:$0xf]
    %v663 = vld [vmem:[#allocation6 + $0x280] sm:$0xf]
    %v664 = vld [vmem:[#allocation6 + $0x284] sm:$0xf]
    %v665 = vld [vmem:[#allocation6 + $0x288] sm:$0xf]
    %v666 = vld [vmem:[#allocation6 + $0x28c] sm:$0xf]
    %v667 = vld [vmem:[#allocation6 + $0x290] sm:$0xf]
    %v668 = vld [vmem:[#allocation6 + $0x294] sm:$0xf]
    %v669 = vld [vmem:[#allocation6 + $0x298] sm:$0xf]
    %v670 = vld [vmem:[#allocation6 + $0x29c] sm:$0xf]
    %v671 = vld [vmem:[#allocation6 + $0x2a0] sm:$0xf]
    %v672 = vld [vmem:[#allocation6 + $0x2a4] sm:$0xf]
    %v673 = vld [vmem:[#allocation6 + $0x2a8] sm:$0xf]
    %v674 = vld [vmem:[#allocation6 + $0x2ac] sm:$0xf]
    %v675 = vld [vmem:[#allocation6 + $0x2b0] sm:$0xf]
    %v676 = vld [vmem:[#allocation6 + $0x2b4] sm:$0xf]
    %v677 = vld [vmem:[#allocation6 + $0x2b8] sm:$0xf]
    %v678 = vld [vmem:[#allocation6 + $0x2bc] sm:$0xf]
    %v679 = vld [vmem:[#allocation6 + $0x2c0] sm:$0xf]
    %v680 = vld [vmem:[#allocation6 + $0x2c4] sm:$0xf]
    %v681 = vld [vmem:[#allocation6 + $0x2c8] sm:$0xf]
    %v682 = vld [vmem:[#allocation6 + $0x2cc] sm:$0xf]
    %v683 = vld [vmem:[#allocation6 + $0x2d0] sm:$0xf]
    %v684 = vld [vmem:[#allocation6 + $0x2d4] sm:$0xf]
    %v685 = vld [vmem:[#allocation6 + $0x2d8] sm:$0xf]
    %v686 = vld [vmem:[#allocation6 + $0x2dc] sm:$0xf]
    %v687 = vld [vmem:[#allocation6 + $0x2e0] sm:$0xf]
    %v688 = vld [vmem:[#allocation6 + $0x2e4] sm:$0xf]
    %v689 = vld [vmem:[#allocation6 + $0x2e8] sm:$0xf]
    %v690 = vld [vmem:[#allocation6 + $0x2ec] sm:$0xf]
    %v691 = vld [vmem:[#allocation6 + $0x2f0] sm:$0xf]
    %v692 = vld [vmem:[#allocation6 + $0x2f4] sm:$0xf]
    %v693 = vld [vmem:[#allocation6 + $0x2f8] sm:$0xf]
    %v694 = vld [vmem:[#allocation6 + $0x2fc] sm:$0xf]
    %v695 = vld [vmem:[#allocation6 + $0x300] sm:$0xf]
    %v696 = vld [vmem:[#allocation6 + $0x304] sm:$0xf]
    %v697 = vld [vmem:[#allocation6 + $0x308] sm:$0xf]
    %v698 = vld [vmem:[#allocation6 + $0x30c] sm:$0xf]
    %v699 = vld [vmem:[#allocation6 + $0x310] sm:$0xf]
    %v700 = vld [vmem:[#allocation6 + $0x314] sm:$0xf]
    %v701 = vld [vmem:[#allocation6 + $0x318] sm:$0xf]
    %v702 = vld [vmem:[#allocation6 + $0x31c] sm:$0xf]
    %v703 = vld [vmem:[#allocation6 + $0x320] sm:$0xf]
    %v704 = vld [vmem:[#allocation6 + $0x324] sm:$0xf]
    %v705 = vld [vmem:[#allocation6 + $0x328] sm:$0xf]
    %v706 = vld [vmem:[#allocation6 + $0x32c] sm:$0xf]
    %v707 = vld [vmem:[#allocation6 + $0x330] sm:$0xf]
    %v708 = vld [vmem:[#allocation6 + $0x334] sm:$0xf]
    %v709 = vld [vmem:[#allocation6 + $0x338] sm:$0xf]
    %v710 = vld [vmem:[#allocation6 + $0x33c] sm:$0xf]
    %v711 = vld [vmem:[#allocation6 + $0x340] sm:$0xf]
    %v712 = vld [vmem:[#allocation6 + $0x344] sm:$0xf]
    %v713 = vld [vmem:[#allocation6 + $0x348] sm:$0xf]
    %v714 = vld [vmem:[#allocation6 + $0x34c] sm:$0xf]
    %v715 = vld [vmem:[#allocation6 + $0x350] sm:$0xf]
    %v716 = vld [vmem:[#allocation6 + $0x354] sm:$0xf]
    %v717 = vld [vmem:[#allocation6 + $0x358] sm:$0xf]
    %v718 = vld [vmem:[#allocation6 + $0x35c] sm:$0xf]
    %v719 = vld [vmem:[#allocation6 + $0x360] sm:$0xf]
    %v720 = vld [vmem:[#allocation6 + $0x364] sm:$0xf]
    %v721 = vld [vmem:[#allocation6 + $0x368] sm:$0xf]
    %v722 = vld [vmem:[#allocation6 + $0x36c] sm:$0xf]
    %v723 = vld [vmem:[#allocation6 + $0x370] sm:$0xf]
    %v724 = vld [vmem:[#allocation6 + $0x374] sm:$0xf]
    %v725 = vld [vmem:[#allocation6 + $0x378] sm:$0xf]
    %v726 = vld [vmem:[#allocation6 + $0x37c] sm:$0xf]
    %v727 = vld [vmem:[#allocation6 + $0x380] sm:$0xf]
    %v728 = vld [vmem:[#allocation6 + $0x384] sm:$0xf]
    %v729 = vld [vmem:[#allocation6 + $0x388] sm:$0xf]
    %v730 = vld [vmem:[#allocation6 + $0x38c] sm:$0xf]
    %v731 = vld [vmem:[#allocation6 + $0x390] sm:$0xf]
    %v732 = vld [vmem:[#allocation6 + $0x394] sm:$0xf]
    %v733 = vld [vmem:[#allocation6 + $0x398] sm:$0xf]
    %v734 = vld [vmem:[#allocation6 + $0x39c] sm:$0xf]
    %v735 = vld [vmem:[#allocation6 + $0x3a0] sm:$0xf]
    %v736 = vld [vmem:[#allocation6 + $0x3a4] sm:$0xf]
    %v737 = vld [vmem:[#allocation6 + $0x3a8] sm:$0xf]
    %v738 = vld [vmem:[#allocation6 + $0x3ac] sm:$0xf]
    %v739 = vld [vmem:[#allocation6 + $0x3b0] sm:$0xf]
    %v740 = vld [vmem:[#allocation6 + $0x3b4] sm:$0xf]
    %v741 = vld [vmem:[#allocation6 + $0x3b8] sm:$0xf]
    %v742 = vld [vmem:[#allocation6 + $0x3bc] sm:$0xf]
    %v743 = vld [vmem:[#allocation6 + $0x3c0] sm:$0xf]
    %v744 = vld [vmem:[#allocation6 + $0x3c4] sm:$0xf]
    %v745 = vld [vmem:[#allocation6 + $0x3c8] sm:$0xf]
    %v746 = vld [vmem:[#allocation6 + $0x3cc] sm:$0xf]
    %v747 = vld [vmem:[#allocation6 + $0x3d0] sm:$0xf]
    %v748 = vld [vmem:[#allocation6 + $0x3d4] sm:$0xf]
    %v749 = vld [vmem:[#allocation6 + $0x3d8] sm:$0xf]
    %v750 = vld [vmem:[#allocation6 + $0x3dc] sm:$0xf]
    %v751 = vld [vmem:[#allocation6 + $0x3e0] sm:$0xf]
    %v752 = vld [vmem:[#allocation6 + $0x3e4] sm:$0xf]
    %v753 = vld [vmem:[#allocation6 + $0x3e8] sm:$0xf]
    %v754 = vld [vmem:[#allocation6 + $0x3ec] sm:$0xf]
    %v755 = vld [vmem:[#allocation6 + $0x3f0] sm:$0xf]
    %v756 = vld [vmem:[#allocation6 + $0x3f4] sm:$0xf]
    %v757 = vld [vmem:[#allocation6 + $0x3f8] sm:$0xf]
    %v758 = vld [vmem:[#allocation6 + $0x3fc] sm:$0xf]
    %v759 = vld [vmem:[#allocation6 + $0x400] sm:$0xf]
    %v760 = vld [vmem:[#allocation6 + $0x404] sm:$0xf]
    %v761 = vld [vmem:[#allocation6 + $0x408] sm:$0xf]
    %v762 = vld [vmem:[#allocation6 + $0x40c] sm:$0xf]
    %v763 = vld [vmem:[#allocation6 + $0x410] sm:$0xf]
    %v764 = vld [vmem:[#allocation6 + $0x414] sm:$0xf]
    %v765 = vld [vmem:[#allocation6 + $0x418] sm:$0xf]
    %v766 = vld [vmem:[#allocation6 + $0x41c] sm:$0xf]
    %v767 = vld [vmem:[#allocation6 + $0x420] sm:$0xf]
    %v768 = vld [vmem:[#allocation6 + $0x424] sm:$0xf]
    %v769 = vld [vmem:[#allocation6 + $0x428] sm:$0xf]
    %v770 = vld [vmem:[#allocation6 + $0x42c] sm:$0xf]
    %v771 = vld [vmem:[#allocation6 + $0x430] sm:$0xf]
    %v772 = vld [vmem:[#allocation6 + $0x434] sm:$0xf]
    %v773 = vld [vmem:[#allocation6 + $0x438] sm:$0xf]
    %v774 = vld [vmem:[#allocation6 + $0x43c] sm:$0xf]
    %v775 = vld [vmem:[#allocation6 + $0x440] sm:$0xf]
    %v776 = vld [vmem:[#allocation6 + $0x444] sm:$0xf]
    %v777 = vld [vmem:[#allocation6 + $0x448] sm:$0xf]
    %v778 = vld [vmem:[#allocation6 + $0x44c] sm:$0xf]
    %v779 = vld [vmem:[#allocation6 + $0x450] sm:$0xf]
    %v780 = vld [vmem:[#allocation6 + $0x454] sm:$0xf]
    %v781 = vld [vmem:[#allocation6 + $0x458] sm:$0xf]
    %v782 = vld [vmem:[#allocation6 + $0x45c] sm:$0xf]
    %v783 = vld [vmem:[#allocation6 + $0x460] sm:$0xf]
    %v784 = vld [vmem:[#allocation6 + $0x464] sm:$0xf]
    %v785 = vld [vmem:[#allocation6 + $0x468] sm:$0xf]
    %v786 = vld [vmem:[#allocation6 + $0x46c] sm:$0xf]
    %v787 = vld [vmem:[#allocation6 + $0x470] sm:$0xf]
    %v788 = vld [vmem:[#allocation6 + $0x474] sm:$0xf]
    %v789 = vld [vmem:[#allocation6 + $0x478] sm:$0xf]
    %v790 = vld [vmem:[#allocation6 + $0x47c] sm:$0xf]
    %v791 = vld [vmem:[#allocation6 + $0x480] sm:$0xf]
    %v792 = vld [vmem:[#allocation6 + $0x484] sm:$0xf]
    %v793 = vld [vmem:[#allocation6 + $0x488] sm:$0xf]
    %v794 = vld [vmem:[#allocation6 + $0x48c] sm:$0xf]
    %v795 = vld [vmem:[#allocation6 + $0x490] sm:$0xf]
    %v796 = vld [vmem:[#allocation6 + $0x494] sm:$0xf]
    %v797 = vld [vmem:[#allocation6 + $0x498] sm:$0xf]
    %v798 = vld [vmem:[#allocation6 + $0x49c] sm:$0xf]
    %v799 = vld [vmem:[#allocation6 + $0x4a0] sm:$0xf]
    %v800 = vld [vmem:[#allocation6 + $0x4a4] sm:$0xf]
    %v801 = vld [vmem:[#allocation6 + $0x4a8] sm:$0xf]
    %v802 = vld [vmem:[#allocation6 + $0x4ac] sm:$0xf]
    %v803 = vld [vmem:[#allocation6 + $0x4b0] sm:$0xf]
    %v804 = vld [vmem:[#allocation6 + $0x4b4] sm:$0xf]
    %v805 = vld [vmem:[#allocation6 + $0x4b8] sm:$0xf]
    %v806 = vld [vmem:[#allocation6 + $0x4bc] sm:$0xf]
    %v807 = vld [vmem:[#allocation6 + $0x4c0] sm:$0xf]
    %v808 = vld [vmem:[#allocation6 + $0x4c4] sm:$0xf]
    %v809 = vld [vmem:[#allocation6 + $0x4c8] sm:$0xf]
    %v810 = vld [vmem:[#allocation6 + $0x4cc] sm:$0xf]
    %v811 = vld [vmem:[#allocation6 + $0x4d0] sm:$0xf]
    %v812 = vld [vmem:[#allocation6 + $0x4d4] sm:$0xf]
    %v813 = vld [vmem:[#allocation6 + $0x4d8] sm:$0xf]
    %v814 = vld [vmem:[#allocation6 + $0x4dc] sm:$0xf]
    %v815 = vld [vmem:[#allocation6 + $0x4e0] sm:$0xf]
    %v816 = vld [vmem:[#allocation6 + $0x4e4] sm:$0xf]
    %v817 = vld [vmem:[#allocation6 + $0x4e8] sm:$0xf]
    %v818 = vld [vmem:[#allocation6 + $0x4ec] sm:$0xf]
    %v819 = vld [vmem:[#allocation6 + $0x4f0] sm:$0xf]
    %v820 = vld [vmem:[#allocation6 + $0x4f4] sm:$0xf]
    %v821 = vld [vmem:[#allocation6 + $0x4f8] sm:$0xf]
    %v822 = vld [vmem:[#allocation6 + $0x4fc] sm:$0xf]
    %v823 = vld [vmem:[#allocation6 + $0x500] sm:$0xf]
    %v824 = vld [vmem:[#allocation6 + $0x504] sm:$0xf]
    %v825 = vld [vmem:[#allocation6 + $0x508] sm:$0xf]
    %v826 = vld [vmem:[#allocation6 + $0x50c] sm:$0xf]
    %v827 = vld [vmem:[#allocation6 + $0x510] sm:$0xf]
    %v828 = vld [vmem:[#allocation6 + $0x514] sm:$0xf]
    %v829 = vld [vmem:[#allocation6 + $0x518] sm:$0xf]
    %v830 = vld [vmem:[#allocation6 + $0x51c] sm:$0xf]
    %v831 = vld [vmem:[#allocation6 + $0x520] sm:$0xf]
    %v832 = vld [vmem:[#allocation6 + $0x524] sm:$0xf]
    %v833 = vld [vmem:[#allocation6 + $0x528] sm:$0xf]
    %v834 = vld [vmem:[#allocation6 + $0x52c] sm:$0xf]
    %v835 = vld [vmem:[#allocation6 + $0x530] sm:$0xf]
    %v836 = vld [vmem:[#allocation6 + $0x534] sm:$0xf]
    %v837 = vld [vmem:[#allocation6 + $0x538] sm:$0xf]
    %v838 = vld [vmem:[#allocation6 + $0x53c] sm:$0xf]
    %v839 = vld [vmem:[#allocation6 + $0x540] sm:$0xf]
    %v840 = vld [vmem:[#allocation6 + $0x544] sm:$0xf]
    %v841 = vld [vmem:[#allocation6 + $0x548] sm:$0xf]
    %v842 = vld [vmem:[#allocation6 + $0x54c] sm:$0xf]
    %v843 = vld [vmem:[#allocation6 + $0x550] sm:$0xf]
    %v844 = vld [vmem:[#allocation6 + $0x554] sm:$0xf]
    %v845 = vld [vmem:[#allocation6 + $0x558] sm:$0xf]
    %v846 = vld [vmem:[#allocation6 + $0x55c] sm:$0xf]
    %v847 = vld [vmem:[#allocation6 + $0x560] sm:$0xf]
    %v848 = vld [vmem:[#allocation6 + $0x564] sm:$0xf]
    %v849 = vld [vmem:[#allocation6 + $0x568] sm:$0xf]
    %v850 = vld [vmem:[#allocation6 + $0x56c] sm:$0xf]
    %v851 = vld [vmem:[#allocation6 + $0x570] sm:$0xf]
    %v852 = vld [vmem:[#allocation6 + $0x574] sm:$0xf]
    %v853 = vld [vmem:[#allocation6 + $0x578] sm:$0xf]
    %v854 = vld [vmem:[#allocation6 + $0x57c] sm:$0xf]
    %v855 = vld [vmem:[#allocation6 + $0x580] sm:$0xf]
    %v856 = vld [vmem:[#allocation6 + $0x584] sm:$0xf]
    %v857 = vld [vmem:[#allocation6 + $0x588] sm:$0xf]
    %v858 = vld [vmem:[#allocation6 + $0x58c] sm:$0xf]
    %v859 = vld [vmem:[#allocation6 + $0x590] sm:$0xf]
    %v860 = vld [vmem:[#allocation6 + $0x594] sm:$0xf]
    %v861 = vld [vmem:[#allocation6 + $0x598] sm:$0xf]
    %v862 = vld [vmem:[#allocation6 + $0x59c] sm:$0xf]
    %v863 = vld [vmem:[#allocation6 + $0x5a0] sm:$0xf]
    %v864 = vld [vmem:[#allocation6 + $0x5a4] sm:$0xf]
    %v865 = vld [vmem:[#allocation6 + $0x5a8] sm:$0xf]
    %v866 = vld [vmem:[#allocation6 + $0x5ac] sm:$0xf]
    %v867 = vld [vmem:[#allocation6 + $0x5b0] sm:$0xf]
    %v868 = vld [vmem:[#allocation6 + $0x5b4] sm:$0xf]
    %v869 = vld [vmem:[#allocation6 + $0x5b8] sm:$0xf]
    %v870 = vld [vmem:[#allocation6 + $0x5bc] sm:$0xf]
    %v871 = vld [vmem:[#allocation6 + $0x5c0] sm:$0xf]
    %v872 = vld [vmem:[#allocation6 + $0x5c4] sm:$0xf]
    %v873 = vld [vmem:[#allocation6 + $0x5c8] sm:$0xf]
    %v874 = vld [vmem:[#allocation6 + $0x5cc] sm:$0xf]
    %v875 = vld [vmem:[#allocation6 + $0x5d0] sm:$0xf]
    %v876 = vld [vmem:[#allocation6 + $0x5d4] sm:$0xf]
    %v877 = vld [vmem:[#allocation6 + $0x5d8] sm:$0xf]
    %v878 = vld [vmem:[#allocation6 + $0x5dc] sm:$0xf]
    %v879 = vld [vmem:[#allocation6 + $0x5e0] sm:$0xf]
    %v880 = vld [vmem:[#allocation6 + $0x5e4] sm:$0xf]
    %v881 = vld [vmem:[#allocation6 + $0x5e8] sm:$0xf]
    %v882 = vld [vmem:[#allocation6 + $0x5ec] sm:$0xf]
    %v883 = vld [vmem:[#allocation6 + $0x5f0] sm:$0xf]
    %v884 = vld [vmem:[#allocation6 + $0x5f4] sm:$0xf]
    %v885 = vld [vmem:[#allocation6 + $0x5f8] sm:$0xf]
    %v886 = vld [vmem:[#allocation6 + $0x5fc] sm:$0xf]
    %v887 = vld [vmem:[#allocation6 + $0x600] sm:$0xf]
    %v888 = vld [vmem:[#allocation6 + $0x604] sm:$0xf]
    %v889 = vld [vmem:[#allocation6 + $0x608] sm:$0xf]
    %v890 = vld [vmem:[#allocation6 + $0x60c] sm:$0xf]
    %v891 = vld [vmem:[#allocation6 + $0x610] sm:$0xf]
    %v892 = vld [vmem:[#allocation6 + $0x614] sm:$0xf]
    %v893 = vld [vmem:[#allocation6 + $0x618] sm:$0xf]
    %v894 = vld [vmem:[#allocation6 + $0x61c] sm:$0xf]
    %v895 = vld [vmem:[#allocation6 + $0x620] sm:$0xf]
    %v896 = vld [vmem:[#allocation6 + $0x624] sm:$0xf]
    %v897 = vld [vmem:[#allocation6 + $0x628] sm:$0xf]
    %v898 = vld [vmem:[#allocation6 + $0x62c] sm:$0xf]
    %v899 = vld [vmem:[#allocation6 + $0x630] sm:$0xf]
    %v900 = vld [vmem:[#allocation6 + $0x634] sm:$0xf]
    %v901 = vld [vmem:[#allocation6 + $0x638] sm:$0xf]
    %v902 = vld [vmem:[#allocation6 + $0x63c] sm:$0xf]
    %v903 = vld [vmem:[#allocation6 + $0x640] sm:$0xf]
    %v904 = vld [vmem:[#allocation6 + $0x644] sm:$0xf]
    %v905 = vld [vmem:[#allocation6 + $0x648] sm:$0xf]
    %v906 = vld [vmem:[#allocation6 + $0x64c] sm:$0xf]
    %v907 = vld [vmem:[#allocation6 + $0x650] sm:$0xf]
    %v908 = vld [vmem:[#allocation6 + $0x654] sm:$0xf]
    %v909 = vld [vmem:[#allocation6 + $0x658] sm:$0xf]
    %v910 = vld [vmem:[#allocation6 + $0x65c] sm:$0xf]
    %v911 = vld [vmem:[#allocation6 + $0x660] sm:$0xf]
    %v912 = vld [vmem:[#allocation6 + $0x664] sm:$0xf]
    %v913 = vld [vmem:[#allocation6 + $0x668] sm:$0xf]
    %v914 = vld [vmem:[#allocation6 + $0x66c] sm:$0xf]
    %v915 = vld [vmem:[#allocation6 + $0x670] sm:$0xf]
    %v916 = vld [vmem:[#allocation6 + $0x674] sm:$0xf]
    %v917 = vld [vmem:[#allocation6 + $0x678] sm:$0xf]
    %v918 = vld [vmem:[#allocation6 + $0x67c] sm:$0xf]
    %v919 = vld [vmem:[#allocation6 + $0x680] sm:$0xf]
    %v920 = vld [vmem:[#allocation6 + $0x684] sm:$0xf]
    %v921 = vld [vmem:[#allocation6 + $0x688] sm:$0xf]
    %v922 = vld [vmem:[#allocation6 + $0x68c] sm:$0xf]
    %v923 = vld [vmem:[#allocation6 + $0x690] sm:$0xf]
    %v924 = vld [vmem:[#allocation6 + $0x694] sm:$0xf]
    %v925 = vld [vmem:[#allocation6 + $0x698] sm:$0xf]
    %v926 = vld [vmem:[#allocation6 + $0x69c] sm:$0xf]
    %v927 = vld [vmem:[#allocation6 + $0x6a0] sm:$0xf]
    %v928 = vld [vmem:[#allocation6 + $0x6a4] sm:$0xf]
    %v929 = vld [vmem:[#allocation6 + $0x6a8] sm:$0xf]
    %v930 = vld [vmem:[#allocation6 + $0x6ac] sm:$0xf]
    %v931 = vld [vmem:[#allocation6 + $0x6b0] sm:$0xf]
    %v932 = vld [vmem:[#allocation6 + $0x6b4] sm:$0xf]
    %v933 = vld [vmem:[#allocation6 + $0x6b8] sm:$0xf]
    %v934 = vld [vmem:[#allocation6 + $0x6bc] sm:$0xf]
    %v935 = vld [vmem:[#allocation6 + $0x6c0] sm:$0xf]
    %v936 = vld [vmem:[#allocation6 + $0x6c4] sm:$0xf]
    %v937 = vld [vmem:[#allocation6 + $0x6c8] sm:$0xf]
    %v938 = vld [vmem:[#allocation6 + $0x6cc] sm:$0xf]
    %v939 = vld [vmem:[#allocation6 + $0x6d0] sm:$0xf]
    %v940 = vld [vmem:[#allocation6 + $0x6d4] sm:$0xf]
    %v941 = vld [vmem:[#allocation6 + $0x6d8] sm:$0xf]
    %v942 = vld [vmem:[#allocation6 + $0x6dc] sm:$0xf]
    %v943 = vld [vmem:[#allocation6 + $0x6e0] sm:$0xf]
    %v944 = vld [vmem:[#allocation6 + $0x6e4] sm:$0xf]
    %v945 = vld [vmem:[#allocation6 + $0x6e8] sm:$0xf]
    %v946 = vld [vmem:[#allocation6 + $0x6ec] sm:$0xf]
    %v947 = vld [vmem:[#allocation6 + $0x6f0] sm:$0xf]
    %v948 = vld [vmem:[#allocation6 + $0x6f4] sm:$0xf]
    %v949 = vld [vmem:[#allocation6 + $0x6f8] sm:$0xf]
    %v950 = vld [vmem:[#allocation6 + $0x6fc] sm:$0xf]
    %v951 = vld [vmem:[#allocation6 + $0x700] sm:$0xf]
    %v952 = vld [vmem:[#allocation6 + $0x704] sm:$0xf]
    %v953 = vld [vmem:[#allocation6 + $0x708] sm:$0xf]
    %v954 = vld [vmem:[#allocation6 + $0x70c] sm:$0xf]
    %v955 = vld [vmem:[#allocation6 + $0x710] sm:$0xf]
    %v956 = vld [vmem:[#allocation6 + $0x714] sm:$0xf]
    %v957 = vld [vmem:[#allocation6 + $0x718] sm:$0xf]
    %v958 = vld [vmem:[#allocation6 + $0x71c] sm:$0xf]
    %v959 = vld [vmem:[#allocation6 + $0x720] sm:$0xf]
    %v960 = vld [vmem:[#allocation6 + $0x724] sm:$0xf]
    %v961 = vld [vmem:[#allocation6 + $0x728] sm:$0xf]
    %v962 = vld [vmem:[#allocation6 + $0x72c] sm:$0xf]
    %v963 = vld [vmem:[#allocation6 + $0x730] sm:$0xf]
    %v964 = vld [vmem:[#allocation6 + $0x734] sm:$0xf]
    %v965 = vld [vmem:[#allocation6 + $0x738] sm:$0xf]
    %v966 = vld [vmem:[#allocation6 + $0x73c] sm:$0xf]
    %v967 = vld [vmem:[#allocation6 + $0x740] sm:$0xf]
    %v968 = vld [vmem:[#allocation6 + $0x744] sm:$0xf]
    %v969 = vld [vmem:[#allocation6 + $0x748] sm:$0xf]
    %v970 = vld [vmem:[#allocation6 + $0x74c] sm:$0xf]
    %v971 = vld [vmem:[#allocation6 + $0x750] sm:$0xf]
    %v972 = vld [vmem:[#allocation6 + $0x754] sm:$0xf]
    %v973 = vld [vmem:[#allocation6 + $0x758] sm:$0xf]
    %v974 = vld [vmem:[#allocation6 + $0x75c] sm:$0xf]
    %v975 = vld [vmem:[#allocation6 + $0x760] sm:$0xf]
    %v976 = vld [vmem:[#allocation6 + $0x764] sm:$0xf]
    %v977 = vld [vmem:[#allocation6 + $0x768] sm:$0xf]
    %v978 = vld [vmem:[#allocation6 + $0x76c] sm:$0xf]
    %v979 = vld [vmem:[#allocation6 + $0x770] sm:$0xf]
    %v980 = vld [vmem:[#allocation6 + $0x774] sm:$0xf]
    %v981 = vld [vmem:[#allocation6 + $0x778] sm:$0xf]
    %v982 = vld [vmem:[#allocation6 + $0x77c] sm:$0xf]
    %v983 = vld [vmem:[#allocation6 + $0x780] sm:$0xf]
    %v984 = vld [vmem:[#allocation6 + $0x784] sm:$0xf]
    %v985 = vld [vmem:[#allocation6 + $0x788] sm:$0xf]
    %v986 = vld [vmem:[#allocation6 + $0x78c] sm:$0xf]
    %v987 = vld [vmem:[#allocation6 + $0x790] sm:$0xf]
    %v988 = vld [vmem:[#allocation6 + $0x794] sm:$0xf]
    %v989 = vld [vmem:[#allocation6 + $0x798] sm:$0xf]
    %v990 = vld [vmem:[#allocation6 + $0x79c] sm:$0xf]
    %v991 = vld [vmem:[#allocation6 + $0x7a0] sm:$0xf]
    %v992 = vld [vmem:[#allocation6 + $0x7a4] sm:$0xf]
    %v993 = vld [vmem:[#allocation6 + $0x7a8] sm:$0xf]
    %v994 = vld [vmem:[#allocation6 + $0x7ac] sm:$0xf]
    %v995 = vld [vmem:[#allocation6 + $0x7b0] sm:$0xf]
    %v996 = vld [vmem:[#allocation6 + $0x7b4] sm:$0xf]
    %v997 = vld [vmem:[#allocation6 + $0x7b8] sm:$0xf]
    %v998 = vld [vmem:[#allocation6 + $0x7bc] sm:$0xf]
    %v999 = vld [vmem:[#allocation6 + $0x7c0] sm:$0xf]
    %v1000 = vld [vmem:[#allocation6 + $0x7c4] sm:$0xf]
    %v1001 = vld [vmem:[#allocation6 + $0x7c8] sm:$0xf]
    %v1002 = vld [vmem:[#allocation6 + $0x7cc] sm:$0xf]
    %v1003 = vld [vmem:[#allocation6 + $0x7d0] sm:$0xf]
    %v1004 = vld [vmem:[#allocation6 + $0x7d4] sm:$0xf]
    %v1005 = vld [vmem:[#allocation6 + $0x7d8] sm:$0xf]
    %v1006 = vld [vmem:[#allocation6 + $0x7dc] sm:$0xf]
    %v1007 = vld [vmem:[#allocation6 + $0x7e0] sm:$0xf]
    %v1008 = vld [vmem:[#allocation6 + $0x7e4] sm:$0xf]
    %v1009 = vld [vmem:[#allocation6 + $0x7e8] sm:$0xf]
    %v1010 = vld [vmem:[#allocation6 + $0x7ec] sm:$0xf]
    %v1011 = vld [vmem:[#allocation6 + $0x7f0] sm:$0xf]
    %v1012 = vld [vmem:[#allocation6 + $0x7f4] sm:$0xf]
    %v1013 = vld [vmem:[#allocation6 + $0x7f8] sm:$0xf]
    %v1014 = vld [vmem:[#allocation6 + $0x7fc] sm:$0xf]
    %v1015 = vld [vmem:[#allocation6 + $0x800] sm:$0xf]
    %v1016 = vld [vmem:[#allocation6 + $0x804] sm:$0xf]
    %v1017 = vld [vmem:[#allocation6 + $0x808] sm:$0xf]
    %v1018 = vld [vmem:[#allocation6 + $0x80c] sm:$0xf]
    %v1019 = vld [vmem:[#allocation6 + $0x810] sm:$0xf]
    %v1020 = vld [vmem:[#allocation6 + $0x814] sm:$0xf]
    %v1021 = vld [vmem:[#allocation6 + $0x818] sm:$0xf]
    %v1022 = vld [vmem:[#allocation6 + $0x81c] sm:$0xf]
    %v1023 = vld [vmem:[#allocation6 + $0x820] sm:$0xf]
    %v1024 = vld [vmem:[#allocation6 + $0x824] sm:$0xf]
    %v1025 = vld [vmem:[#allocation6 + $0x828] sm:$0xf]
    %v1026 = vld [vmem:[#allocation6 + $0x82c] sm:$0xf]
    %v1027 = vld [vmem:[#allocation6 + $0x830] sm:$0xf]
    %v1028 = vld [vmem:[#allocation6 + $0x834] sm:$0xf]
    %v1029 = vld [vmem:[#allocation6 + $0x838] sm:$0xf]
    %v1030 = vld [vmem:[#allocation6 + $0x83c] sm:$0xf]
    %v1031 = vld [vmem:[#allocation6 + $0x840] sm:$0xf]
    %v1032 = vld [vmem:[#allocation6 + $0x844] sm:$0xf]
    %v1033 = vld [vmem:[#allocation6 + $0x848] sm:$0xf]
    %v1034 = vld [vmem:[#allocation6 + $0x84c] sm:$0xf]
    %v1035 = vld [vmem:[#allocation6 + $0x850] sm:$0xf]
    %v1036 = vld [vmem:[#allocation6 + $0x854] sm:$0xf]
    %v1037 = vld [vmem:[#allocation6 + $0x858] sm:$0xf]
    %v1038 = vld [vmem:[#allocation6 + $0x85c] sm:$0xf]
    %v1039 = vld [vmem:[#allocation6 + $0x860] sm:$0xf]
    %v1040 = vld [vmem:[#allocation6 + $0x864] sm:$0xf]
    %v1041 = vld [vmem:[#allocation6 + $0x868] sm:$0xf]
    %v1042 = vld [vmem:[#allocation6 + $0x86c] sm:$0xf]
    %v1043 = vld [vmem:[#allocation6 + $0x870] sm:$0xf]
    %v1044 = vld [vmem:[#allocation6 + $0x874] sm:$0xf]
    %v1045 = vld [vmem:[#allocation6 + $0x878] sm:$0xf]
    %v1046 = vld [vmem:[#allocation6 + $0x87c] sm:$0xf]
    %v1047 = vld [vmem:[#allocation6 + $0x880] sm:$0xf]
    %v1048 = vld [vmem:[#allocation6 + $0x884] sm:$0xf]
    %v1049 = vld [vmem:[#allocation6 + $0x888] sm:$0xf]
    %v1050 = vld [vmem:[#allocation6 + $0x88c] sm:$0xf]
    %v1051 = vld [vmem:[#allocation6 + $0x890] sm:$0xf]
    %v1052 = vld [vmem:[#allocation6 + $0x894] sm:$0xf]
    %v1053 = vld [vmem:[#allocation6 + $0x898] sm:$0xf]
    %v1054 = vld [vmem:[#allocation6 + $0x89c] sm:$0xf]
    %v1055 = vld [vmem:[#allocation6 + $0x8a0] sm:$0xf]
    %v1056 = vld [vmem:[#allocation6 + $0x8a4] sm:$0xf]
    %v1057 = vld [vmem:[#allocation6 + $0x8a8] sm:$0xf]
    %v1058 = vld [vmem:[#allocation6 + $0x8ac] sm:$0xf]
    %v1059 = vld [vmem:[#allocation6 + $0x8b0] sm:$0xf]
    %v1060 = vld [vmem:[#allocation6 + $0x8b4] sm:$0xf]
    %v1061 = vld [vmem:[#allocation6 + $0x8b8] sm:$0xf]
    %v1062 = vld [vmem:[#allocation6 + $0x8bc] sm:$0xf]
    %v1063 = vld [vmem:[#allocation6 + $0x8c0] sm:$0xf]
    %v1064 = vld [vmem:[#allocation6 + $0x8c4] sm:$0xf]
    %v1065 = vld [vmem:[#allocation6 + $0x8c8] sm:$0xf]
    %v1066 = vld [vmem:[#allocation6 + $0x8cc] sm:$0xf]
    %v1067 = vld [vmem:[#allocation6 + $0x8d0] sm:$0xf]
    %v1068 = vld [vmem:[#allocation6 + $0x8d4] sm:$0xf]
    %v1069 = vld [vmem:[#allocation6 + $0x8d8] sm:$0xf]
    %v1070 = vld [vmem:[#allocation6 + $0x8dc] sm:$0xf]
    %v1071 = vld [vmem:[#allocation6 + $0x8e0] sm:$0xf]
    %v1072 = vld [vmem:[#allocation6 + $0x8e4] sm:$0xf]
    %v1073 = vld [vmem:[#allocation6 + $0x8e8] sm:$0xf]
    %v1074 = vld [vmem:[#allocation6 + $0x8ec] sm:$0xf]
    %v1075 = vld [vmem:[#allocation6 + $0x8f0] sm:$0xf]
    %v1076 = vld [vmem:[#allocation6 + $0x8f4] sm:$0xf]
    %v1077 = vld [vmem:[#allocation6 + $0x8f8] sm:$0xf]
    %v1078 = vld [vmem:[#allocation6 + $0x8fc] sm:$0xf]
    %v1079 = vld [vmem:[#allocation6 + $0x900] sm:$0xf]
    %v1080 = vld [vmem:[#allocation6 + $0x904] sm:$0xf]
    %v1081 = vld [vmem:[#allocation6 + $0x908] sm:$0xf]
    %v1082 = vld [vmem:[#allocation6 + $0x90c] sm:$0xf]
    %v1083 = vld [vmem:[#allocation6 + $0x910] sm:$0xf]
    %v1084 = vld [vmem:[#allocation6 + $0x914] sm:$0xf]
    %v1085 = vld [vmem:[#allocation6 + $0x918] sm:$0xf]
    %v1086 = vld [vmem:[#allocation6 + $0x91c] sm:$0xf]
    %v1087 = vld [vmem:[#allocation6 + $0x920] sm:$0xf]
    %v1088 = vld [vmem:[#allocation6 + $0x924] sm:$0xf]
    %v1089 = vld [vmem:[#allocation6 + $0x928] sm:$0xf]
    %v1090 = vld [vmem:[#allocation6 + $0x92c] sm:$0xf]
    %v1091 = vld [vmem:[#allocation6 + $0x930] sm:$0xf]
    %v1092 = vld [vmem:[#allocation6 + $0x934] sm:$0xf]
    %v1093 = vld [vmem:[#allocation6 + $0x938] sm:$0xf]
    %v1094 = vld [vmem:[#allocation6 + $0x93c] sm:$0xf]
    %v1095 = vld [vmem:[#allocation6 + $0x940] sm:$0xf]
    %v1096 = vld [vmem:[#allocation6 + $0x944] sm:$0xf]
    %v1097 = vld [vmem:[#allocation6 + $0x948] sm:$0xf]
    %v1098 = vld [vmem:[#allocation6 + $0x94c] sm:$0xf]
    %v1099 = vld [vmem:[#allocation6 + $0x950] sm:$0xf]
    %v1100 = vld [vmem:[#allocation6 + $0x954] sm:$0xf]
    %v1101 = vld [vmem:[#allocation6 + $0x958] sm:$0xf]
    %v1102 = vld [vmem:[#allocation6 + $0x95c] sm:$0xf]
    %v1103 = vld [vmem:[#allocation6 + $0x960] sm:$0xf]
    %v1104 = vld [vmem:[#allocation6 + $0x964] sm:$0xf]
    %v1105 = vld [vmem:[#allocation6 + $0x968] sm:$0xf]
    %v1106 = vld [vmem:[#allocation6 + $0x96c] sm:$0xf]
    %v1107 = vld [vmem:[#allocation6 + $0x970] sm:$0xf]
    %v1108 = vld [vmem:[#allocation6 + $0x974] sm:$0xf]
    %v1109 = vld [vmem:[#allocation6 + $0x978] sm:$0xf]
    %v1110 = vld [vmem:[#allocation6 + $0x97c] sm:$0xf]
    %v1111 = vld [vmem:[#allocation6 + $0x980] sm:$0xf]
    %v1112 = vld [vmem:[#allocation6 + $0x984] sm:$0xf]
    %v1113 = vld [vmem:[#allocation6 + $0x988] sm:$0xf]
    %v1114 = vld [vmem:[#allocation6 + $0x98c] sm:$0xf]
    %v1115 = vld [vmem:[#allocation6 + $0x990] sm:$0xf]
    %v1116 = vld [vmem:[#allocation6 + $0x994] sm:$0xf]
    %v1117 = vld [vmem:[#allocation6 + $0x998] sm:$0xf]
    %v1118 = vld [vmem:[#allocation6 + $0x99c] sm:$0xf]
    %v1119 = vld [vmem:[#allocation6 + $0x9a0] sm:$0xf]
    %v1120 = vld [vmem:[#allocation6 + $0x9a4] sm:$0xf]
    %v1121 = vld [vmem:[#allocation6 + $0x9a8] sm:$0xf]
    %v1122 = vld [vmem:[#allocation6 + $0x9ac] sm:$0xf]
    %v1123 = vld [vmem:[#allocation6 + $0x9b0] sm:$0xf]
    %v1124 = vld [vmem:[#allocation6 + $0x9b4] sm:$0xf]
    %v1125 = vld [vmem:[#allocation6 + $0x9b8] sm:$0xf]
    %v1126 = vld [vmem:[#allocation6 + $0x9bc] sm:$0xf]
    %v1127 = vld [vmem:[#allocation6 + $0x9c0] sm:$0xf]
    %v1128 = vld [vmem:[#allocation6 + $0x9c4] sm:$0xf]
    %v1129 = vld [vmem:[#allocation6 + $0x9c8] sm:$0xf]
    %v1130 = vld [vmem:[#allocation6 + $0x9cc] sm:$0xf]
    %v1131 = vld [vmem:[#allocation6 + $0x9d0] sm:$0xf]
    %v1132 = vld [vmem:[#allocation6 + $0x9d4] sm:$0xf]
    %v1133 = vld [vmem:[#allocation6 + $0x9d8] sm:$0xf]
    %v1134 = vld [vmem:[#allocation6 + $0x9dc] sm:$0xf]
    %v1135 = vld [vmem:[#allocation6 + $0x9e0] sm:$0xf]
    %v1136 = vld [vmem:[#allocation6 + $0x9e4] sm:$0xf]
    %v1137 = vld [vmem:[#allocation6 + $0x9e8] sm:$0xf]
    %v1138 = vld [vmem:[#allocation6 + $0x9ec] sm:$0xf]
    %v1139 = vld [vmem:[#allocation6 + $0x9f0] sm:$0xf]
    %v1140 = vld [vmem:[#allocation6 + $0x9f4] sm:$0xf]
    %v1141 = vld [vmem:[#allocation6 + $0x9f8] sm:$0xf]
    %v1142 = vld [vmem:[#allocation6 + $0x9fc] sm:$0xf]
    %v1143 = vld [vmem:[#allocation6 + $0xa00] sm:$0xf]
    %v1144 = vld [vmem:[#allocation6 + $0xa04] sm:$0xf]
    %v1145 = vld [vmem:[#allocation6 + $0xa08] sm:$0xf]
    %v1146 = vld [vmem:[#allocation6 + $0xa0c] sm:$0xf]
    %v1147 = vld [vmem:[#allocation6 + $0xa10] sm:$0xf]
    %v1148 = vld [vmem:[#allocation6 + $0xa14] sm:$0xf]
    %v1149 = vld [vmem:[#allocation6 + $0xa18] sm:$0xf]
    %v1150 = vld [vmem:[#allocation6 + $0xa1c] sm:$0xf]
    %v1151 = vld [vmem:[#allocation6 + $0xa20] sm:$0xf]
    %v1152 = vld [vmem:[#allocation6 + $0xa24] sm:$0xf]
    %v1153 = vld [vmem:[#allocation6 + $0xa28] sm:$0xf]
    %v1154 = vld [vmem:[#allocation6 + $0xa2c] sm:$0xf]
    %v1155 = vld [vmem:[#allocation6 + $0xa30] sm:$0xf]
    %v1156 = vld [vmem:[#allocation6 + $0xa34] sm:$0xf]
    %v1157 = vld [vmem:[#allocation6 + $0xa38] sm:$0xf]
    %v1158 = vld [vmem:[#allocation6 + $0xa3c] sm:$0xf]
    %v1159 = vld [vmem:[#allocation6 + $0xa40] sm:$0xf]
    %v1160 = vld [vmem:[#allocation6 + $0xa44] sm:$0xf]
    %v1161 = vld [vmem:[#allocation6 + $0xa48] sm:$0xf]
    %v1162 = vld [vmem:[#allocation6 + $0xa4c] sm:$0xf]
    %v1163 = vld [vmem:[#allocation6 + $0xa50] sm:$0xf]
    %v1164 = vld [vmem:[#allocation6 + $0xa54] sm:$0xf]
    %v1165 = vld [vmem:[#allocation6 + $0xa58] sm:$0xf]
    %v1166 = vld [vmem:[#allocation6 + $0xa5c] sm:$0xf]
    %v1167 = vld [vmem:[#allocation6 + $0xa60] sm:$0xf]
    %v1168 = vld [vmem:[#allocation6 + $0xa64] sm:$0xf]
    %v1169 = vld [vmem:[#allocation6 + $0xa68] sm:$0xf]
    %v1170 = vld [vmem:[#allocation6 + $0xa6c] sm:$0xf]
    %v1171 = vld [vmem:[#allocation6 + $0xa70] sm:$0xf]
    %v1172 = vld [vmem:[#allocation6 + $0xa74] sm:$0xf]
    %v1173 = vld [vmem:[#allocation6 + $0xa78] sm:$0xf]
    %v1174 = vld [vmem:[#allocation6 + $0xa7c] sm:$0xf]
    %v1175 = vld [vmem:[#allocation6 + $0xa80] sm:$0xf]
    %v1176 = vld [vmem:[#allocation6 + $0xa84] sm:$0xf]
    %v1177 = vld [vmem:[#allocation6 + $0xa88] sm:$0xf]
    %v1178 = vld [vmem:[#allocation6 + $0xa8c] sm:$0xf]
    %v1179 = vld [vmem:[#allocation6 + $0xa90] sm:$0xf]
    %v1180 = vld [vmem:[#allocation6 + $0xa94] sm:$0xf]
    %v1181 = vld [vmem:[#allocation6 + $0xa98] sm:$0xf]
    %v1182 = vld [vmem:[#allocation6 + $0xa9c] sm:$0xf]
    %v1183 = vld [vmem:[#allocation6 + $0xaa0] sm:$0xf]
    %v1184 = vld [vmem:[#allocation6 + $0xaa4] sm:$0xf]
    %v1185 = vld [vmem:[#allocation6 + $0xaa8] sm:$0xf]
    %v1186 = vld [vmem:[#allocation6 + $0xaac] sm:$0xf]
    %v1187 = vld [vmem:[#allocation6 + $0xab0] sm:$0xf]
    %v1188 = vld [vmem:[#allocation6 + $0xab4] sm:$0xf]
    %v1189 = vld [vmem:[#allocation6 + $0xab8] sm:$0xf]
    %v1190 = vld [vmem:[#allocation6 + $0xabc] sm:$0xf]
    %v1191 = vld [vmem:[#allocation6 + $0xac0] sm:$0xf]
    %v1192 = vld [vmem:[#allocation6 + $0xac4] sm:$0xf]
    %v1193 = vld [vmem:[#allocation6 + $0xac8] sm:$0xf]
    %v1194 = vld [vmem:[#allocation6 + $0xacc] sm:$0xf]
    %v1195 = vld [vmem:[#allocation6 + $0xad0] sm:$0xf]
    %v1196 = vld [vmem:[#allocation6 + $0xad4] sm:$0xf]
    %v1197 = vld [vmem:[#allocation6 + $0xad8] sm:$0xf]
    %v1198 = vld [vmem:[#allocation6 + $0xadc] sm:$0xf]
    %v1199 = vld [vmem:[#allocation6 + $0xae0] sm:$0xf]
    %v1200 = vld [vmem:[#allocation6 + $0xae4] sm:$0xf]
    %v1201 = vld [vmem:[#allocation6 + $0xae8] sm:$0xf]
    %v1202 = vld [vmem:[#allocation6 + $0xaec] sm:$0xf]
    %v1203 = vld [vmem:[#allocation6 + $0xaf0] sm:$0xf]
    %v1204 = vld [vmem:[#allocation6 + $0xaf4] sm:$0xf]
    %v1205 = vld [vmem:[#allocation6 + $0xaf8] sm:$0xf]
    %v1206 = vld [vmem:[#allocation6 + $0xafc] sm:$0xf]
    %v1207 = vld [vmem:[#allocation6 + $0xb00] sm:$0xf]
    %v1208 = vld [vmem:[#allocation6 + $0xb04] sm:$0xf]
    %v1209 = vld [vmem:[#allocation6 + $0xb08] sm:$0xf]
    %v1210 = vld [vmem:[#allocation6 + $0xb0c] sm:$0xf]
    %v1211 = vld [vmem:[#allocation6 + $0xb10] sm:$0xf]
    %v1212 = vld [vmem:[#allocation6 + $0xb14] sm:$0xf]
    %v1213 = vld [vmem:[#allocation6 + $0xb18] sm:$0xf]
    %v1214 = vld [vmem:[#allocation6 + $0xb1c] sm:$0xf]
    %v1215 = vld [vmem:[#allocation6 + $0xb20] sm:$0xf]
    %v1216 = vld [vmem:[#allocation6 + $0xb24] sm:$0xf]
    %v1217 = vld [vmem:[#allocation6 + $0xb28] sm:$0xf]
    %v1218 = vld [vmem:[#allocation6 + $0xb2c] sm:$0xf]
    %v1219 = vld [vmem:[#allocation6 + $0xb30] sm:$0xf]
    %v1220 = vld [vmem:[#allocation6 + $0xb34] sm:$0xf]
    %v1221 = vld [vmem:[#allocation6 + $0xb38] sm:$0xf]
    %v1222 = vld [vmem:[#allocation6 + $0xb3c] sm:$0xf]
    %v1223 = vld [vmem:[#allocation6 + $0xb40] sm:$0xf]
    %v1224 = vld [vmem:[#allocation6 + $0xb44] sm:$0xf]
    %v1225 = vld [vmem:[#allocation6 + $0xb48] sm:$0xf]
    %v1226 = vld [vmem:[#allocation6 + $0xb4c] sm:$0xf]
    %v1227 = vld [vmem:[#allocation6 + $0xb50] sm:$0xf]
    %v1228 = vld [vmem:[#allocation6 + $0xb54] sm:$0xf]
    %v1229 = vld [vmem:[#allocation6 + $0xb58] sm:$0xf]
    %v1230 = vld [vmem:[#allocation6 + $0xb5c] sm:$0xf]
    %v1231 = vld [vmem:[#allocation6 + $0xb60] sm:$0xf]
    %v1232 = vld [vmem:[#allocation6 + $0xb64] sm:$0xf]
    %v1233 = vld [vmem:[#allocation6 + $0xb68] sm:$0xf]
    %v1234 = vld [vmem:[#allocation6 + $0xb6c] sm:$0xf]
    %v1235 = vld [vmem:[#allocation6 + $0xb70] sm:$0xf]
    %v1236 = vld [vmem:[#allocation6 + $0xb74] sm:$0xf]
    %v1237 = vld [vmem:[#allocation6 + $0xb78] sm:$0xf]
    %v1238 = vld [vmem:[#allocation6 + $0xb7c] sm:$0xf]
    %v1239 = vld [vmem:[#allocation6 + $0xb80] sm:$0xf]
    %v1240 = vld [vmem:[#allocation6 + $0xb84] sm:$0xf]
    %v1241 = vld [vmem:[#allocation6 + $0xb88] sm:$0xf]
    %v1242 = vld [vmem:[#allocation6 + $0xb8c] sm:$0xf]
    %v1243 = vld [vmem:[#allocation6 + $0xb90] sm:$0xf]
    %v1244 = vld [vmem:[#allocation6 + $0xb94] sm:$0xf]
    %v1245 = vld [vmem:[#allocation6 + $0xb98] sm:$0xf]
    %v1246 = vld [vmem:[#allocation6 + $0xb9c] sm:$0xf]
    %v1247 = vld [vmem:[#allocation6 + $0xba0] sm:$0xf]
    %v1248 = vld [vmem:[#allocation6 + $0xba4] sm:$0xf]
    %v1249 = vld [vmem:[#allocation6 + $0xba8] sm:$0xf]
    %v1250 = vld [vmem:[#allocation6 + $0xbac] sm:$0xf]
    %v1251 = vld [vmem:[#allocation6 + $0xbb0] sm:$0xf]
    %v1252 = vld [vmem:[#allocation6 + $0xbb4] sm:$0xf]
    %v1253 = vld [vmem:[#allocation6 + $0xbb8] sm:$0xf]
    %v1254 = vld [vmem:[#allocation6 + $0xbbc] sm:$0xf]
    %v1255 = vld [vmem:[#allocation6 + $0xbc0] sm:$0xf]
    %v1256 = vld [vmem:[#allocation6 + $0xbc4] sm:$0xf]
    %v1257 = vld [vmem:[#allocation6 + $0xbc8] sm:$0xf]
    %v1258 = vld [vmem:[#allocation6 + $0xbcc] sm:$0xf]
    %v1259 = vld [vmem:[#allocation6 + $0xbd0] sm:$0xf]
    %v1260 = vld [vmem:[#allocation6 + $0xbd4] sm:$0xf]
    %v1261 = vld [vmem:[#allocation6 + $0xbd8] sm:$0xf]
    %v1262 = vld [vmem:[#allocation6 + $0xbdc] sm:$0xf]
    %v1263 = vld [vmem:[#allocation6 + $0xbe0] sm:$0xf]
    %v1264 = vld [vmem:[#allocation6 + $0xbe4] sm:$0xf]
    %v1265 = vld [vmem:[#allocation6 + $0xbe8] sm:$0xf]
    %v1266 = vld [vmem:[#allocation6 + $0xbec] sm:$0xf]
    %v1267 = vld [vmem:[#allocation6 + $0xbf0] sm:$0xf]
    %v1268 = vld [vmem:[#allocation6 + $0xbf4] sm:$0xf]
    %v1269 = vld [vmem:[#allocation6 + $0xbf8] sm:$0xf]
    %v1270 = vld [vmem:[#allocation6 + $0xbfc] sm:$0xf]
    %v1271 = vld [vmem:[#allocation8] sm:$0x1]
    %v1273 = vperm.slane %v1271, 0
    %v1299 = vunpack.c.l.b16 %v479
    %v1300 = vunpack.c.h.b16 %v479
    %v1301 = vunpack.c.l.b16 %v480
    %v1302 = vunpack.c.h.b16 %v480
    %v1303 = vunpack.c.l.b16 %v481
    %v1304 = vunpack.c.h.b16 %v481
    %v1305 = vunpack.c.l.b16 %v482
    %v1306 = vunpack.c.h.b16 %v482
    %v1307 = vunpack.c.l.b16 %v483
    %v1308 = vunpack.c.h.b16 %v483
    %v1309 = vunpack.c.l.b16 %v484
    %v1310 = vunpack.c.h.b16 %v484
    %v1311 = vunpack.c.l.b16 %v485
    %v1312 = vunpack.c.h.b16 %v485
    %v1313 = vunpack.c.l.b16 %v486
    %v1314 = vunpack.c.h.b16 %v486
    %v1315 = vunpack.c.l.b16 %v487
    %v1316 = vunpack.c.h.b16 %v487
    %v1317 = vunpack.c.l.b16 %v488
    %v1318 = vunpack.c.h.b16 %v488
    %v1319 = vunpack.c.l.b16 %v489
    %v1320 = vunpack.c.h.b16 %v489
    %v1321 = vunpack.c.l.b16 %v490
    %v1322 = vunpack.c.h.b16 %v490
    %v1323 = vunpack.c.l.b16 %v491
    %v1324 = vunpack.c.h.b16 %v491
    %v1325 = vunpack.c.l.b16 %v492
    %v1326 = vunpack.c.h.b16 %v492
    %v1327 = vunpack.c.l.b16 %v493
    %v1328 = vunpack.c.h.b16 %v493
    %v1329 = vunpack.c.l.b16 %v494
    %v1330 = vunpack.c.h.b16 %v494
    %v1331 = vunpack.c.l.b16 %v495
    %v1332 = vunpack.c.h.b16 %v495
    %v1333 = vunpack.c.l.b16 %v496
    %v1334 = vunpack.c.h.b16 %v496
    %v1335 = vunpack.c.l.b16 %v497
    %v1336 = vunpack.c.h.b16 %v497
    %v1337 = vunpack.c.l.b16 %v498
    %v1338 = vunpack.c.h.b16 %v498
    %v1339 = vunpack.c.l.b16 %v499
    %v1340 = vunpack.c.h.b16 %v499
    %v1341 = vunpack.c.l.b16 %v500
    %v1342 = vunpack.c.h.b16 %v500
    %v1343 = vunpack.c.l.b16 %v501
    %v1344 = vunpack.c.h.b16 %v501
    %v1345 = vunpack.c.l.b16 %v502
    %v1346 = vunpack.c.h.b16 %v502
    %v1347 = vpack.c.b16 %v1299, %v1299
    %v1348 = vpack.c.b16 %v1300, %v1300
    %v1349 = vpack.c.b16 %v1301, %v1301
    %v1350 = vpack.c.b16 %v1302, %v1302
    %v1351 = vpack.c.b16 %v1303, %v1303
    %v1352 = vpack.c.b16 %v1304, %v1304
    %v1353 = vpack.c.b16 %v1305, %v1305
    %v1354 = vpack.c.b16 %v1306, %v1306
    %v1355 = vpack.c.b16 %v1307, %v1307
    %v1356 = vpack.c.b16 %v1308, %v1308
    %v1357 = vpack.c.b16 %v1309, %v1309
    %v1358 = vpack.c.b16 %v1310, %v1310
    %v1359 = vpack.c.b16 %v1311, %v1311
    %v1360 = vpack.c.b16 %v1312, %v1312
    %v1361 = vpack.c.b16 %v1313, %v1313
    %v1362 = vpack.c.b16 %v1314, %v1314
    %v1363 = vpack.c.b16 %v1315, %v1315
    %v1364 = vpack.c.b16 %v1316, %v1316
    %v1365 = vpack.c.b16 %v1317, %v1317
    %v1366 = vpack.c.b16 %v1318, %v1318
    %v1367 = vpack.c.b16 %v1319, %v1319
    %v1368 = vpack.c.b16 %v1320, %v1320
    %v1369 = vpack.c.b16 %v1321, %v1321
    %v1370 = vpack.c.b16 %v1322, %v1322
    %v1371 = vpack.c.b16 %v1323, %v1323
    %v1372 = vpack.c.b16 %v1324, %v1324
    %v1373 = vpack.c.b16 %v1325, %v1325
    %v1374 = vpack.c.b16 %v1326, %v1326
    %v1375 = vpack.c.b16 %v1327, %v1327
    %v1376 = vpack.c.b16 %v1328, %v1328
    %v1377 = vpack.c.b16 %v1329, %v1329
    %v1378 = vpack.c.b16 %v1330, %v1330
    %v1379 = vpack.c.b16 %v1331, %v1331
    %v1380 = vpack.c.b16 %v1332, %v1332
    %v1381 = vpack.c.b16 %v1333, %v1333
    %v1382 = vpack.c.b16 %v1334, %v1334
    %v1383 = vpack.c.b16 %v1335, %v1335
    %v1384 = vpack.c.b16 %v1336, %v1336
    %v1385 = vpack.c.b16 %v1337, %v1337
    %v1386 = vpack.c.b16 %v1338, %v1338
    %v1387 = vpack.c.b16 %v1339, %v1339
    %v1388 = vpack.c.b16 %v1340, %v1340
    %v1389 = vpack.c.b16 %v1341, %v1341
    %v1390 = vpack.c.b16 %v1342, %v1342
    %v1391 = vpack.c.b16 %v1343, %v1343
    %v1392 = vpack.c.b16 %v1344, %v1344
    %v1393 = vpack.c.b16 %v1345, %v1345
    %v1394 = vpack.c.b16 %v1346, %v1346
    %v2211 = vunpack.c.l.b16 %v503
    %v2212 = vunpack.c.l.b16 %v504
    %v2213 = vunpack.c.l.b16 %v505
    %v2214 = vunpack.c.l.b16 %v506
    %v2215 = vunpack.c.l.b16 %v507
    %v2216 = vunpack.c.l.b16 %v508
    %v2217 = vunpack.c.l.b16 %v509
    %v2218 = vunpack.c.l.b16 %v510
    %v2219 = vunpack.c.l.b16 %v511
    %v2220 = vunpack.c.l.b16 %v512
    %v2221 = vunpack.c.l.b16 %v513
    %v2222 = vunpack.c.l.b16 %v514
    %v2223 = vunpack.c.l.b16 %v515
    %v2224 = vunpack.c.l.b16 %v516
    %v2225 = vunpack.c.l.b16 %v517
    %v2226 = vunpack.c.l.b16 %v518
    %v2227 = vunpack.c.l.b16 %v519
    %v2228 = vunpack.c.l.b16 %v520
    %v2229 = vunpack.c.l.b16 %v521
    %v2230 = vunpack.c.l.b16 %v522
    %v2231 = vunpack.c.l.b16 %v523
    %v2232 = vunpack.c.l.b16 %v524
    %v2233 = vunpack.c.l.b16 %v525
    %v2234 = vunpack.c.l.b16 %v526
    %v2235 = vunpack.c.l.b16 %v527
    %v2236 = vunpack.c.l.b16 %v528
    %v2237 = vunpack.c.l.b16 %v529
    %v2238 = vunpack.c.l.b16 %v530
    %v2239 = vunpack.c.l.b16 %v531
    %v2240 = vunpack.c.l.b16 %v532
    %v2241 = vunpack.c.l.b16 %v533
    %v2242 = vunpack.c.l.b16 %v534
    %v2243 = vunpack.c.l.b16 %v535
    %v2244 = vunpack.c.l.b16 %v536
    %v2245 = vunpack.c.l.b16 %v537
    %v2246 = vunpack.c.l.b16 %v538
    %v2247 = vunpack.c.l.b16 %v539
    %v2248 = vunpack.c.l.b16 %v540
    %v2249 = vunpack.c.l.b16 %v541
    %v2250 = vunpack.c.l.b16 %v542
    %v2251 = vunpack.c.l.b16 %v543
    %v2252 = vunpack.c.l.b16 %v544
    %v2253 = vunpack.c.l.b16 %v545
    %v2254 = vunpack.c.l.b16 %v546
    %v2255 = vunpack.c.l.b16 %v547
    %v2256 = vunpack.c.l.b16 %v548
    %v2257 = vunpack.c.l.b16 %v549
    %v2258 = vunpack.c.l.b16 %v550
    %v2259 = vunpack.c.l.b16 %v551
    %v2260 = vunpack.c.l.b16 %v552
    %v2261 = vunpack.c.l.b16 %v553
    %v2262 = vunpack.c.l.b16 %v554
    %v2263 = vunpack.c.l.b16 %v555
    %v2264 = vunpack.c.l.b16 %v556
    %v2265 = vunpack.c.l.b16 %v557
    %v2266 = vunpack.c.l.b16 %v558
    %v2267 = vunpack.c.l.b16 %v559
    %v2268 = vunpack.c.l.b16 %v560
    %v2269 = vunpack.c.l.b16 %v561
    %v2270 = vunpack.c.l.b16 %v562
    %v2271 = vunpack.c.l.b16 %v563
    %v2272 = vunpack.c.l.b16 %v564
    %v2273 = vunpack.c.l.b16 %v565
    %v2274 = vunpack.c.l.b16 %v566
    %v2275 = vunpack.c.l.b16 %v567
    %v2276 = vunpack.c.l.b16 %v568
    %v2277 = vunpack.c.l.b16 %v569
    %v2278 = vunpack.c.l.b16 %v570
    %v2279 = vunpack.c.l.b16 %v571
    %v2280 = vunpack.c.l.b16 %v572
    %v2281 = vunpack.c.l.b16 %v573
    %v2282 = vunpack.c.l.b16 %v574
    %v2283 = vunpack.c.l.b16 %v575
    %v2284 = vunpack.c.l.b16 %v576
    %v2285 = vunpack.c.l.b16 %v577
    %v2286 = vunpack.c.l.b16 %v578
    %v2287 = vunpack.c.l.b16 %v579
    %v2288 = vunpack.c.l.b16 %v580
    %v2289 = vunpack.c.l.b16 %v581
    %v2290 = vunpack.c.l.b16 %v582
    %v2291 = vunpack.c.l.b16 %v583
    %v2292 = vunpack.c.l.b16 %v584
    %v2293 = vunpack.c.l.b16 %v585
    %v2294 = vunpack.c.l.b16 %v586
    %v2295 = vunpack.c.l.b16 %v587
    %v2296 = vunpack.c.l.b16 %v588
    %v2297 = vunpack.c.l.b16 %v589
    %v2298 = vunpack.c.l.b16 %v590
    %v2299 = vunpack.c.l.b16 %v591
    %v2300 = vunpack.c.l.b16 %v592
    %v2301 = vunpack.c.l.b16 %v593
    %v2302 = vunpack.c.l.b16 %v594
    %v2303 = vunpack.c.l.b16 %v595
    %v2304 = vunpack.c.l.b16 %v596
    %v2305 = vunpack.c.l.b16 %v597
    %v2306 = vunpack.c.l.b16 %v598
    %v2307 = vunpack.c.l.b16 %v599
    %v2308 = vunpack.c.l.b16 %v600
    %v2309 = vunpack.c.l.b16 %v601
    %v2310 = vunpack.c.l.b16 %v602
    %v2311 = vunpack.c.l.b16 %v603
    %v2312 = vunpack.c.l.b16 %v604
    %v2313 = vunpack.c.l.b16 %v605
    %v2314 = vunpack.c.l.b16 %v606
    %v2315 = vunpack.c.l.b16 %v607
    %v2316 = vunpack.c.l.b16 %v608
    %v2317 = vunpack.c.l.b16 %v609
    %v2318 = vunpack.c.l.b16 %v610
    %v2319 = vunpack.c.l.b16 %v611
    %v2320 = vunpack.c.l.b16 %v612
    %v2321 = vunpack.c.l.b16 %v613
    %v2322 = vunpack.c.l.b16 %v614
    %v2323 = vunpack.c.l.b16 %v615
    %v2324 = vunpack.c.l.b16 %v616
    %v2325 = vunpack.c.l.b16 %v617
    %v2326 = vunpack.c.l.b16 %v618
    %v2327 = vunpack.c.l.b16 %v619
    %v2328 = vunpack.c.l.b16 %v620
    %v2329 = vunpack.c.l.b16 %v621
    %v2330 = vunpack.c.l.b16 %v622
    %v2331 = vunpack.c.l.b16 %v623
    %v2332 = vunpack.c.l.b16 %v624
    %v2333 = vunpack.c.l.b16 %v625
    %v2334 = vunpack.c.l.b16 %v626
    %v2335 = vunpack.c.l.b16 %v627
    %v2336 = vunpack.c.l.b16 %v628
    %v2337 = vunpack.c.l.b16 %v629
    %v2338 = vunpack.c.l.b16 %v630
    %v2339 = vunpack.c.l.b16 %v631
    %v2340 = vunpack.c.l.b16 %v632
    %v2341 = vunpack.c.l.b16 %v633
    %v2342 = vunpack.c.l.b16 %v634
    %v2343 = vunpack.c.l.b16 %v635
    %v2344 = vunpack.c.l.b16 %v636
    %v2345 = vunpack.c.l.b16 %v637
    %v2346 = vunpack.c.l.b16 %v638
    %v2347 = vunpack.c.l.b16 %v639
    %v2348 = vunpack.c.l.b16 %v640
    %v2349 = vunpack.c.l.b16 %v641
    %v2350 = vunpack.c.l.b16 %v642
    %v2351 = vunpack.c.l.b16 %v643
    %v2352 = vunpack.c.l.b16 %v644
    %v2353 = vunpack.c.l.b16 %v645
    %v2354 = vunpack.c.l.b16 %v646
    %v2355 = vunpack.c.l.b16 %v647
    %v2356 = vunpack.c.l.b16 %v648
    %v2357 = vunpack.c.l.b16 %v649
    %v2358 = vunpack.c.l.b16 %v650
    %v2359 = vunpack.c.l.b16 %v651
    %v2360 = vunpack.c.l.b16 %v652
    %v2361 = vunpack.c.l.b16 %v653
    %v2362 = vunpack.c.l.b16 %v654
    %v2363 = vunpack.c.l.b16 %v655
    %v2364 = vunpack.c.l.b16 %v656
    %v2365 = vunpack.c.l.b16 %v657
    %v2366 = vunpack.c.l.b16 %v658
    %v2367 = vunpack.c.l.b16 %v659
    %v2368 = vunpack.c.l.b16 %v660
    %v2369 = vunpack.c.l.b16 %v661
    %v2370 = vunpack.c.l.b16 %v662
    %v2371 = vunpack.c.l.b16 %v663
    %v2372 = vunpack.c.l.b16 %v664
    %v2373 = vunpack.c.l.b16 %v665
    %v2374 = vunpack.c.l.b16 %v666
    %v2375 = vunpack.c.l.b16 %v667
    %v2376 = vunpack.c.l.b16 %v668
    %v2377 = vunpack.c.l.b16 %v669
    %v2378 = vunpack.c.l.b16 %v670
    %v2379 = vunpack.c.l.b16 %v671
    %v2380 = vunpack.c.l.b16 %v672
    %v2381 = vunpack.c.l.b16 %v673
    %v2382 = vunpack.c.l.b16 %v674
    %v2383 = vunpack.c.l.b16 %v675
    %v2384 = vunpack.c.l.b16 %v676
    %v2385 = vunpack.c.l.b16 %v677
    %v2386 = vunpack.c.l.b16 %v678
    %v2387 = vunpack.c.l.b16 %v679
    %v2388 = vunpack.c.l.b16 %v680
    %v2389 = vunpack.c.l.b16 %v681
    %v2390 = vunpack.c.l.b16 %v682
    %v2391 = vunpack.c.l.b16 %v683
    %v2392 = vunpack.c.l.b16 %v684
    %v2393 = vunpack.c.l.b16 %v685
    %v2394 = vunpack.c.l.b16 %v686
    %v2395 = vunpack.c.l.b16 %v687
    %v2396 = vunpack.c.l.b16 %v688
    %v2397 = vunpack.c.l.b16 %v689
    %v2398 = vunpack.c.l.b16 %v690
    %v2399 = vunpack.c.l.b16 %v691
    %v2400 = vunpack.c.l.b16 %v692
    %v2401 = vunpack.c.l.b16 %v693
    %v2402 = vunpack.c.l.b16 %v694
    %v2403 = vunpack.c.l.b16 %v695
    %v2404 = vunpack.c.l.b16 %v696
    %v2405 = vunpack.c.l.b16 %v697
    %v2406 = vunpack.c.l.b16 %v698
    %v2407 = vunpack.c.l.b16 %v699
    %v2408 = vunpack.c.l.b16 %v700
    %v2409 = vunpack.c.l.b16 %v701
    %v2410 = vunpack.c.l.b16 %v702
    %v2411 = vunpack.c.l.b16 %v703
    %v2412 = vunpack.c.l.b16 %v704
    %v2413 = vunpack.c.l.b16 %v705
    %v2414 = vunpack.c.l.b16 %v706
    %v2415 = vunpack.c.l.b16 %v707
    %v2416 = vunpack.c.l.b16 %v708
    %v2417 = vunpack.c.l.b16 %v709
    %v2418 = vunpack.c.l.b16 %v710
    %v2419 = vunpack.c.l.b16 %v711
    %v2420 = vunpack.c.l.b16 %v712
    %v2421 = vunpack.c.l.b16 %v713
    %v2422 = vunpack.c.l.b16 %v714
    %v2423 = vunpack.c.l.b16 %v715
    %v2424 = vunpack.c.l.b16 %v716
    %v2425 = vunpack.c.l.b16 %v717
    %v2426 = vunpack.c.l.b16 %v718
    %v2427 = vunpack.c.l.b16 %v719
    %v2428 = vunpack.c.l.b16 %v720
    %v2429 = vunpack.c.l.b16 %v721
    %v2430 = vunpack.c.l.b16 %v722
    %v2431 = vunpack.c.l.b16 %v723
    %v2432 = vunpack.c.l.b16 %v724
    %v2433 = vunpack.c.l.b16 %v725
    %v2434 = vunpack.c.l.b16 %v726
    %v2435 = vunpack.c.l.b16 %v727
    %v2436 = vunpack.c.l.b16 %v728
    %v2437 = vunpack.c.l.b16 %v729
    %v2438 = vunpack.c.l.b16 %v730
    %v2439 = vunpack.c.l.b16 %v731
    %v2440 = vunpack.c.l.b16 %v732
    %v2441 = vunpack.c.l.b16 %v733
    %v2442 = vunpack.c.l.b16 %v734
    %v2443 = vunpack.c.l.b16 %v735
    %v2444 = vunpack.c.l.b16 %v736
    %v2445 = vunpack.c.l.b16 %v737
    %v2446 = vunpack.c.l.b16 %v738
    %v2447 = vunpack.c.l.b16 %v739
    %v2448 = vunpack.c.l.b16 %v740
    %v2449 = vunpack.c.l.b16 %v741
    %v2450 = vunpack.c.l.b16 %v742
    %v2451 = vunpack.c.l.b16 %v743
    %v2452 = vunpack.c.l.b16 %v744
    %v2453 = vunpack.c.l.b16 %v745
    %v2454 = vunpack.c.l.b16 %v746
    %v2455 = vunpack.c.l.b16 %v747
    %v2456 = vunpack.c.l.b16 %v748
    %v2457 = vunpack.c.l.b16 %v749
    %v2458 = vunpack.c.l.b16 %v750
    %v2459 = vunpack.c.l.b16 %v751
    %v2460 = vunpack.c.l.b16 %v752
    %v2461 = vunpack.c.l.b16 %v753
    %v2462 = vunpack.c.l.b16 %v754
    %v2463 = vunpack.c.l.b16 %v755
    %v2464 = vunpack.c.l.b16 %v756
    %v2465 = vunpack.c.l.b16 %v757
    %v2466 = vunpack.c.l.b16 %v758
    %v2467 = vunpack.c.l.b16 %v759
    %v2468 = vunpack.c.l.b16 %v760
    %v2469 = vunpack.c.l.b16 %v761
    %v2470 = vunpack.c.l.b16 %v762
    %v2471 = vunpack.c.l.b16 %v763
    %v2472 = vunpack.c.l.b16 %v764
    %v2473 = vunpack.c.l.b16 %v765
    %v2474 = vunpack.c.l.b16 %v766
    %v2475 = vunpack.c.l.b16 %v767
    %v2476 = vunpack.c.l.b16 %v768
    %v2477 = vunpack.c.l.b16 %v769
    %v2478 = vunpack.c.l.b16 %v770
    %v2479 = vunpack.c.l.b16 %v771
    %v2480 = vunpack.c.l.b16 %v772
    %v2481 = vunpack.c.l.b16 %v773
    %v2482 = vunpack.c.l.b16 %v774
    %v2483 = vunpack.c.l.b16 %v775
    %v2484 = vunpack.c.l.b16 %v776
    %v2485 = vunpack.c.l.b16 %v777
    %v2486 = vunpack.c.l.b16 %v778
    %v2487 = vunpack.c.l.b16 %v779
    %v2488 = vunpack.c.l.b16 %v780
    %v2489 = vunpack.c.l.b16 %v781
    %v2490 = vunpack.c.l.b16 %v782
    %v2491 = vunpack.c.l.b16 %v783
    %v2492 = vunpack.c.l.b16 %v784
    %v2493 = vunpack.c.l.b16 %v785
    %v2494 = vunpack.c.l.b16 %v786
    %v2495 = vunpack.c.l.b16 %v787
    %v2496 = vunpack.c.l.b16 %v788
    %v2497 = vunpack.c.l.b16 %v789
    %v2498 = vunpack.c.l.b16 %v790
    %v2499 = vunpack.c.l.b16 %v791
    %v2500 = vunpack.c.l.b16 %v792
    %v2501 = vunpack.c.l.b16 %v793
    %v2502 = vunpack.c.l.b16 %v794
    %v2503 = vunpack.c.l.b16 %v795
    %v2504 = vunpack.c.l.b16 %v796
    %v2505 = vunpack.c.l.b16 %v797
    %v2506 = vunpack.c.l.b16 %v798
    %v2507 = vunpack.c.l.b16 %v799
    %v2508 = vunpack.c.l.b16 %v800
    %v2509 = vunpack.c.l.b16 %v801
    %v2510 = vunpack.c.l.b16 %v802
    %v2511 = vunpack.c.l.b16 %v803
    %v2512 = vunpack.c.l.b16 %v804
    %v2513 = vunpack.c.l.b16 %v805
    %v2514 = vunpack.c.l.b16 %v806
    %v2515 = vunpack.c.l.b16 %v807
    %v2516 = vunpack.c.l.b16 %v808
    %v2517 = vunpack.c.l.b16 %v809
    %v2518 = vunpack.c.l.b16 %v810
    %v2519 = vunpack.c.l.b16 %v811
    %v2520 = vunpack.c.l.b16 %v812
    %v2521 = vunpack.c.l.b16 %v813
    %v2522 = vunpack.c.l.b16 %v814
    %v2523 = vunpack.c.l.b16 %v815
    %v2524 = vunpack.c.l.b16 %v816
    %v2525 = vunpack.c.l.b16 %v817
    %v2526 = vunpack.c.l.b16 %v818
    %v2527 = vunpack.c.l.b16 %v819
    %v2528 = vunpack.c.l.b16 %v820
    %v2529 = vunpack.c.l.b16 %v821
    %v2530 = vunpack.c.l.b16 %v822
    %v2531 = vunpack.c.l.b16 %v823
    %v2532 = vunpack.c.l.b16 %v824
    %v2533 = vunpack.c.l.b16 %v825
    %v2534 = vunpack.c.l.b16 %v826
    %v2535 = vunpack.c.l.b16 %v827
    %v2536 = vunpack.c.l.b16 %v828
    %v2537 = vunpack.c.l.b16 %v829
    %v2538 = vunpack.c.l.b16 %v830
    %v2539 = vunpack.c.l.b16 %v831
    %v2540 = vunpack.c.l.b16 %v832
    %v2541 = vunpack.c.l.b16 %v833
    %v2542 = vunpack.c.l.b16 %v834
    %v2543 = vunpack.c.l.b16 %v835
    %v2544 = vunpack.c.l.b16 %v836
    %v2545 = vunpack.c.l.b16 %v837
    %v2546 = vunpack.c.l.b16 %v838
    %v2547 = vunpack.c.l.b16 %v839
    %v2548 = vunpack.c.l.b16 %v840
    %v2549 = vunpack.c.l.b16 %v841
    %v2550 = vunpack.c.l.b16 %v842
    %v2551 = vunpack.c.l.b16 %v843
    %v2552 = vunpack.c.l.b16 %v844
    %v2553 = vunpack.c.l.b16 %v845
    %v2554 = vunpack.c.l.b16 %v846
    %v2555 = vunpack.c.l.b16 %v847
    %v2556 = vunpack.c.l.b16 %v848
    %v2557 = vunpack.c.l.b16 %v849
    %v2558 = vunpack.c.l.b16 %v850
    %v2559 = vunpack.c.l.b16 %v851
    %v2560 = vunpack.c.l.b16 %v852
    %v2561 = vunpack.c.l.b16 %v853
    %v2562 = vunpack.c.l.b16 %v854
    %v2563 = vunpack.c.l.b16 %v855
    %v2564 = vunpack.c.l.b16 %v856
    %v2565 = vunpack.c.l.b16 %v857
    %v2566 = vunpack.c.l.b16 %v858
    %v2567 = vunpack.c.l.b16 %v859
    %v2568 = vunpack.c.l.b16 %v860
    %v2569 = vunpack.c.l.b16 %v861
    %v2570 = vunpack.c.l.b16 %v862
    %v2571 = vunpack.c.l.b16 %v863
    %v2572 = vunpack.c.l.b16 %v864
    %v2573 = vunpack.c.l.b16 %v865
    %v2574 = vunpack.c.l.b16 %v866
    %v2575 = vunpack.c.l.b16 %v867
    %v2576 = vunpack.c.l.b16 %v868
    %v2577 = vunpack.c.l.b16 %v869
    %v2578 = vunpack.c.l.b16 %v870
    %v2579 = vunpack.c.l.b16 %v871
    %v2580 = vunpack.c.l.b16 %v872
    %v2581 = vunpack.c.l.b16 %v873
    %v2582 = vunpack.c.l.b16 %v874
    %v2583 = vunpack.c.l.b16 %v875
    %v2584 = vunpack.c.l.b16 %v876
    %v2585 = vunpack.c.l.b16 %v877
    %v2586 = vunpack.c.l.b16 %v878
    %v2587 = vunpack.c.l.b16 %v879
    %v2588 = vunpack.c.l.b16 %v880
    %v2589 = vunpack.c.l.b16 %v881
    %v2590 = vunpack.c.l.b16 %v882
    %v2591 = vunpack.c.l.b16 %v883
    %v2592 = vunpack.c.l.b16 %v884
    %v2593 = vunpack.c.l.b16 %v885
    %v2594 = vunpack.c.l.b16 %v886
    %v2595 = vunpack.c.l.b16 %v887
    %v2596 = vunpack.c.l.b16 %v888
    %v2597 = vunpack.c.l.b16 %v889
    %v2598 = vunpack.c.l.b16 %v890
    %v2599 = vunpack.c.l.b16 %v891
    %v2600 = vunpack.c.l.b16 %v892
    %v2601 = vunpack.c.l.b16 %v893
    %v2602 = vunpack.c.l.b16 %v894
    %v2603 = vunpack.c.l.b16 %v895
    %v2604 = vunpack.c.l.b16 %v896
    %v2605 = vunpack.c.l.b16 %v897
    %v2606 = vunpack.c.l.b16 %v898
    %v2607 = vunpack.c.l.b16 %v899
    %v2608 = vunpack.c.l.b16 %v900
    %v2609 = vunpack.c.l.b16 %v901
    %v2610 = vunpack.c.l.b16 %v902
    %v2611 = vunpack.c.l.b16 %v903
    %v2612 = vunpack.c.l.b16 %v904
    %v2613 = vunpack.c.l.b16 %v905
    %v2614 = vunpack.c.l.b16 %v906
    %v2615 = vunpack.c.l.b16 %v907
    %v2616 = vunpack.c.l.b16 %v908
    %v2617 = vunpack.c.l.b16 %v909
    %v2618 = vunpack.c.l.b16 %v910
    %v2619 = vunpack.c.l.b16 %v911
    %v2620 = vunpack.c.l.b16 %v912
    %v2621 = vunpack.c.l.b16 %v913
    %v2622 = vunpack.c.l.b16 %v914
    %v2623 = vunpack.c.l.b16 %v915
    %v2624 = vunpack.c.l.b16 %v916
    %v2625 = vunpack.c.l.b16 %v917
    %v2626 = vunpack.c.l.b16 %v918
    %v2627 = vunpack.c.l.b16 %v919
    %v2628 = vunpack.c.l.b16 %v920
    %v2629 = vunpack.c.l.b16 %v921
    %v2630 = vunpack.c.l.b16 %v922
    %v2631 = vunpack.c.l.b16 %v923
    %v2632 = vunpack.c.l.b16 %v924
    %v2633 = vunpack.c.l.b16 %v925
    %v2634 = vunpack.c.l.b16 %v926
    %v2635 = vunpack.c.l.b16 %v927
    %v2636 = vunpack.c.l.b16 %v928
    %v2637 = vunpack.c.l.b16 %v929
    %v2638 = vunpack.c.l.b16 %v930
    %v2639 = vunpack.c.l.b16 %v931
    %v2640 = vunpack.c.l.b16 %v932
    %v2641 = vunpack.c.l.b16 %v933
    %v2642 = vunpack.c.l.b16 %v934
    %v2643 = vunpack.c.l.b16 %v935
    %v2644 = vunpack.c.l.b16 %v936
    %v2645 = vunpack.c.l.b16 %v937
    %v2646 = vunpack.c.l.b16 %v938
    %v2647 = vunpack.c.l.b16 %v939
    %v2648 = vunpack.c.l.b16 %v940
    %v2649 = vunpack.c.l.b16 %v941
    %v2650 = vunpack.c.l.b16 %v942
    %v2651 = vunpack.c.l.b16 %v943
    %v2652 = vunpack.c.l.b16 %v944
    %v2653 = vunpack.c.l.b16 %v945
    %v2654 = vunpack.c.l.b16 %v946
    %v2655 = vunpack.c.l.b16 %v947
    %v2656 = vunpack.c.l.b16 %v948
    %v2657 = vunpack.c.l.b16 %v949
    %v2658 = vunpack.c.l.b16 %v950
    %v2659 = vunpack.c.l.b16 %v951
    %v2660 = vunpack.c.l.b16 %v952
    %v2661 = vunpack.c.l.b16 %v953
    %v2662 = vunpack.c.l.b16 %v954
    %v2663 = vunpack.c.l.b16 %v955
    %v2664 = vunpack.c.l.b16 %v956
    %v2665 = vunpack.c.l.b16 %v957
    %v2666 = vunpack.c.l.b16 %v958
    %v2667 = vunpack.c.l.b16 %v959
    %v2668 = vunpack.c.l.b16 %v960
    %v2669 = vunpack.c.l.b16 %v961
    %v2670 = vunpack.c.l.b16 %v962
    %v2671 = vunpack.c.l.b16 %v963
    %v2672 = vunpack.c.l.b16 %v964
    %v2673 = vunpack.c.l.b16 %v965
    %v2674 = vunpack.c.l.b16 %v966
    %v2675 = vunpack.c.l.b16 %v967
    %v2676 = vunpack.c.l.b16 %v968
    %v2677 = vunpack.c.l.b16 %v969
    %v2678 = vunpack.c.l.b16 %v970
    %v2679 = vunpack.c.l.b16 %v971
    %v2680 = vunpack.c.l.b16 %v972
    %v2681 = vunpack.c.l.b16 %v973
    %v2682 = vunpack.c.l.b16 %v974
    %v2683 = vunpack.c.l.b16 %v975
    %v2684 = vunpack.c.l.b16 %v976
    %v2685 = vunpack.c.l.b16 %v977
    %v2686 = vunpack.c.l.b16 %v978
    %v2687 = vunpack.c.l.b16 %v979
    %v2688 = vunpack.c.l.b16 %v980
    %v2689 = vunpack.c.l.b16 %v981
    %v2690 = vunpack.c.l.b16 %v982
    %v2691 = vunpack.c.l.b16 %v983
    %v2692 = vunpack.c.l.b16 %v984
    %v2693 = vunpack.c.l.b16 %v985
    %v2694 = vunpack.c.l.b16 %v986
    %v2695 = vunpack.c.l.b16 %v987
    %v2696 = vunpack.c.l.b16 %v988
    %v2697 = vunpack.c.l.b16 %v989
    %v2698 = vunpack.c.l.b16 %v990
    %v2699 = vunpack.c.l.b16 %v991
    %v2700 = vunpack.c.l.b16 %v992
    %v2701 = vunpack.c.l.b16 %v993
    %v2702 = vunpack.c.l.b16 %v994
    %v2703 = vunpack.c.l.b16 %v995
    %v2704 = vunpack.c.l.b16 %v996
    %v2705 = vunpack.c.l.b16 %v997
    %v2706 = vunpack.c.l.b16 %v998
    %v2707 = vunpack.c.l.b16 %v999
    %v2708 = vunpack.c.l.b16 %v1000
    %v2709 = vunpack.c.l.b16 %v1001
    %v2710 = vunpack.c.l.b16 %v1002
    %v2711 = vunpack.c.l.b16 %v1003
    %v2712 = vunpack.c.l.b16 %v1004
    %v2713 = vunpack.c.l.b16 %v1005
    %v2714 = vunpack.c.l.b16 %v1006
    %v2715 = vunpack.c.l.b16 %v1007
    %v2716 = vunpack.c.l.b16 %v1008
    %v2717 = vunpack.c.l.b16 %v1009
    %v2718 = vunpack.c.l.b16 %v1010
    %v2719 = vunpack.c.l.b16 %v1011
    %v2720 = vunpack.c.l.b16 %v1012
    %v2721 = vunpack.c.l.b16 %v1013
    %v2722 = vunpack.c.l.b16 %v1014
    %v2723 = vunpack.c.l.b16 %v1015
    %v2724 = vunpack.c.l.b16 %v1016
    %v2725 = vunpack.c.l.b16 %v1017
    %v2726 = vunpack.c.l.b16 %v1018
    %v2727 = vunpack.c.l.b16 %v1019
    %v2728 = vunpack.c.l.b16 %v1020
    %v2729 = vunpack.c.l.b16 %v1021
    %v2730 = vunpack.c.l.b16 %v1022
    %v2731 = vunpack.c.l.b16 %v1023
    %v2732 = vunpack.c.l.b16 %v1024
    %v2733 = vunpack.c.l.b16 %v1025
    %v2734 = vunpack.c.l.b16 %v1026
    %v2735 = vunpack.c.l.b16 %v1027
    %v2736 = vunpack.c.l.b16 %v1028
    %v2737 = vunpack.c.l.b16 %v1029
    %v2738 = vunpack.c.l.b16 %v1030
    %v2739 = vunpack.c.l.b16 %v1031
    %v2740 = vunpack.c.l.b16 %v1032
    %v2741 = vunpack.c.l.b16 %v1033
    %v2742 = vunpack.c.l.b16 %v1034
    %v2743 = vunpack.c.l.b16 %v1035
    %v2744 = vunpack.c.l.b16 %v1036
    %v2745 = vunpack.c.l.b16 %v1037
    %v2746 = vunpack.c.l.b16 %v1038
    %v2747 = vunpack.c.l.b16 %v1039
    %v2748 = vunpack.c.l.b16 %v1040
    %v2749 = vunpack.c.l.b16 %v1041
    %v2750 = vunpack.c.l.b16 %v1042
    %v2751 = vunpack.c.l.b16 %v1043
    %v2752 = vunpack.c.l.b16 %v1044
    %v2753 = vunpack.c.l.b16 %v1045
    %v2754 = vunpack.c.l.b16 %v1046
    %v2755 = vunpack.c.l.b16 %v1047
    %v2756 = vunpack.c.l.b16 %v1048
    %v2757 = vunpack.c.l.b16 %v1049
    %v2758 = vunpack.c.l.b16 %v1050
    %v2759 = vunpack.c.l.b16 %v1051
    %v2760 = vunpack.c.l.b16 %v1052
    %v2761 = vunpack.c.l.b16 %v1053
    %v2762 = vunpack.c.l.b16 %v1054
    %v2763 = vunpack.c.l.b16 %v1055
    %v2764 = vunpack.c.l.b16 %v1056
    %v2765 = vunpack.c.l.b16 %v1057
    %v2766 = vunpack.c.l.b16 %v1058
    %v2767 = vunpack.c.l.b16 %v1059
    %v2768 = vunpack.c.l.b16 %v1060
    %v2769 = vunpack.c.l.b16 %v1061
    %v2770 = vunpack.c.l.b16 %v1062
    %v2771 = vunpack.c.l.b16 %v1063
    %v2772 = vunpack.c.l.b16 %v1064
    %v2773 = vunpack.c.l.b16 %v1065
    %v2774 = vunpack.c.l.b16 %v1066
    %v2775 = vunpack.c.l.b16 %v1067
    %v2776 = vunpack.c.l.b16 %v1068
    %v2777 = vunpack.c.l.b16 %v1069
    %v2778 = vunpack.c.l.b16 %v1070
    %v2779 = vunpack.c.l.b16 %v1071
    %v2780 = vunpack.c.l.b16 %v1072
    %v2781 = vunpack.c.l.b16 %v1073
    %v2782 = vunpack.c.l.b16 %v1074
    %v2783 = vunpack.c.l.b16 %v1075
    %v2784 = vunpack.c.l.b16 %v1076
    %v2785 = vunpack.c.l.b16 %v1077
    %v2786 = vunpack.c.l.b16 %v1078
    %v2787 = vunpack.c.l.b16 %v1079
    %v2788 = vunpack.c.l.b16 %v1080
    %v2789 = vunpack.c.l.b16 %v1081
    %v2790 = vunpack.c.l.b16 %v1082
    %v2791 = vunpack.c.l.b16 %v1083
    %v2792 = vunpack.c.l.b16 %v1084
    %v2793 = vunpack.c.l.b16 %v1085
    %v2794 = vunpack.c.l.b16 %v1086
    %v2795 = vunpack.c.l.b16 %v1087
    %v2796 = vunpack.c.l.b16 %v1088
    %v2797 = vunpack.c.l.b16 %v1089
    %v2798 = vunpack.c.l.b16 %v1090
    %v2799 = vunpack.c.l.b16 %v1091
    %v2800 = vunpack.c.l.b16 %v1092
    %v2801 = vunpack.c.l.b16 %v1093
    %v2802 = vunpack.c.l.b16 %v1094
    %v2803 = vunpack.c.l.b16 %v1095
    %v2804 = vunpack.c.l.b16 %v1096
    %v2805 = vunpack.c.l.b16 %v1097
    %v2806 = vunpack.c.l.b16 %v1098
    %v2807 = vunpack.c.l.b16 %v1099
    %v2808 = vunpack.c.l.b16 %v1100
    %v2809 = vunpack.c.l.b16 %v1101
    %v2810 = vunpack.c.l.b16 %v1102
    %v2811 = vunpack.c.l.b16 %v1103
    %v2812 = vunpack.c.l.b16 %v1104
    %v2813 = vunpack.c.l.b16 %v1105
    %v2814 = vunpack.c.l.b16 %v1106
    %v2815 = vunpack.c.l.b16 %v1107
    %v2816 = vunpack.c.l.b16 %v1108
    %v2817 = vunpack.c.l.b16 %v1109
    %v2818 = vunpack.c.l.b16 %v1110
    %v2819 = vunpack.c.l.b16 %v1111
    %v2820 = vunpack.c.l.b16 %v1112
    %v2821 = vunpack.c.l.b16 %v1113
    %v2822 = vunpack.c.l.b16 %v1114
    %v2823 = vunpack.c.l.b16 %v1115
    %v2824 = vunpack.c.l.b16 %v1116
    %v2825 = vunpack.c.l.b16 %v1117
    %v2826 = vunpack.c.l.b16 %v1118
    %v2827 = vunpack.c.l.b16 %v1119
    %v2828 = vunpack.c.l.b16 %v1120
    %v2829 = vunpack.c.l.b16 %v1121
    %v2830 = vunpack.c.l.b16 %v1122
    %v2831 = vunpack.c.l.b16 %v1123
    %v2832 = vunpack.c.l.b16 %v1124
    %v2833 = vunpack.c.l.b16 %v1125
    %v2834 = vunpack.c.l.b16 %v1126
    %v2835 = vunpack.c.l.b16 %v1127
    %v2836 = vunpack.c.l.b16 %v1128
    %v2837 = vunpack.c.l.b16 %v1129
    %v2838 = vunpack.c.l.b16 %v1130
    %v2839 = vunpack.c.l.b16 %v1131
    %v2840 = vunpack.c.l.b16 %v1132
    %v2841 = vunpack.c.l.b16 %v1133
    %v2842 = vunpack.c.l.b16 %v1134
    %v2843 = vunpack.c.l.b16 %v1135
    %v2844 = vunpack.c.l.b16 %v1136
    %v2845 = vunpack.c.l.b16 %v1137
    %v2846 = vunpack.c.l.b16 %v1138
    %v2847 = vunpack.c.l.b16 %v1139
    %v2848 = vunpack.c.l.b16 %v1140
    %v2849 = vunpack.c.l.b16 %v1141
    %v2850 = vunpack.c.l.b16 %v1142
    %v2851 = vunpack.c.l.b16 %v1143
    %v2852 = vunpack.c.l.b16 %v1144
    %v2853 = vunpack.c.l.b16 %v1145
    %v2854 = vunpack.c.l.b16 %v1146
    %v2855 = vunpack.c.l.b16 %v1147
    %v2856 = vunpack.c.l.b16 %v1148
    %v2857 = vunpack.c.l.b16 %v1149
    %v2858 = vunpack.c.l.b16 %v1150
    %v2859 = vunpack.c.l.b16 %v1151
    %v2860 = vunpack.c.l.b16 %v1152
    %v2861 = vunpack.c.l.b16 %v1153
    %v2862 = vunpack.c.l.b16 %v1154
    %v2863 = vunpack.c.l.b16 %v1155
    %v2864 = vunpack.c.l.b16 %v1156
    %v2865 = vunpack.c.l.b16 %v1157
    %v2866 = vunpack.c.l.b16 %v1158
    %v2867 = vunpack.c.l.b16 %v1159
    %v2868 = vunpack.c.l.b16 %v1160
    %v2869 = vunpack.c.l.b16 %v1161
    %v2870 = vunpack.c.l.b16 %v1162
    %v2871 = vunpack.c.l.b16 %v1163
    %v2872 = vunpack.c.l.b16 %v1164
    %v2873 = vunpack.c.l.b16 %v1165
    %v2874 = vunpack.c.l.b16 %v1166
    %v2875 = vunpack.c.l.b16 %v1167
    %v2876 = vunpack.c.l.b16 %v1168
    %v2877 = vunpack.c.l.b16 %v1169
    %v2878 = vunpack.c.l.b16 %v1170
    %v2879 = vunpack.c.l.b16 %v1171
    %v2880 = vunpack.c.l.b16 %v1172
    %v2881 = vunpack.c.l.b16 %v1173
    %v2882 = vunpack.c.l.b16 %v1174
    %v2883 = vunpack.c.l.b16 %v1175
    %v2884 = vunpack.c.l.b16 %v1176
    %v2885 = vunpack.c.l.b16 %v1177
    %v2886 = vunpack.c.l.b16 %v1178
    %v2887 = vunpack.c.l.b16 %v1179
    %v2888 = vunpack.c.l.b16 %v1180
    %v2889 = vunpack.c.l.b16 %v1181
    %v2890 = vunpack.c.l.b16 %v1182
    %v2891 = vunpack.c.l.b16 %v1183
    %v2892 = vunpack.c.l.b16 %v1184
    %v2893 = vunpack.c.l.b16 %v1185
    %v2894 = vunpack.c.l.b16 %v1186
    %v2895 = vunpack.c.l.b16 %v1187
    %v2896 = vunpack.c.l.b16 %v1188
    %v2897 = vunpack.c.l.b16 %v1189
    %v2898 = vunpack.c.l.b16 %v1190
    %v2899 = vunpack.c.l.b16 %v1191
    %v2900 = vunpack.c.l.b16 %v1192
    %v2901 = vunpack.c.l.b16 %v1193
    %v2902 = vunpack.c.l.b16 %v1194
    %v2903 = vunpack.c.l.b16 %v1195
    %v2904 = vunpack.c.l.b16 %v1196
    %v2905 = vunpack.c.l.b16 %v1197
    %v2906 = vunpack.c.l.b16 %v1198
    %v2907 = vunpack.c.l.b16 %v1199
    %v2908 = vunpack.c.l.b16 %v1200
    %v2909 = vunpack.c.l.b16 %v1201
    %v2910 = vunpack.c.l.b16 %v1202
    %v2911 = vunpack.c.l.b16 %v1203
    %v2912 = vunpack.c.l.b16 %v1204
    %v2913 = vunpack.c.l.b16 %v1205
    %v2914 = vunpack.c.l.b16 %v1206
    %v2915 = vunpack.c.l.b16 %v1207
    %v2916 = vunpack.c.l.b16 %v1208
    %v2917 = vunpack.c.l.b16 %v1209
    %v2918 = vunpack.c.l.b16 %v1210
    %v2919 = vunpack.c.l.b16 %v1211
    %v2920 = vunpack.c.l.b16 %v1212
    %v2921 = vunpack.c.l.b16 %v1213
    %v2922 = vunpack.c.l.b16 %v1214
    %v2923 = vunpack.c.l.b16 %v1215
    %v2924 = vunpack.c.l.b16 %v1216
    %v2925 = vunpack.c.l.b16 %v1217
    %v2926 = vunpack.c.l.b16 %v1218
    %v2927 = vunpack.c.l.b16 %v1219
    %v2928 = vunpack.c.l.b16 %v1220
    %v2929 = vunpack.c.l.b16 %v1221
    %v2930 = vunpack.c.l.b16 %v1222
    %v2931 = vunpack.c.l.b16 %v1223
    %v2932 = vunpack.c.l.b16 %v1224
    %v2933 = vunpack.c.l.b16 %v1225
    %v2934 = vunpack.c.l.b16 %v1226
    %v2935 = vunpack.c.l.b16 %v1227
    %v2936 = vunpack.c.l.b16 %v1228
    %v2937 = vunpack.c.l.b16 %v1229
    %v2938 = vunpack.c.l.b16 %v1230
    %v2939 = vunpack.c.l.b16 %v1231
    %v2940 = vunpack.c.l.b16 %v1232
    %v2941 = vunpack.c.l.b16 %v1233
    %v2942 = vunpack.c.l.b16 %v1234
    %v2943 = vunpack.c.l.b16 %v1235
    %v2944 = vunpack.c.l.b16 %v1236
    %v2945 = vunpack.c.l.b16 %v1237
    %v2946 = vunpack.c.l.b16 %v1238
    %v2947 = vunpack.c.l.b16 %v1239
    %v2948 = vunpack.c.l.b16 %v1240
    %v2949 = vunpack.c.l.b16 %v1241
    %v2950 = vunpack.c.l.b16 %v1242
    %v2951 = vunpack.c.l.b16 %v1243
    %v2952 = vunpack.c.l.b16 %v1244
    %v2953 = vunpack.c.l.b16 %v1245
    %v2954 = vunpack.c.l.b16 %v1246
    %v2955 = vunpack.c.l.b16 %v1247
    %v2956 = vunpack.c.l.b16 %v1248
    %v2957 = vunpack.c.l.b16 %v1249
    %v2958 = vunpack.c.l.b16 %v1250
    %v2959 = vunpack.c.l.b16 %v1251
    %v2960 = vunpack.c.l.b16 %v1252
    %v2961 = vunpack.c.l.b16 %v1253
    %v2962 = vunpack.c.l.b16 %v1254
    %v2963 = vunpack.c.l.b16 %v1255
    %v2964 = vunpack.c.l.b16 %v1256
    %v2965 = vunpack.c.l.b16 %v1257
    %v2966 = vunpack.c.l.b16 %v1258
    %v2967 = vunpack.c.l.b16 %v1259
    %v2968 = vunpack.c.l.b16 %v1260
    %v2969 = vunpack.c.l.b16 %v1261
    %v2970 = vunpack.c.l.b16 %v1262
    %v2971 = vunpack.c.l.b16 %v1263
    %v2972 = vunpack.c.l.b16 %v1264
    %v2973 = vunpack.c.l.b16 %v1265
    %v2974 = vunpack.c.l.b16 %v1266
    %v2975 = vunpack.c.l.b16 %v1267
    %v2976 = vunpack.c.l.b16 %v1268
    %v2977 = vunpack.c.l.b16 %v1269
    %v2978 = vunpack.c.l.b16 %v1270
    %v2979 = vpack.c.b16 %v2212, %v2211
    %v2980 = vpack.c.b16 %v2214, %v2213
    %v2981 = vpack.c.b16 %v2216, %v2215
    %v2982 = vpack.c.b16 %v2218, %v2217
    %v2983 = vpack.c.b16 %v2220, %v2219
    %v2984 = vpack.c.b16 %v2222, %v2221
    %v2985 = vpack.c.b16 %v2224, %v2223
    %v2986 = vpack.c.b16 %v2226, %v2225
    %v2987 = vpack.c.b16 %v2228, %v2227
    %v2988 = vpack.c.b16 %v2230, %v2229
    %v2989 = vpack.c.b16 %v2232, %v2231
    %v2990 = vpack.c.b16 %v2234, %v2233
    %v2991 = vpack.c.b16 %v2236, %v2235
    %v2992 = vpack.c.b16 %v2238, %v2237
    %v2993 = vpack.c.b16 %v2240, %v2239
    %v2994 = vpack.c.b16 %v2242, %v2241
    %v2995 = vpack.c.b16 %v2244, %v2243
    %v2996 = vpack.c.b16 %v2246, %v2245
    %v2997 = vpack.c.b16 %v2248, %v2247
    %v2998 = vpack.c.b16 %v2250, %v2249
    %v2999 = vpack.c.b16 %v2252, %v2251
    %v3000 = vpack.c.b16 %v2254, %v2253
    %v3001 = vpack.c.b16 %v2256, %v2255
    %v3002 = vpack.c.b16 %v2258, %v2257
    %v3003 = vpack.c.b16 %v2260, %v2259
    %v3004 = vpack.c.b16 %v2262, %v2261
    %v3005 = vpack.c.b16 %v2264, %v2263
    %v3006 = vpack.c.b16 %v2266, %v2265
    %v3007 = vpack.c.b16 %v2268, %v2267
    %v3008 = vpack.c.b16 %v2270, %v2269
    %v3009 = vpack.c.b16 %v2272, %v2271
    %v3010 = vpack.c.b16 %v2274, %v2273
    %v3011 = vpack.c.b16 %v2276, %v2275
    %v3012 = vpack.c.b16 %v2278, %v2277
    %v3013 = vpack.c.b16 %v2280, %v2279
    %v3014 = vpack.c.b16 %v2282, %v2281
    %v3015 = vpack.c.b16 %v2284, %v2283
    %v3016 = vpack.c.b16 %v2286, %v2285
    %v3017 = vpack.c.b16 %v2288, %v2287
    %v3018 = vpack.c.b16 %v2290, %v2289
    %v3019 = vpack.c.b16 %v2292, %v2291
    %v3020 = vpack.c.b16 %v2294, %v2293
    %v3021 = vpack.c.b16 %v2296, %v2295
    %v3022 = vpack.c.b16 %v2298, %v2297
    %v3023 = vpack.c.b16 %v2300, %v2299
    %v3024 = vpack.c.b16 %v2302, %v2301
    %v3025 = vpack.c.b16 %v2304, %v2303
    %v3026 = vpack.c.b16 %v2306, %v2305
    %v3027 = vpack.c.b16 %v2308, %v2307
    %v3028 = vpack.c.b16 %v2310, %v2309
    %v3029 = vpack.c.b16 %v2312, %v2311
    %v3030 = vpack.c.b16 %v2314, %v2313
    %v3031 = vpack.c.b16 %v2316, %v2315
    %v3032 = vpack.c.b16 %v2318, %v2317
    %v3033 = vpack.c.b16 %v2320, %v2319
    %v3034 = vpack.c.b16 %v2322, %v2321
    %v3035 = vpack.c.b16 %v2324, %v2323
    %v3036 = vpack.c.b16 %v2326, %v2325
    %v3037 = vpack.c.b16 %v2328, %v2327
    %v3038 = vpack.c.b16 %v2330, %v2329
    %v3039 = vpack.c.b16 %v2332, %v2331
    %v3040 = vpack.c.b16 %v2334, %v2333
    %v3041 = vpack.c.b16 %v2336, %v2335
    %v3042 = vpack.c.b16 %v2338, %v2337
    %v3043 = vpack.c.b16 %v2340, %v2339
    %v3044 = vpack.c.b16 %v2342, %v2341
    %v3045 = vpack.c.b16 %v2344, %v2343
    %v3046 = vpack.c.b16 %v2346, %v2345
    %v3047 = vpack.c.b16 %v2348, %v2347
    %v3048 = vpack.c.b16 %v2350, %v2349
    %v3049 = vpack.c.b16 %v2352, %v2351
    %v3050 = vpack.c.b16 %v2354, %v2353
    %v3051 = vpack.c.b16 %v2356, %v2355
    %v3052 = vpack.c.b16 %v2358, %v2357
    %v3053 = vpack.c.b16 %v2360, %v2359
    %v3054 = vpack.c.b16 %v2362, %v2361
    %v3055 = vpack.c.b16 %v2364, %v2363
    %v3056 = vpack.c.b16 %v2366, %v2365
    %v3057 = vpack.c.b16 %v2368, %v2367
    %v3058 = vpack.c.b16 %v2370, %v2369
    %v3059 = vpack.c.b16 %v2372, %v2371
    %v3060 = vpack.c.b16 %v2374, %v2373
    %v3061 = vpack.c.b16 %v2376, %v2375
    %v3062 = vpack.c.b16 %v2378, %v2377
    %v3063 = vpack.c.b16 %v2380, %v2379
    %v3064 = vpack.c.b16 %v2382, %v2381
    %v3065 = vpack.c.b16 %v2384, %v2383
    %v3066 = vpack.c.b16 %v2386, %v2385
    %v3067 = vpack.c.b16 %v2388, %v2387
    %v3068 = vpack.c.b16 %v2390, %v2389
    %v3069 = vpack.c.b16 %v2392, %v2391
    %v3070 = vpack.c.b16 %v2394, %v2393
    %v3071 = vpack.c.b16 %v2396, %v2395
    %v3072 = vpack.c.b16 %v2398, %v2397
    %v3073 = vpack.c.b16 %v2400, %v2399
    %v3074 = vpack.c.b16 %v2402, %v2401
    %v3075 = vpack.c.b16 %v2404, %v2403
    %v3076 = vpack.c.b16 %v2406, %v2405
    %v3077 = vpack.c.b16 %v2408, %v2407
    %v3078 = vpack.c.b16 %v2410, %v2409
    %v3079 = vpack.c.b16 %v2412, %v2411
    %v3080 = vpack.c.b16 %v2414, %v2413
    %v3081 = vpack.c.b16 %v2416, %v2415
    %v3082 = vpack.c.b16 %v2418, %v2417
    %v3083 = vpack.c.b16 %v2420, %v2419
    %v3084 = vpack.c.b16 %v2422, %v2421
    %v3085 = vpack.c.b16 %v2424, %v2423
    %v3086 = vpack.c.b16 %v2426, %v2425
    %v3087 = vpack.c.b16 %v2428, %v2427
    %v3088 = vpack.c.b16 %v2430, %v2429
    %v3089 = vpack.c.b16 %v2432, %v2431
    %v3090 = vpack.c.b16 %v2434, %v2433
    %v3091 = vpack.c.b16 %v2436, %v2435
    %v3092 = vpack.c.b16 %v2438, %v2437
    %v3093 = vpack.c.b16 %v2440, %v2439
    %v3094 = vpack.c.b16 %v2442, %v2441
    %v3095 = vpack.c.b16 %v2444, %v2443
    %v3096 = vpack.c.b16 %v2446, %v2445
    %v3097 = vpack.c.b16 %v2448, %v2447
    %v3098 = vpack.c.b16 %v2450, %v2449
    %v3099 = vpack.c.b16 %v2452, %v2451
    %v3100 = vpack.c.b16 %v2454, %v2453
    %v3101 = vpack.c.b16 %v2456, %v2455
    %v3102 = vpack.c.b16 %v2458, %v2457
    %v3103 = vpack.c.b16 %v2460, %v2459
    %v3104 = vpack.c.b16 %v2462, %v2461
    %v3105 = vpack.c.b16 %v2464, %v2463
    %v3106 = vpack.c.b16 %v2466, %v2465
    %v3107 = vpack.c.b16 %v2468, %v2467
    %v3108 = vpack.c.b16 %v2470, %v2469
    %v3109 = vpack.c.b16 %v2472, %v2471
    %v3110 = vpack.c.b16 %v2474, %v2473
    %v3111 = vpack.c.b16 %v2476, %v2475
    %v3112 = vpack.c.b16 %v2478, %v2477
    %v3113 = vpack.c.b16 %v2480, %v2479
    %v3114 = vpack.c.b16 %v2482, %v2481
    %v3115 = vpack.c.b16 %v2484, %v2483
    %v3116 = vpack.c.b16 %v2486, %v2485
    %v3117 = vpack.c.b16 %v2488, %v2487
    %v3118 = vpack.c.b16 %v2490, %v2489
    %v3119 = vpack.c.b16 %v2492, %v2491
    %v3120 = vpack.c.b16 %v2494, %v2493
    %v3121 = vpack.c.b16 %v2496, %v2495
    %v3122 = vpack.c.b16 %v2498, %v2497
    %v3123 = vpack.c.b16 %v2500, %v2499
    %v3124 = vpack.c.b16 %v2502, %v2501
    %v3125 = vpack.c.b16 %v2504, %v2503
    %v3126 = vpack.c.b16 %v2506, %v2505
    %v3127 = vpack.c.b16 %v2508, %v2507
    %v3128 = vpack.c.b16 %v2510, %v2509
    %v3129 = vpack.c.b16 %v2512, %v2511
    %v3130 = vpack.c.b16 %v2514, %v2513
    %v3131 = vpack.c.b16 %v2516, %v2515
    %v3132 = vpack.c.b16 %v2518, %v2517
    %v3133 = vpack.c.b16 %v2520, %v2519
    %v3134 = vpack.c.b16 %v2522, %v2521
    %v3135 = vpack.c.b16 %v2524, %v2523
    %v3136 = vpack.c.b16 %v2526, %v2525
    %v3137 = vpack.c.b16 %v2528, %v2527
    %v3138 = vpack.c.b16 %v2530, %v2529
    %v3139 = vpack.c.b16 %v2532, %v2531
    %v3140 = vpack.c.b16 %v2534, %v2533
    %v3141 = vpack.c.b16 %v2536, %v2535
    %v3142 = vpack.c.b16 %v2538, %v2537
    %v3143 = vpack.c.b16 %v2540, %v2539
    %v3144 = vpack.c.b16 %v2542, %v2541
    %v3145 = vpack.c.b16 %v2544, %v2543
    %v3146 = vpack.c.b16 %v2546, %v2545
    %v3147 = vpack.c.b16 %v2548, %v2547
    %v3148 = vpack.c.b16 %v2550, %v2549
    %v3149 = vpack.c.b16 %v2552, %v2551
    %v3150 = vpack.c.b16 %v2554, %v2553
    %v3151 = vpack.c.b16 %v2556, %v2555
    %v3152 = vpack.c.b16 %v2558, %v2557
    %v3153 = vpack.c.b16 %v2560, %v2559
    %v3154 = vpack.c.b16 %v2562, %v2561
    %v3155 = vpack.c.b16 %v2564, %v2563
    %v3156 = vpack.c.b16 %v2566, %v2565
    %v3157 = vpack.c.b16 %v2568, %v2567
    %v3158 = vpack.c.b16 %v2570, %v2569
    %v3159 = vpack.c.b16 %v2572, %v2571
    %v3160 = vpack.c.b16 %v2574, %v2573
    %v3161 = vpack.c.b16 %v2576, %v2575
    %v3162 = vpack.c.b16 %v2578, %v2577
    %v3163 = vpack.c.b16 %v2580, %v2579
    %v3164 = vpack.c.b16 %v2582, %v2581
    %v3165 = vpack.c.b16 %v2584, %v2583
    %v3166 = vpack.c.b16 %v2586, %v2585
    %v3167 = vpack.c.b16 %v2588, %v2587
    %v3168 = vpack.c.b16 %v2590, %v2589
    %v3169 = vpack.c.b16 %v2592, %v2591
    %v3170 = vpack.c.b16 %v2594, %v2593
    %v3171 = vpack.c.b16 %v2596, %v2595
    %v3172 = vpack.c.b16 %v2598, %v2597
    %v3173 = vpack.c.b16 %v2600, %v2599
    %v3174 = vpack.c.b16 %v2602, %v2601
    %v3175 = vpack.c.b16 %v2604, %v2603
    %v3176 = vpack.c.b16 %v2606, %v2605
    %v3177 = vpack.c.b16 %v2608, %v2607
    %v3178 = vpack.c.b16 %v2610, %v2609
    %v3179 = vpack.c.b16 %v2612, %v2611
    %v3180 = vpack.c.b16 %v2614, %v2613
    %v3181 = vpack.c.b16 %v2616, %v2615
    %v3182 = vpack.c.b16 %v2618, %v2617
    %v3183 = vpack.c.b16 %v2620, %v2619
    %v3184 = vpack.c.b16 %v2622, %v2621
    %v3185 = vpack.c.b16 %v2624, %v2623
    %v3186 = vpack.c.b16 %v2626, %v2625
    %v3187 = vpack.c.b16 %v2628, %v2627
    %v3188 = vpack.c.b16 %v2630, %v2629
    %v3189 = vpack.c.b16 %v2632, %v2631
    %v3190 = vpack.c.b16 %v2634, %v2633
    %v3191 = vpack.c.b16 %v2636, %v2635
    %v3192 = vpack.c.b16 %v2638, %v2637
    %v3193 = vpack.c.b16 %v2640, %v2639
    %v3194 = vpack.c.b16 %v2642, %v2641
    %v3195 = vpack.c.b16 %v2644, %v2643
    %v3196 = vpack.c.b16 %v2646, %v2645
    %v3197 = vpack.c.b16 %v2648, %v2647
    %v3198 = vpack.c.b16 %v2650, %v2649
    %v3199 = vpack.c.b16 %v2652, %v2651
    %v3200 = vpack.c.b16 %v2654, %v2653
    %v3201 = vpack.c.b16 %v2656, %v2655
    %v3202 = vpack.c.b16 %v2658, %v2657
    %v3203 = vpack.c.b16 %v2660, %v2659
    %v3204 = vpack.c.b16 %v2662, %v2661
    %v3205 = vpack.c.b16 %v2664, %v2663
    %v3206 = vpack.c.b16 %v2666, %v2665
    %v3207 = vpack.c.b16 %v2668, %v2667
    %v3208 = vpack.c.b16 %v2670, %v2669
    %v3209 = vpack.c.b16 %v2672, %v2671
    %v3210 = vpack.c.b16 %v2674, %v2673
    %v3211 = vpack.c.b16 %v2676, %v2675
    %v3212 = vpack.c.b16 %v2678, %v2677
    %v3213 = vpack.c.b16 %v2680, %v2679
    %v3214 = vpack.c.b16 %v2682, %v2681
    %v3215 = vpack.c.b16 %v2684, %v2683
    %v3216 = vpack.c.b16 %v2686, %v2685
    %v3217 = vpack.c.b16 %v2688, %v2687
    %v3218 = vpack.c.b16 %v2690, %v2689
    %v3219 = vpack.c.b16 %v2692, %v2691
    %v3220 = vpack.c.b16 %v2694, %v2693
    %v3221 = vpack.c.b16 %v2696, %v2695
    %v3222 = vpack.c.b16 %v2698, %v2697
    %v3223 = vpack.c.b16 %v2700, %v2699
    %v3224 = vpack.c.b16 %v2702, %v2701
    %v3225 = vpack.c.b16 %v2704, %v2703
    %v3226 = vpack.c.b16 %v2706, %v2705
    %v3227 = vpack.c.b16 %v2708, %v2707
    %v3228 = vpack.c.b16 %v2710, %v2709
    %v3229 = vpack.c.b16 %v2712, %v2711
    %v3230 = vpack.c.b16 %v2714, %v2713
    %v3231 = vpack.c.b16 %v2716, %v2715
    %v3232 = vpack.c.b16 %v2718, %v2717
    %v3233 = vpack.c.b16 %v2720, %v2719
    %v3234 = vpack.c.b16 %v2722, %v2721
    %v3235 = vpack.c.b16 %v2724, %v2723
    %v3236 = vpack.c.b16 %v2726, %v2725
    %v3237 = vpack.c.b16 %v2728, %v2727
    %v3238 = vpack.c.b16 %v2730, %v2729
    %v3239 = vpack.c.b16 %v2732, %v2731
    %v3240 = vpack.c.b16 %v2734, %v2733
    %v3241 = vpack.c.b16 %v2736, %v2735
    %v3242 = vpack.c.b16 %v2738, %v2737
    %v3243 = vpack.c.b16 %v2740, %v2739
    %v3244 = vpack.c.b16 %v2742, %v2741
    %v3245 = vpack.c.b16 %v2744, %v2743
    %v3246 = vpack.c.b16 %v2746, %v2745
    %v3247 = vpack.c.b16 %v2748, %v2747
    %v3248 = vpack.c.b16 %v2750, %v2749
    %v3249 = vpack.c.b16 %v2752, %v2751
    %v3250 = vpack.c.b16 %v2754, %v2753
    %v3251 = vpack.c.b16 %v2756, %v2755
    %v3252 = vpack.c.b16 %v2758, %v2757
    %v3253 = vpack.c.b16 %v2760, %v2759
    %v3254 = vpack.c.b16 %v2762, %v2761
    %v3255 = vpack.c.b16 %v2764, %v2763
    %v3256 = vpack.c.b16 %v2766, %v2765
    %v3257 = vpack.c.b16 %v2768, %v2767
    %v3258 = vpack.c.b16 %v2770, %v2769
    %v3259 = vpack.c.b16 %v2772, %v2771
    %v3260 = vpack.c.b16 %v2774, %v2773
    %v3261 = vpack.c.b16 %v2776, %v2775
    %v3262 = vpack.c.b16 %v2778, %v2777
    %v3263 = vpack.c.b16 %v2780, %v2779
    %v3264 = vpack.c.b16 %v2782, %v2781
    %v3265 = vpack.c.b16 %v2784, %v2783
    %v3266 = vpack.c.b16 %v2786, %v2785
    %v3267 = vpack.c.b16 %v2788, %v2787
    %v3268 = vpack.c.b16 %v2790, %v2789
    %v3269 = vpack.c.b16 %v2792, %v2791
    %v3270 = vpack.c.b16 %v2794, %v2793
    %v3271 = vpack.c.b16 %v2796, %v2795
    %v3272 = vpack.c.b16 %v2798, %v2797
    %v3273 = vpack.c.b16 %v2800, %v2799
    %v3274 = vpack.c.b16 %v2802, %v2801
    %v3275 = vpack.c.b16 %v2804, %v2803
    %v3276 = vpack.c.b16 %v2806, %v2805
    %v3277 = vpack.c.b16 %v2808, %v2807
    %v3278 = vpack.c.b16 %v2810, %v2809
    %v3279 = vpack.c.b16 %v2812, %v2811
    %v3280 = vpack.c.b16 %v2814, %v2813
    %v3281 = vpack.c.b16 %v2816, %v2815
    %v3282 = vpack.c.b16 %v2818, %v2817
    %v3283 = vpack.c.b16 %v2820, %v2819
    %v3284 = vpack.c.b16 %v2822, %v2821
    %v3285 = vpack.c.b16 %v2824, %v2823
    %v3286 = vpack.c.b16 %v2826, %v2825
    %v3287 = vpack.c.b16 %v2828, %v2827
    %v3288 = vpack.c.b16 %v2830, %v2829
    %v3289 = vpack.c.b16 %v2832, %v2831
    %v3290 = vpack.c.b16 %v2834, %v2833
    %v3291 = vpack.c.b16 %v2836, %v2835
    %v3292 = vpack.c.b16 %v2838, %v2837
    %v3293 = vpack.c.b16 %v2840, %v2839
    %v3294 = vpack.c.b16 %v2842, %v2841
    %v3295 = vpack.c.b16 %v2844, %v2843
    %v3296 = vpack.c.b16 %v2846, %v2845
    %v3297 = vpack.c.b16 %v2848, %v2847
    %v3298 = vpack.c.b16 %v2850, %v2849
    %v3299 = vpack.c.b16 %v2852, %v2851
    %v3300 = vpack.c.b16 %v2854, %v2853
    %v3301 = vpack.c.b16 %v2856, %v2855
    %v3302 = vpack.c.b16 %v2858, %v2857
    %v3303 = vpack.c.b16 %v2860, %v2859
    %v3304 = vpack.c.b16 %v2862, %v2861
    %v3305 = vpack.c.b16 %v2864, %v2863
    %v3306 = vpack.c.b16 %v2866, %v2865
    %v3307 = vpack.c.b16 %v2868, %v2867
    %v3308 = vpack.c.b16 %v2870, %v2869
    %v3309 = vpack.c.b16 %v2872, %v2871
    %v3310 = vpack.c.b16 %v2874, %v2873
    %v3311 = vpack.c.b16 %v2876, %v2875
    %v3312 = vpack.c.b16 %v2878, %v2877
    %v3313 = vpack.c.b16 %v2880, %v2879
    %v3314 = vpack.c.b16 %v2882, %v2881
    %v3315 = vpack.c.b16 %v2884, %v2883
    %v3316 = vpack.c.b16 %v2886, %v2885
    %v3317 = vpack.c.b16 %v2888, %v2887
    %v3318 = vpack.c.b16 %v2890, %v2889
    %v3319 = vpack.c.b16 %v2892, %v2891
    %v3320 = vpack.c.b16 %v2894, %v2893
    %v3321 = vpack.c.b16 %v2896, %v2895
    %v3322 = vpack.c.b16 %v2898, %v2897
    %v3323 = vpack.c.b16 %v2900, %v2899
    %v3324 = vpack.c.b16 %v2902, %v2901
    %v3325 = vpack.c.b16 %v2904, %v2903
    %v3326 = vpack.c.b16 %v2906, %v2905
    %v3327 = vpack.c.b16 %v2908, %v2907
    %v3328 = vpack.c.b16 %v2910, %v2909
    %v3329 = vpack.c.b16 %v2912, %v2911
    %v3330 = vpack.c.b16 %v2914, %v2913
    %v3331 = vpack.c.b16 %v2916, %v2915
    %v3332 = vpack.c.b16 %v2918, %v2917
    %v3333 = vpack.c.b16 %v2920, %v2919
    %v3334 = vpack.c.b16 %v2922, %v2921
    %v3335 = vpack.c.b16 %v2924, %v2923
    %v3336 = vpack.c.b16 %v2926, %v2925
    %v3337 = vpack.c.b16 %v2928, %v2927
    %v3338 = vpack.c.b16 %v2930, %v2929
    %v3339 = vpack.c.b16 %v2932, %v2931
    %v3340 = vpack.c.b16 %v2934, %v2933
    %v3341 = vpack.c.b16 %v2936, %v2935
    %v3342 = vpack.c.b16 %v2938, %v2937
    %v3343 = vpack.c.b16 %v2940, %v2939
    %v3344 = vpack.c.b16 %v2942, %v2941
    %v3345 = vpack.c.b16 %v2944, %v2943
    %v3346 = vpack.c.b16 %v2946, %v2945
    %v3347 = vpack.c.b16 %v2948, %v2947
    %v3348 = vpack.c.b16 %v2950, %v2949
    %v3349 = vpack.c.b16 %v2952, %v2951
    %v3350 = vpack.c.b16 %v2954, %v2953
    %v3351 = vpack.c.b16 %v2956, %v2955
    %v3352 = vpack.c.b16 %v2958, %v2957
    %v3353 = vpack.c.b16 %v2960, %v2959
    %v3354 = vpack.c.b16 %v2962, %v2961
    %v3355 = vpack.c.b16 %v2964, %v2963
    %v3356 = vpack.c.b16 %v2966, %v2965
    %v3357 = vpack.c.b16 %v2968, %v2967
    %v3358 = vpack.c.b16 %v2970, %v2969
    %v3359 = vpack.c.b16 %v2972, %v2971
    %v3360 = vpack.c.b16 %v2974, %v2973
    %v3361 = vpack.c.b16 %v2976, %v2975
    %v3362 = vpack.c.b16 %v2978, %v2977
    %3747 = vmatpush.bf16.msra.mxu0 %v2986
    %3748 = vmatpush.bf16.msra.mxu0 %v2985
    %3749 = vmatpush.bf16.msra.mxu0 %v2984
    %3750 = vmatpush.bf16.msra.mxu0 %v2983
    %3751 = vmatpush.bf16.msra.mxu0 %v2982
    %3752 = vmatpush.bf16.msra.mxu0 %v2981
    %3753 = vmatpush.bf16.msra.mxu0 %v2980
    %3754 = vmatpush.bf16.msra.mxu0 %v2979
    %3755 = vmatmul.bf16.gmra.mxu0 %v1347
    %v3756 = vpop.f32.mrf.mxu0
    %v3757 = vadd.f32 %v1273, %v3756
    %v3758 = vpop.f32.mrf.mxu0
    %3759 = vdwg.mxu0
    %3760 = vmatpush.bf16.msra.mxu0 %v2994
    %3761 = vmatpush.bf16.msra.mxu0 %v2993
    %3762 = vmatpush.bf16.msra.mxu0 %v2992
    %3763 = vmatpush.bf16.msra.mxu0 %v2991
    %3764 = vmatpush.bf16.msra.mxu0 %v2990
    %3765 = vmatpush.bf16.msra.mxu0 %v2989
    %3766 = vmatpush.bf16.msra.mxu0 %v2988
    %3767 = vmatpush.bf16.msra.mxu0 %v2987
    %3768 = vmatmul.bf16.gmra.mxu0 %v1348
    %v3769 = vpop.f32.mrf.mxu0
    %v3770 = vadd.f32 %v3757, %v3769
    %v3771 = vpop.f32.mrf.mxu0
    %3772 = vdwg.mxu0
    %3773 = vmatpush.bf16.msra.mxu0 %v3002
    %3774 = vmatpush.bf16.msra.mxu0 %v3001
    %3775 = vmatpush.bf16.msra.mxu0 %v3000
    %3776 = vmatpush.bf16.msra.mxu0 %v2999
    %3777 = vmatpush.bf16.msra.mxu0 %v2998
    %3778 = vmatpush.bf16.msra.mxu0 %v2997
    %3779 = vmatpush.bf16.msra.mxu0 %v2996
    %3780 = vmatpush.bf16.msra.mxu0 %v2995
    %3781 = vmatmul.bf16.gmra.mxu0 %v1349
    %v3782 = vpop.f32.mrf.mxu0
    %v3783 = vadd.f32 %v3770, %v3782
    %v3784 = vpop.f32.mrf.mxu0
    %3785 = vdwg.mxu0
    %3786 = vmatpush.bf16.msra.mxu0 %v3010
    %3787 = vmatpush.bf16.msra.mxu0 %v3009
    %3788 = vmatpush.bf16.msra.mxu0 %v3008
    %3789 = vmatpush.bf16.msra.mxu0 %v3007
    %3790 = vmatpush.bf16.msra.mxu0 %v3006
    %3791 = vmatpush.bf16.msra.mxu0 %v3005
    %3792 = vmatpush.bf16.msra.mxu0 %v3004
    %3793 = vmatpush.bf16.msra.mxu0 %v3003
    %3794 = vmatmul.bf16.gmra.mxu0 %v1350
    %v3795 = vpop.f32.mrf.mxu0
    %v3796 = vadd.f32 %v3783, %v3795
    %v3797 = vpop.f32.mrf.mxu0
    %3798 = vdwg.mxu0
    %3799 = vmatpush.bf16.msra.mxu0 %v3018
    %3800 = vmatpush.bf16.msra.mxu0 %v3017
    %3801 = vmatpush.bf16.msra.mxu0 %v3016
    %3802 = vmatpush.bf16.msra.mxu0 %v3015
    %3803 = vmatpush.bf16.msra.mxu0 %v3014
    %3804 = vmatpush.bf16.msra.mxu0 %v3013
    %3805 = vmatpush.bf16.msra.mxu0 %v3012
    %3806 = vmatpush.bf16.msra.mxu0 %v3011
    %3807 = vmatmul.bf16.gmra.mxu0 %v1351
    %v3808 = vpop.f32.mrf.mxu0
    %v3809 = vadd.f32 %v3796, %v3808
    %v3810 = vpop.f32.mrf.mxu0
    %3811 = vdwg.mxu0
    %3812 = vmatpush.bf16.msra.mxu0 %v3026
    %3813 = vmatpush.bf16.msra.mxu0 %v3025
    %3814 = vmatpush.bf16.msra.mxu0 %v3024
    %3815 = vmatpush.bf16.msra.mxu0 %v3023
    %3816 = vmatpush.bf16.msra.mxu0 %v3022
    %3817 = vmatpush.bf16.msra.mxu0 %v3021
    %3818 = vmatpush.bf16.msra.mxu0 %v3020
    %3819 = vmatpush.bf16.msra.mxu0 %v3019
    %3820 = vmatmul.bf16.gmra.mxu0 %v1352
    %v3821 = vpop.f32.mrf.mxu0
    %v3822 = vadd.f32 %v3809, %v3821
    %v3823 = vpop.f32.mrf.mxu0
    %3824 = vdwg.mxu0
    %3825 = vmatpush.bf16.msra.mxu0 %v3034
    %3826 = vmatpush.bf16.msra.mxu0 %v3033
    %3827 = vmatpush.bf16.msra.mxu0 %v3032
    %3828 = vmatpush.bf16.msra.mxu0 %v3031
    %3829 = vmatpush.bf16.msra.mxu0 %v3030
    %3830 = vmatpush.bf16.msra.mxu0 %v3029
    %3831 = vmatpush.bf16.msra.mxu0 %v3028
    %3832 = vmatpush.bf16.msra.mxu0 %v3027
    %3833 = vmatmul.bf16.gmra.mxu0 %v1353
    %v3834 = vpop.f32.mrf.mxu0
    %v3835 = vadd.f32 %v3822, %v3834
    %v3836 = vpop.f32.mrf.mxu0
    %3837 = vdwg.mxu0
    %3838 = vmatpush.bf16.msra.mxu0 %v3042
    %3839 = vmatpush.bf16.msra.mxu0 %v3041
    %3840 = vmatpush.bf16.msra.mxu0 %v3040
    %3841 = vmatpush.bf16.msra.mxu0 %v3039
    %3842 = vmatpush.bf16.msra.mxu0 %v3038
    %3843 = vmatpush.bf16.msra.mxu0 %v3037
    %3844 = vmatpush.bf16.msra.mxu0 %v3036
    %3845 = vmatpush.bf16.msra.mxu0 %v3035
    %3846 = vmatmul.bf16.gmra.mxu0 %v1354
    %v3847 = vpop.f32.mrf.mxu0
    %v3848 = vadd.f32 %v3835, %v3847
    %v3849 = vpop.f32.mrf.mxu0
    %3850 = vdwg.mxu0
    %3851 = vmatpush.bf16.msra.mxu0 %v3050
    %3852 = vmatpush.bf16.msra.mxu0 %v3049
    %3853 = vmatpush.bf16.msra.mxu0 %v3048
    %3854 = vmatpush.bf16.msra.mxu0 %v3047
    %3855 = vmatpush.bf16.msra.mxu0 %v3046
    %3856 = vmatpush.bf16.msra.mxu0 %v3045
    %3857 = vmatpush.bf16.msra.mxu0 %v3044
    %3858 = vmatpush.bf16.msra.mxu0 %v3043
    %3859 = vmatmul.bf16.gmra.mxu0 %v1355
    %v3860 = vpop.f32.mrf.mxu0
    %v3861 = vadd.f32 %v3848, %v3860
    %v3862 = vpop.f32.mrf.mxu0
    %3863 = vdwg.mxu0
    %3864 = vmatpush.bf16.msra.mxu0 %v3058
    %3865 = vmatpush.bf16.msra.mxu0 %v3057
    %3866 = vmatpush.bf16.msra.mxu0 %v3056
    %3867 = vmatpush.bf16.msra.mxu0 %v3055
    %3868 = vmatpush.bf16.msra.mxu0 %v3054
    %3869 = vmatpush.bf16.msra.mxu0 %v3053
    %3870 = vmatpush.bf16.msra.mxu0 %v3052
    %3871 = vmatpush.bf16.msra.mxu0 %v3051
    %3872 = vmatmul.bf16.gmra.mxu0 %v1356
    %v3873 = vpop.f32.mrf.mxu0
    %v3874 = vadd.f32 %v3861, %v3873
    %v3875 = vpop.f32.mrf.mxu0
    %3876 = vdwg.mxu0
    %3877 = vmatpush.bf16.msra.mxu0 %v3066
    %3878 = vmatpush.bf16.msra.mxu0 %v3065
    %3879 = vmatpush.bf16.msra.mxu0 %v3064
    %3880 = vmatpush.bf16.msra.mxu0 %v3063
    %3881 = vmatpush.bf16.msra.mxu0 %v3062
    %3882 = vmatpush.bf16.msra.mxu0 %v3061
    %3883 = vmatpush.bf16.msra.mxu0 %v3060
    %3884 = vmatpush.bf16.msra.mxu0 %v3059
    %3885 = vmatmul.bf16.gmra.mxu0 %v1357
    %v3886 = vpop.f32.mrf.mxu0
    %v3887 = vadd.f32 %v3874, %v3886
    %v3888 = vpop.f32.mrf.mxu0
    %3889 = vdwg.mxu0
    %3890 = vmatpush.bf16.msra.mxu0 %v3074
    %3891 = vmatpush.bf16.msra.mxu0 %v3073
    %3892 = vmatpush.bf16.msra.mxu0 %v3072
    %3893 = vmatpush.bf16.msra.mxu0 %v3071
    %3894 = vmatpush.bf16.msra.mxu0 %v3070
    %3895 = vmatpush.bf16.msra.mxu0 %v3069
    %3896 = vmatpush.bf16.msra.mxu0 %v3068
    %3897 = vmatpush.bf16.msra.mxu0 %v3067
    %3898 = vmatmul.bf16.gmra.mxu0 %v1358
    %v3899 = vpop.f32.mrf.mxu0
    %v3900 = vadd.f32 %v3887, %v3899
    %v3901 = vpop.f32.mrf.mxu0
    %3902 = vdwg.mxu0
    %3903 = vmatpush.bf16.msra.mxu0 %v3082
    %3904 = vmatpush.bf16.msra.mxu0 %v3081
    %3905 = vmatpush.bf16.msra.mxu0 %v3080
    %3906 = vmatpush.bf16.msra.mxu0 %v3079
    %3907 = vmatpush.bf16.msra.mxu0 %v3078
    %3908 = vmatpush.bf16.msra.mxu0 %v3077
    %3909 = vmatpush.bf16.msra.mxu0 %v3076
    %3910 = vmatpush.bf16.msra.mxu0 %v3075
    %3911 = vmatmul.bf16.gmra.mxu0 %v1359
    %v3912 = vpop.f32.mrf.mxu0
    %v3913 = vadd.f32 %v3900, %v3912
    %v3914 = vpop.f32.mrf.mxu0
    %3915 = vdwg.mxu0
    %3916 = vmatpush.bf16.msra.mxu0 %v3090
    %3917 = vmatpush.bf16.msra.mxu0 %v3089
    %3918 = vmatpush.bf16.msra.mxu0 %v3088
    %3919 = vmatpush.bf16.msra.mxu0 %v3087
    %3920 = vmatpush.bf16.msra.mxu0 %v3086
    %3921 = vmatpush.bf16.msra.mxu0 %v3085
    %3922 = vmatpush.bf16.msra.mxu0 %v3084
    %3923 = vmatpush.bf16.msra.mxu0 %v3083
    %3924 = vmatmul.bf16.gmra.mxu0 %v1360
    %v3925 = vpop.f32.mrf.mxu0
    %v3926 = vadd.f32 %v3913, %v3925
    %v3927 = vpop.f32.mrf.mxu0
    %3928 = vdwg.mxu0
    %3929 = vmatpush.bf16.msra.mxu0 %v3098
    %3930 = vmatpush.bf16.msra.mxu0 %v3097
    %3931 = vmatpush.bf16.msra.mxu0 %v3096
    %3932 = vmatpush.bf16.msra.mxu0 %v3095
    %3933 = vmatpush.bf16.msra.mxu0 %v3094
    %3934 = vmatpush.bf16.msra.mxu0 %v3093
    %3935 = vmatpush.bf16.msra.mxu0 %v3092
    %3936 = vmatpush.bf16.msra.mxu0 %v3091
    %3937 = vmatmul.bf16.gmra.mxu0 %v1361
    %v3938 = vpop.f32.mrf.mxu0
    %v3939 = vadd.f32 %v3926, %v3938
    %v3940 = vpop.f32.mrf.mxu0
    %3941 = vdwg.mxu0
    %3942 = vmatpush.bf16.msra.mxu0 %v3106
    %3943 = vmatpush.bf16.msra.mxu0 %v3105
    %3944 = vmatpush.bf16.msra.mxu0 %v3104
    %3945 = vmatpush.bf16.msra.mxu0 %v3103
    %3946 = vmatpush.bf16.msra.mxu0 %v3102
    %3947 = vmatpush.bf16.msra.mxu0 %v3101
    %3948 = vmatpush.bf16.msra.mxu0 %v3100
    %3949 = vmatpush.bf16.msra.mxu0 %v3099
    %3950 = vmatmul.bf16.gmra.mxu0 %v1362
    %v3951 = vpop.f32.mrf.mxu0
    %v3952 = vadd.f32 %v3939, %v3951
    %v3953 = vpop.f32.mrf.mxu0
    %3954 = vdwg.mxu0
    %3955 = vmatpush.bf16.msra.mxu0 %v3114
    %3956 = vmatpush.bf16.msra.mxu0 %v3113
    %3957 = vmatpush.bf16.msra.mxu0 %v3112
    %3958 = vmatpush.bf16.msra.mxu0 %v3111
    %3959 = vmatpush.bf16.msra.mxu0 %v3110
    %3960 = vmatpush.bf16.msra.mxu0 %v3109
    %3961 = vmatpush.bf16.msra.mxu0 %v3108
    %3962 = vmatpush.bf16.msra.mxu0 %v3107
    %3963 = vmatmul.bf16.gmra.mxu0 %v1363
    %v3964 = vpop.f32.mrf.mxu0
    %v3965 = vadd.f32 %v3952, %v3964
    %v3966 = vpop.f32.mrf.mxu0
    %3967 = vdwg.mxu0
    %3968 = vmatpush.bf16.msra.mxu0 %v3122
    %3969 = vmatpush.bf16.msra.mxu0 %v3121
    %3970 = vmatpush.bf16.msra.mxu0 %v3120
    %3971 = vmatpush.bf16.msra.mxu0 %v3119
    %3972 = vmatpush.bf16.msra.mxu0 %v3118
    %3973 = vmatpush.bf16.msra.mxu0 %v3117
    %3974 = vmatpush.bf16.msra.mxu0 %v3116
    %3975 = vmatpush.bf16.msra.mxu0 %v3115
    %3976 = vmatmul.bf16.gmra.mxu0 %v1364
    %v3977 = vpop.f32.mrf.mxu0
    %v3978 = vadd.f32 %v3965, %v3977
    %v3979 = vpop.f32.mrf.mxu0
    %3980 = vdwg.mxu0
    %3981 = vmatpush.bf16.msra.mxu0 %v3130
    %3982 = vmatpush.bf16.msra.mxu0 %v3129
    %3983 = vmatpush.bf16.msra.mxu0 %v3128
    %3984 = vmatpush.bf16.msra.mxu0 %v3127
    %3985 = vmatpush.bf16.msra.mxu0 %v3126
    %3986 = vmatpush.bf16.msra.mxu0 %v3125
    %3987 = vmatpush.bf16.msra.mxu0 %v3124
    %3988 = vmatpush.bf16.msra.mxu0 %v3123
    %3989 = vmatmul.bf16.gmra.mxu0 %v1365
    %v3990 = vpop.f32.mrf.mxu0
    %v3991 = vadd.f32 %v3978, %v3990
    %v3992 = vpop.f32.mrf.mxu0
    %3993 = vdwg.mxu0
    %3994 = vmatpush.bf16.msra.mxu0 %v3138
    %3995 = vmatpush.bf16.msra.mxu0 %v3137
    %3996 = vmatpush.bf16.msra.mxu0 %v3136
    %3997 = vmatpush.bf16.msra.mxu0 %v3135
    %3998 = vmatpush.bf16.msra.mxu0 %v3134
    %3999 = vmatpush.bf16.msra.mxu0 %v3133
    %4000 = vmatpush.bf16.msra.mxu0 %v3132
    %4001 = vmatpush.bf16.msra.mxu0 %v3131
    %4002 = vmatmul.bf16.gmra.mxu0 %v1366
    %v4003 = vpop.f32.mrf.mxu0
    %v4004 = vadd.f32 %v3991, %v4003
    %v4005 = vpop.f32.mrf.mxu0
    %4006 = vdwg.mxu0
    %4007 = vmatpush.bf16.msra.mxu0 %v3146
    %4008 = vmatpush.bf16.msra.mxu0 %v3145
    %4009 = vmatpush.bf16.msra.mxu0 %v3144
    %4010 = vmatpush.bf16.msra.mxu0 %v3143
    %4011 = vmatpush.bf16.msra.mxu0 %v3142
    %4012 = vmatpush.bf16.msra.mxu0 %v3141
    %4013 = vmatpush.bf16.msra.mxu0 %v3140
    %4014 = vmatpush.bf16.msra.mxu0 %v3139
    %4015 = vmatmul.bf16.gmra.mxu0 %v1367
    %v4016 = vpop.f32.mrf.mxu0
    %v4017 = vadd.f32 %v4004, %v4016
    %v4018 = vpop.f32.mrf.mxu0
    %4019 = vdwg.mxu0
    %4020 = vmatpush.bf16.msra.mxu0 %v3154
    %4021 = vmatpush.bf16.msra.mxu0 %v3153
    %4022 = vmatpush.bf16.msra.mxu0 %v3152
    %4023 = vmatpush.bf16.msra.mxu0 %v3151
    %4024 = vmatpush.bf16.msra.mxu0 %v3150
    %4025 = vmatpush.bf16.msra.mxu0 %v3149
    %4026 = vmatpush.bf16.msra.mxu0 %v3148
    %4027 = vmatpush.bf16.msra.mxu0 %v3147
    %4028 = vmatmul.bf16.gmra.mxu0 %v1368
    %v4029 = vpop.f32.mrf.mxu0
    %v4030 = vadd.f32 %v4017, %v4029
    %v4031 = vpop.f32.mrf.mxu0
    %4032 = vdwg.mxu0
    %4033 = vmatpush.bf16.msra.mxu0 %v3162
    %4034 = vmatpush.bf16.msra.mxu0 %v3161
    %4035 = vmatpush.bf16.msra.mxu0 %v3160
    %4036 = vmatpush.bf16.msra.mxu0 %v3159
    %4037 = vmatpush.bf16.msra.mxu0 %v3158
    %4038 = vmatpush.bf16.msra.mxu0 %v3157
    %4039 = vmatpush.bf16.msra.mxu0 %v3156
    %4040 = vmatpush.bf16.msra.mxu0 %v3155
    %4041 = vmatmul.bf16.gmra.mxu0 %v1369
    %v4042 = vpop.f32.mrf.mxu0
    %v4043 = vadd.f32 %v4030, %v4042
    %v4044 = vpop.f32.mrf.mxu0
    %4045 = vdwg.mxu0
    %4046 = vmatpush.bf16.msra.mxu0 %v3170
    %4047 = vmatpush.bf16.msra.mxu0 %v3169
    %4048 = vmatpush.bf16.msra.mxu0 %v3168
    %4049 = vmatpush.bf16.msra.mxu0 %v3167
    %4050 = vmatpush.bf16.msra.mxu0 %v3166
    %4051 = vmatpush.bf16.msra.mxu0 %v3165
    %4052 = vmatpush.bf16.msra.mxu0 %v3164
    %4053 = vmatpush.bf16.msra.mxu0 %v3163
    %4054 = vmatmul.bf16.gmra.mxu0 %v1370
    %v4055 = vpop.f32.mrf.mxu0
    %v4056 = vadd.f32 %v4043, %v4055
    %v4057 = vpop.f32.mrf.mxu0
    %4058 = vdwg.mxu0
    %4059 = vmatpush.bf16.msra.mxu0 %v3178
    %4060 = vmatpush.bf16.msra.mxu0 %v3177
    %4061 = vmatpush.bf16.msra.mxu0 %v3176
    %4062 = vmatpush.bf16.msra.mxu0 %v3175
    %4063 = vmatpush.bf16.msra.mxu0 %v3174
    %4064 = vmatpush.bf16.msra.mxu0 %v3173
    %4065 = vmatpush.bf16.msra.mxu0 %v3172
    %4066 = vmatpush.bf16.msra.mxu0 %v3171
    %4067 = vmatmul.bf16.gmra.mxu0 %v1371
    %v4068 = vpop.f32.mrf.mxu0
    %v4069 = vadd.f32 %v4056, %v4068
    %v4070 = vpop.f32.mrf.mxu0
    %4071 = vdwg.mxu0
    %4072 = vmatpush.bf16.msra.mxu0 %v3186
    %4073 = vmatpush.bf16.msra.mxu0 %v3185
    %4074 = vmatpush.bf16.msra.mxu0 %v3184
    %4075 = vmatpush.bf16.msra.mxu0 %v3183
    %4076 = vmatpush.bf16.msra.mxu0 %v3182
    %4077 = vmatpush.bf16.msra.mxu0 %v3181
    %4078 = vmatpush.bf16.msra.mxu0 %v3180
    %4079 = vmatpush.bf16.msra.mxu0 %v3179
    %4080 = vmatmul.bf16.gmra.mxu0 %v1372
    %v4081 = vpop.f32.mrf.mxu0
    %v4082 = vadd.f32 %v4069, %v4081
    %v4083 = vpop.f32.mrf.mxu0
    %4084 = vdwg.mxu0
    %4085 = vmatpush.bf16.msra.mxu0 %v3194
    %4086 = vmatpush.bf16.msra.mxu0 %v3193
    %4087 = vmatpush.bf16.msra.mxu0 %v3192
    %4088 = vmatpush.bf16.msra.mxu0 %v3191
    %4089 = vmatpush.bf16.msra.mxu0 %v3190
    %4090 = vmatpush.bf16.msra.mxu0 %v3189
    %4091 = vmatpush.bf16.msra.mxu0 %v3188
    %4092 = vmatpush.bf16.msra.mxu0 %v3187
    %4093 = vmatmul.bf16.gmra.mxu0 %v1373
    %v4094 = vpop.f32.mrf.mxu0
    %v4095 = vadd.f32 %v4082, %v4094
    %v4096 = vpop.f32.mrf.mxu0
    %4097 = vdwg.mxu0
    %4098 = vmatpush.bf16.msra.mxu0 %v3202
    %4099 = vmatpush.bf16.msra.mxu0 %v3201
    %4100 = vmatpush.bf16.msra.mxu0 %v3200
    %4101 = vmatpush.bf16.msra.mxu0 %v3199
    %4102 = vmatpush.bf16.msra.mxu0 %v3198
    %4103 = vmatpush.bf16.msra.mxu0 %v3197
    %4104 = vmatpush.bf16.msra.mxu0 %v3196
    %4105 = vmatpush.bf16.msra.mxu0 %v3195
    %4106 = vmatmul.bf16.gmra.mxu0 %v1374
    %v4107 = vpop.f32.mrf.mxu0
    %v4108 = vadd.f32 %v4095, %v4107
    %v4109 = vpop.f32.mrf.mxu0
    %4110 = vdwg.mxu0
    %4111 = vmatpush.bf16.msra.mxu0 %v3210
    %4112 = vmatpush.bf16.msra.mxu0 %v3209
    %4113 = vmatpush.bf16.msra.mxu0 %v3208
    %4114 = vmatpush.bf16.msra.mxu0 %v3207
    %4115 = vmatpush.bf16.msra.mxu0 %v3206
    %4116 = vmatpush.bf16.msra.mxu0 %v3205
    %4117 = vmatpush.bf16.msra.mxu0 %v3204
    %4118 = vmatpush.bf16.msra.mxu0 %v3203
    %4119 = vmatmul.bf16.gmra.mxu0 %v1375
    %v4120 = vpop.f32.mrf.mxu0
    %v4121 = vadd.f32 %v4108, %v4120
    %v4122 = vpop.f32.mrf.mxu0
    %4123 = vdwg.mxu0
    %4124 = vmatpush.bf16.msra.mxu0 %v3218
    %4125 = vmatpush.bf16.msra.mxu0 %v3217
    %4126 = vmatpush.bf16.msra.mxu0 %v3216
    %4127 = vmatpush.bf16.msra.mxu0 %v3215
    %4128 = vmatpush.bf16.msra.mxu0 %v3214
    %4129 = vmatpush.bf16.msra.mxu0 %v3213
    %4130 = vmatpush.bf16.msra.mxu0 %v3212
    %4131 = vmatpush.bf16.msra.mxu0 %v3211
    %4132 = vmatmul.bf16.gmra.mxu0 %v1376
    %v4133 = vpop.f32.mrf.mxu0
    %v4134 = vadd.f32 %v4121, %v4133
    %v4135 = vpop.f32.mrf.mxu0
    %4136 = vdwg.mxu0
    %4137 = vmatpush.bf16.msra.mxu0 %v3226
    %4138 = vmatpush.bf16.msra.mxu0 %v3225
    %4139 = vmatpush.bf16.msra.mxu0 %v3224
    %4140 = vmatpush.bf16.msra.mxu0 %v3223
    %4141 = vmatpush.bf16.msra.mxu0 %v3222
    %4142 = vmatpush.bf16.msra.mxu0 %v3221
    %4143 = vmatpush.bf16.msra.mxu0 %v3220
    %4144 = vmatpush.bf16.msra.mxu0 %v3219
    %4145 = vmatmul.bf16.gmra.mxu0 %v1377
    %v4146 = vpop.f32.mrf.mxu0
    %v4147 = vadd.f32 %v4134, %v4146
    %v4148 = vpop.f32.mrf.mxu0
    %4149 = vdwg.mxu0
    %4150 = vmatpush.bf16.msra.mxu0 %v3234
    %4151 = vmatpush.bf16.msra.mxu0 %v3233
    %4152 = vmatpush.bf16.msra.mxu0 %v3232
    %4153 = vmatpush.bf16.msra.mxu0 %v3231
    %4154 = vmatpush.bf16.msra.mxu0 %v3230
    %4155 = vmatpush.bf16.msra.mxu0 %v3229
    %4156 = vmatpush.bf16.msra.mxu0 %v3228
    %4157 = vmatpush.bf16.msra.mxu0 %v3227
    %4158 = vmatmul.bf16.gmra.mxu0 %v1378
    %v4159 = vpop.f32.mrf.mxu0
    %v4160 = vadd.f32 %v4147, %v4159
    %v4161 = vpop.f32.mrf.mxu0
    %4162 = vdwg.mxu0
    %4163 = vmatpush.bf16.msra.mxu0 %v3242
    %4164 = vmatpush.bf16.msra.mxu0 %v3241
    %4165 = vmatpush.bf16.msra.mxu0 %v3240
    %4166 = vmatpush.bf16.msra.mxu0 %v3239
    %4167 = vmatpush.bf16.msra.mxu0 %v3238
    %4168 = vmatpush.bf16.msra.mxu0 %v3237
    %4169 = vmatpush.bf16.msra.mxu0 %v3236
    %4170 = vmatpush.bf16.msra.mxu0 %v3235
    %4171 = vmatmul.bf16.gmra.mxu0 %v1379
    %v4172 = vpop.f32.mrf.mxu0
    %v4173 = vadd.f32 %v4160, %v4172
    %v4174 = vpop.f32.mrf.mxu0
    %4175 = vdwg.mxu0
    %4176 = vmatpush.bf16.msra.mxu0 %v3250
    %4177 = vmatpush.bf16.msra.mxu0 %v3249
    %4178 = vmatpush.bf16.msra.mxu0 %v3248
    %4179 = vmatpush.bf16.msra.mxu0 %v3247
    %4180 = vmatpush.bf16.msra.mxu0 %v3246
    %4181 = vmatpush.bf16.msra.mxu0 %v3245
    %4182 = vmatpush.bf16.msra.mxu0 %v3244
    %4183 = vmatpush.bf16.msra.mxu0 %v3243
    %4184 = vmatmul.bf16.gmra.mxu0 %v1380
    %v4185 = vpop.f32.mrf.mxu0
    %v4186 = vadd.f32 %v4173, %v4185
    %v4187 = vpop.f32.mrf.mxu0
    %4188 = vdwg.mxu0
    %4189 = vmatpush.bf16.msra.mxu0 %v3258
    %4190 = vmatpush.bf16.msra.mxu0 %v3257
    %4191 = vmatpush.bf16.msra.mxu0 %v3256
    %4192 = vmatpush.bf16.msra.mxu0 %v3255
    %4193 = vmatpush.bf16.msra.mxu0 %v3254
    %4194 = vmatpush.bf16.msra.mxu0 %v3253
    %4195 = vmatpush.bf16.msra.mxu0 %v3252
    %4196 = vmatpush.bf16.msra.mxu0 %v3251
    %4197 = vmatmul.bf16.gmra.mxu0 %v1381
    %v4198 = vpop.f32.mrf.mxu0
    %v4199 = vadd.f32 %v4186, %v4198
    %v4200 = vpop.f32.mrf.mxu0
    %4201 = vdwg.mxu0
    %4202 = vmatpush.bf16.msra.mxu0 %v3266
    %4203 = vmatpush.bf16.msra.mxu0 %v3265
    %4204 = vmatpush.bf16.msra.mxu0 %v3264
    %4205 = vmatpush.bf16.msra.mxu0 %v3263
    %4206 = vmatpush.bf16.msra.mxu0 %v3262
    %4207 = vmatpush.bf16.msra.mxu0 %v3261
    %4208 = vmatpush.bf16.msra.mxu0 %v3260
    %4209 = vmatpush.bf16.msra.mxu0 %v3259
    %4210 = vmatmul.bf16.gmra.mxu0 %v1382
    %v4211 = vpop.f32.mrf.mxu0
    %v4212 = vadd.f32 %v4199, %v4211
    %v4213 = vpop.f32.mrf.mxu0
    %4214 = vdwg.mxu0
    %4215 = vmatpush.bf16.msra.mxu0 %v3274
    %4216 = vmatpush.bf16.msra.mxu0 %v3273
    %4217 = vmatpush.bf16.msra.mxu0 %v3272
    %4218 = vmatpush.bf16.msra.mxu0 %v3271
    %4219 = vmatpush.bf16.msra.mxu0 %v3270
    %4220 = vmatpush.bf16.msra.mxu0 %v3269
    %4221 = vmatpush.bf16.msra.mxu0 %v3268
    %4222 = vmatpush.bf16.msra.mxu0 %v3267
    %4223 = vmatmul.bf16.gmra.mxu0 %v1383
    %v4224 = vpop.f32.mrf.mxu0
    %v4225 = vadd.f32 %v4212, %v4224
    %v4226 = vpop.f32.mrf.mxu0
    %4227 = vdwg.mxu0
    %4228 = vmatpush.bf16.msra.mxu0 %v3282
    %4229 = vmatpush.bf16.msra.mxu0 %v3281
    %4230 = vmatpush.bf16.msra.mxu0 %v3280
    %4231 = vmatpush.bf16.msra.mxu0 %v3279
    %4232 = vmatpush.bf16.msra.mxu0 %v3278
    %4233 = vmatpush.bf16.msra.mxu0 %v3277
    %4234 = vmatpush.bf16.msra.mxu0 %v3276
    %4235 = vmatpush.bf16.msra.mxu0 %v3275
    %4236 = vmatmul.bf16.gmra.mxu0 %v1384
    %v4237 = vpop.f32.mrf.mxu0
    %v4238 = vadd.f32 %v4225, %v4237
    %v4239 = vpop.f32.mrf.mxu0
    %4240 = vdwg.mxu0
    %4241 = vmatpush.bf16.msra.mxu0 %v3290
    %4242 = vmatpush.bf16.msra.mxu0 %v3289
    %4243 = vmatpush.bf16.msra.mxu0 %v3288
    %4244 = vmatpush.bf16.msra.mxu0 %v3287
    %4245 = vmatpush.bf16.msra.mxu0 %v3286
    %4246 = vmatpush.bf16.msra.mxu0 %v3285
    %4247 = vmatpush.bf16.msra.mxu0 %v3284
    %4248 = vmatpush.bf16.msra.mxu0 %v3283
    %4249 = vmatmul.bf16.gmra.mxu0 %v1385
    %v4250 = vpop.f32.mrf.mxu0
    %v4251 = vadd.f32 %v4238, %v4250
    %v4252 = vpop.f32.mrf.mxu0
    %4253 = vdwg.mxu0
    %4254 = vmatpush.bf16.msra.mxu0 %v3298
    %4255 = vmatpush.bf16.msra.mxu0 %v3297
    %4256 = vmatpush.bf16.msra.mxu0 %v3296
    %4257 = vmatpush.bf16.msra.mxu0 %v3295
    %4258 = vmatpush.bf16.msra.mxu0 %v3294
    %4259 = vmatpush.bf16.msra.mxu0 %v3293
    %4260 = vmatpush.bf16.msra.mxu0 %v3292
    %4261 = vmatpush.bf16.msra.mxu0 %v3291
    %4262 = vmatmul.bf16.gmra.mxu0 %v1386
    %v4263 = vpop.f32.mrf.mxu0
    %v4264 = vadd.f32 %v4251, %v4263
    %v4265 = vpop.f32.mrf.mxu0
    %4266 = vdwg.mxu0
    %4267 = vmatpush.bf16.msra.mxu0 %v3306
    %4268 = vmatpush.bf16.msra.mxu0 %v3305
    %4269 = vmatpush.bf16.msra.mxu0 %v3304
    %4270 = vmatpush.bf16.msra.mxu0 %v3303
    %4271 = vmatpush.bf16.msra.mxu0 %v3302
    %4272 = vmatpush.bf16.msra.mxu0 %v3301
    %4273 = vmatpush.bf16.msra.mxu0 %v3300
    %4274 = vmatpush.bf16.msra.mxu0 %v3299
    %4275 = vmatmul.bf16.gmra.mxu0 %v1387
    %v4276 = vpop.f32.mrf.mxu0
    %v4277 = vadd.f32 %v4264, %v4276
    %v4278 = vpop.f32.mrf.mxu0
    %4279 = vdwg.mxu0
    %4280 = vmatpush.bf16.msra.mxu0 %v3314
    %4281 = vmatpush.bf16.msra.mxu0 %v3313
    %4282 = vmatpush.bf16.msra.mxu0 %v3312
    %4283 = vmatpush.bf16.msra.mxu0 %v3311
    %4284 = vmatpush.bf16.msra.mxu0 %v3310
    %4285 = vmatpush.bf16.msra.mxu0 %v3309
    %4286 = vmatpush.bf16.msra.mxu0 %v3308
    %4287 = vmatpush.bf16.msra.mxu0 %v3307
    %4288 = vmatmul.bf16.gmra.mxu0 %v1388
    %v4289 = vpop.f32.mrf.mxu0
    %v4290 = vadd.f32 %v4277, %v4289
    %v4291 = vpop.f32.mrf.mxu0
    %4292 = vdwg.mxu0
    %4293 = vmatpush.bf16.msra.mxu0 %v3322
    %4294 = vmatpush.bf16.msra.mxu0 %v3321
    %4295 = vmatpush.bf16.msra.mxu0 %v3320
    %4296 = vmatpush.bf16.msra.mxu0 %v3319
    %4297 = vmatpush.bf16.msra.mxu0 %v3318
    %4298 = vmatpush.bf16.msra.mxu0 %v3317
    %4299 = vmatpush.bf16.msra.mxu0 %v3316
    %4300 = vmatpush.bf16.msra.mxu0 %v3315
    %4301 = vmatmul.bf16.gmra.mxu0 %v1389
    %v4302 = vpop.f32.mrf.mxu0
    %v4303 = vadd.f32 %v4290, %v4302
    %v4304 = vpop.f32.mrf.mxu0
    %4305 = vdwg.mxu0
    %4306 = vmatpush.bf16.msra.mxu0 %v3330
    %4307 = vmatpush.bf16.msra.mxu0 %v3329
    %4308 = vmatpush.bf16.msra.mxu0 %v3328
    %4309 = vmatpush.bf16.msra.mxu0 %v3327
    %4310 = vmatpush.bf16.msra.mxu0 %v3326
    %4311 = vmatpush.bf16.msra.mxu0 %v3325
    %4312 = vmatpush.bf16.msra.mxu0 %v3324
    %4313 = vmatpush.bf16.msra.mxu0 %v3323
    %4314 = vmatmul.bf16.gmra.mxu0 %v1390
    %v4315 = vpop.f32.mrf.mxu0
    %v4316 = vadd.f32 %v4303, %v4315
    %v4317 = vpop.f32.mrf.mxu0
    %4318 = vdwg.mxu0
    %4319 = vmatpush.bf16.msra.mxu0 %v3338
    %4320 = vmatpush.bf16.msra.mxu0 %v3337
    %4321 = vmatpush.bf16.msra.mxu0 %v3336
    %4322 = vmatpush.bf16.msra.mxu0 %v3335
    %4323 = vmatpush.bf16.msra.mxu0 %v3334
    %4324 = vmatpush.bf16.msra.mxu0 %v3333
    %4325 = vmatpush.bf16.msra.mxu0 %v3332
    %4326 = vmatpush.bf16.msra.mxu0 %v3331
    %4327 = vmatmul.bf16.gmra.mxu0 %v1391
    %v4328 = vpop.f32.mrf.mxu0
    %v4329 = vadd.f32 %v4316, %v4328
    %v4330 = vpop.f32.mrf.mxu0
    %4331 = vdwg.mxu0
    %4332 = vmatpush.bf16.msra.mxu0 %v3346
    %4333 = vmatpush.bf16.msra.mxu0 %v3345
    %4334 = vmatpush.bf16.msra.mxu0 %v3344
    %4335 = vmatpush.bf16.msra.mxu0 %v3343
    %4336 = vmatpush.bf16.msra.mxu0 %v3342
    %4337 = vmatpush.bf16.msra.mxu0 %v3341
    %4338 = vmatpush.bf16.msra.mxu0 %v3340
    %4339 = vmatpush.bf16.msra.mxu0 %v3339
    %4340 = vmatmul.bf16.gmra.mxu0 %v1392
    %v4341 = vpop.f32.mrf.mxu0
    %v4342 = vadd.f32 %v4329, %v4341
    %v4343 = vpop.f32.mrf.mxu0
    %4344 = vdwg.mxu0
    %4345 = vmatpush.bf16.msra.mxu0 %v3354
    %4346 = vmatpush.bf16.msra.mxu0 %v3353
    %4347 = vmatpush.bf16.msra.mxu0 %v3352
    %4348 = vmatpush.bf16.msra.mxu0 %v3351
    %4349 = vmatpush.bf16.msra.mxu0 %v3350
    %4350 = vmatpush.bf16.msra.mxu0 %v3349
    %4351 = vmatpush.bf16.msra.mxu0 %v3348
    %4352 = vmatpush.bf16.msra.mxu0 %v3347
    %4353 = vmatmul.bf16.gmra.mxu0 %v1393
    %v4354 = vpop.f32.mrf.mxu0
    %v4355 = vadd.f32 %v4342, %v4354
    %v4356 = vpop.f32.mrf.mxu0
    %4357 = vdwg.mxu0
    %4358 = vmatpush.bf16.msra.mxu0 %v3362
    %4359 = vmatpush.bf16.msra.mxu0 %v3361
    %4360 = vmatpush.bf16.msra.mxu0 %v3360
    %4361 = vmatpush.bf16.msra.mxu0 %v3359
    %4362 = vmatpush.bf16.msra.mxu0 %v3358
    %4363 = vmatpush.bf16.msra.mxu0 %v3357
    %4364 = vmatpush.bf16.msra.mxu0 %v3356
    %4365 = vmatpush.bf16.msra.mxu0 %v3355
    %4366 = vmatmul.bf16.gmra.mxu0 %v1394
    %v4367 = vpop.f32.mrf.mxu0
    %v4368 = vadd.f32 %v4355, %v4367
    %v4369 = vpop.f32.mrf.mxu0
    %4370 = vdwg.mxu0
    %v4371 = vtanh.pop %v4368
    %v4372 = vpack.c.bf16 %v4371, %v4371
    %v4373 = vld [vmem:[#allocation9] sm:$0xf]
    %v4374 = vld [vmem:[#allocation9 + $0x4] sm:$0xf]
    %v4375 = vld [vmem:[#allocation9 + $0x8] sm:$0xf]
    %v4376 = vld [vmem:[#allocation9 + $0xc] sm:$0xf]
    %v4377 = vld [vmem:[#allocation9 + $0x10] sm:$0xf]
    %v4378 = vld [vmem:[#allocation9 + $0x14] sm:$0xf]
    %v4379 = vld [vmem:[#allocation9 + $0x18] sm:$0xf]
    %v4380 = vld [vmem:[#allocation9 + $0x1c] sm:$0xf]
    %v4381 = vld [vmem:[#allocation9 + $0x20] sm:$0xf]
    %v4382 = vld [vmem:[#allocation9 + $0x24] sm:$0xf]
    %v4383 = vld [vmem:[#allocation9 + $0x28] sm:$0xf]
    %v4384 = vld [vmem:[#allocation9 + $0x2c] sm:$0xf]
    %v4385 = vld [vmem:[#allocation9 + $0x30] sm:$0xf]
    %v4386 = vld [vmem:[#allocation9 + $0x34] sm:$0xf]
    %v4387 = vld [vmem:[#allocation9 + $0x38] sm:$0xf]
    %v4388 = vld [vmem:[#allocation9 + $0x3c] sm:$0xf]
    %v4389 = vld [vmem:[#allocation11] sm:$0x1]
    %v4391 = vperm.slane %v4389, 0
    %v4409 = vunpack.c.l.b16 %v4373
    %v4410 = vunpack.c.l.b16 %v4374
    %v4411 = vunpack.c.l.b16 %v4375
    %v4412 = vunpack.c.l.b16 %v4376
    %v4413 = vunpack.c.l.b16 %v4377
    %v4414 = vunpack.c.l.b16 %v4378
    %v4415 = vunpack.c.l.b16 %v4379
    %v4416 = vunpack.c.l.b16 %v4380
    %v4417 = vunpack.c.l.b16 %v4381
    %v4418 = vunpack.c.l.b16 %v4382
    %v4419 = vunpack.c.l.b16 %v4383
    %v4420 = vunpack.c.l.b16 %v4384
    %v4421 = vunpack.c.l.b16 %v4385
    %v4422 = vunpack.c.l.b16 %v4386
    %v4423 = vunpack.c.l.b16 %v4387
    %v4424 = vunpack.c.l.b16 %v4388
    %v4425 = vpack.c.b16 %v4410, %v4409
    %v4426 = vpack.c.b16 %v4412, %v4411
    %v4427 = vpack.c.b16 %v4414, %v4413
    %v4428 = vpack.c.b16 %v4416, %v4415
    %v4429 = vpack.c.b16 %v4418, %v4417
    %v4430 = vpack.c.b16 %v4420, %v4419
    %v4431 = vpack.c.b16 %v4422, %v4421
    %v4432 = vpack.c.b16 %v4424, %v4423
    %4441 = vmatpush.bf16.msra.mxu0 %v4432
    %4442 = vmatpush.bf16.msra.mxu0 %v4431
    %4443 = vmatpush.bf16.msra.mxu0 %v4430
    %4444 = vmatpush.bf16.msra.mxu0 %v4429
    %4445 = vmatpush.bf16.msra.mxu0 %v4428
    %4446 = vmatpush.bf16.msra.mxu0 %v4427
    %4447 = vmatpush.bf16.msra.mxu0 %v4426
    %4448 = vmatpush.bf16.msra.mxu0 %v4425
    %4449 = vmatmul.bf16.gmra.mxu0 %v4372
    %v4450 = vpop.f32.mrf.mxu0
    %v4451 = vadd.f32 %v4391, %v4450
    %v4452 = vpop.f32.mrf.mxu0
    %4453 = vdwg.mxu0
    %4454 = vst [vmem:[#allocation12] sm:$0xff] %v4451
    // Predicated region
    $region42: #{tpu_custom_call.1} parent=1 // pred_check
      _
    $region43: #{tpu_custom_call.1} parent=1 // pred_check_branch
      %4456 = sbr.rel (0) target = $region45
    $region44: #{tpu_custom_call.1} parent=1 // pred_region
      %4458 = vsyncadd [#allocation5], 0
      %s4460 = sshll.u32 [#allocation12], 4
      %s4461 = int_to_ptr.vmem [resolvable:$true] %s4460
      %s4462 = sshll.u32 %s5, 4
      %s4463 = int_to_ptr.hbm [resolvable:$true] %s4462
      %4465 = dma.vmem_to_hbm [thread:$0]  %s4461, 128, %s4463, [#allocation5]
    $region45: #{tpu_custom_call.1} parent=1 // pred_fallthru
      _
    // Predicated region
    $region46: #{tpu_custom_call.1} parent=1 // pred_check
      _
    $region47: #{tpu_custom_call.1} parent=1 // pred_check_branch
      %4467 = sbr.rel (0) target = $region49
    $region48: #{tpu_custom_call.1} parent=1 // pred_region
      %4469 = dma.done [#allocation5], 128
    $region49: #{tpu_custom_call.1} parent=1 // pred_fallthru
      _
    %4470 = vsyncpa [#allocation4], 1
    %4471 = vsyncpa [#allocation7], 1
    %4472 = vsyncpa [#allocation10], 1
    %4473 = vsyncpa [#allocation5], 1

</llo_original>
